<compile_context>
chip_gen: v7x
topology: tpu7x:2x2x1
jax: 0.10.0
libtpu: 0.0.40
codegen_flags: <defaults>
</compile_context>

<pallas_src>
import functools
import math

import jax
import jax.numpy as jnp
import numpy as np
from jax.experimental import pallas as pl
from jax.experimental.pallas import tpu as pltpu

_PW = 8  # sublane-aligned offset of the interior inside the width-padded scratch


def _sigmoid(z):
    # 1 / (1 + exp(-z)); the reciprocal goes to the EUP slot (approx is ample
    # for a gate that multiplies O(1) activations).
    return pl.reciprocal(1.0 + jnp.exp(-z), approx=True)


def _attn_kernel(x_ref, we1_ref, bnb1_ref, dfc1_ref, dfc2_ref,
                 ufc1_ref, ufc2_ref, we2_ref, bnb2_ref, out_ref, pad_ref,
                 *, H, W, C, down_mode):
    # Zero the halo scratch once per grid step; only the interior is rewritten
    # afterwards, so the 1-pixel border stays zero for both convolutions.
    pad_ref[...] = jnp.zeros_like(pad_ref)

    def sepconv(x_hwc, we_ref, bnb_ref):
        """Depthwise 3x3 (pad=1) + pointwise 1x1 + BN(eval) + ReLU.

        The depthwise taps and the BN scale are pre-folded into we_ref
        (9C, C) in the wrapper, so the whole conv is one K=9C MXU matmul
        over an im2col matrix.  Returns (H*W, C) float32.
        """
        # Interior store: leading-dim offset 1 is free, width offset _PW=8 is
        # sublane-tile aligned -> plain (untouched-border) tile stores.
        pad_ref[1:H + 1, _PW:_PW + W, :] = x_hwc
        # im2col: column block k = kh*3 + kw holds x[h+kh-1, w+kw-1, :]
        # (matches the (9C, C) folded-weight row ordering).
        rows = []
        for kh in range(3):
            rows.append(jnp.concatenate(
                [pad_ref[kh:kh + H, _PW - 1 + kw:_PW - 1 + kw + W, :]
                 for kw in range(3)], axis=-1))                  # (H, W, 3C)
        col = jnp.concatenate(rows, axis=-1).reshape(H * W, 9 * C)
        y = jnp.dot(col, we_ref[...], preferred_element_type=jnp.float32)
        return jnp.maximum(y + bnb_ref[...], 0.0)                # BN shift + ReLU

    # ---- conv1: SeparableConvBNReLU ----
    xa = sepconv(x_ref[0].astype(jnp.float32), we1_ref, bnb1_ref)   # (H*W, C)

    # ---- Down_Attention: global pool -> FC -> ReLU -> FC -> sigmoid ----
    if down_mode == 'avg':
        v = jnp.mean(xa, axis=0, keepdims=True)                     # (1, C)
    else:  # 'max'
        v = jnp.max(xa, axis=0, keepdims=True)
    h1 = jnp.maximum(
        jnp.dot(v, dfc1_ref[...], preferred_element_type=jnp.float32), 0.0)
    g_dn = _sigmoid(
        jnp.dot(h1, dfc2_ref[...], preferred_element_type=jnp.float32))  # (1, C)

    # ---- Up_Attention: positive-fraction statistics -> FCs -> sigmoid ----
    w1 = jnp.sum((xa > 0.0).astype(jnp.float32), axis=0,
                 keepdims=True) * (1.0 / (H * W))                   # (1, C)
    w21 = C * 0.0001 + jnp.sum(w1, axis=1, keepdims=True)           # (1, 1)
    wl = jnp.log(w21 / (w1 + 0.0001))                               # (1, C)
    h2 = jnp.maximum(
        jnp.dot(wl, ufc1_ref[...], preferred_element_type=jnp.float32), 0.0)
    g_up = _sigmoid(
        jnp.dot(h2, ufc2_ref[...], preferred_element_type=jnp.float32))  # (1, C)

    # x1 + x2 = x*g_dn + x*g_up = x*(g_dn + g_up)
    xm = xa * (g_dn + g_up)

    # ---- conv2: SeparableConvBNReLU on the gated sum ----
    y = sepconv(xm.reshape(H, W, C), we2_ref, bnb2_ref)
    out_ref[0] = y.reshape(H, W, C)


def _fold_conv(dw, pw, bns):
    """Fold depthwise taps (9,C), pointwise (C,C) [y = x @ pw] and the BN scale
    (1,C) into a single (9C, C) im2col weight."""
    C = dw.shape[1]
    we = (dw[:, :, None] * pw[None, :, :]).reshape(9 * C, C)
    return we * bns


@functools.partial(jax.jit, static_argnames=('down_mode',))
def attention_forward(x_nchw, params, down_mode='avg'):
    """Forward of the PyTorch `Attention` block. x_nchw: (B, C, H, W) f32."""
    B, C, H, W = x_nchw.shape
    Cr = params['dfc1'].shape[1]
    x = jnp.transpose(x_nchw, (0, 2, 3, 1)).astype(jnp.float32)     # NHWC

    we1 = _fold_conv(params['dw1'], params['pw1'], params['bn1s'])
    we2 = _fold_conv(params['dw2'], params['pw2'], params['bn2s'])

    def full(shape):
        return pl.BlockSpec(shape, lambda b: (0,) * len(shape))

    img_spec = pl.BlockSpec((1, H, W, C), lambda b: (b, 0, 0, 0))
    kern = functools.partial(_attn_kernel, H=H, W=W, C=C, down_mode=down_mode)

    out = pl.pallas_call(
        kern,
        out_shape=jax.ShapeDtypeStruct((B, H, W, C), jnp.float32),
        grid=(B,),
        in_specs=[img_spec,
                  full((9 * C, C)), full((1, C)),
                  full((C, Cr)), full((Cr, C)),
                  full((C, Cr)), full((Cr, C)),
                  full((9 * C, C)), full((1, C))],
        out_specs=img_spec,
        scratch_shapes=[pltpu.VMEM((H + 2, W + 2 * _PW, C), jnp.float32)],
        compiler_params=pltpu.CompilerParams(
            dimension_semantics=("parallel",)),
    )(x, we1, params['bn1b'], params['dfc1'], params['dfc2'],
      params['ufc1'], params['ufc2'], we2, params['bn2b'])

    return jnp.transpose(out, (0, 3, 1, 2))                         # back to NCHW


# ------------------------- pure-JAX reference --------------------------------
def _ref_forward(x_nchw, params, down_mode='avg'):
    x = jnp.transpose(x_nchw, (0, 2, 3, 1)).astype(jnp.float32)
    B, H, W, C = x.shape

    def sep(x, dw, pw, s, b):
        xp = jnp.pad(x, ((0, 0), (1, 1), (1, 1), (0, 0)))
        acc = jnp.zeros_like(x)
        for kh in range(3):
            for kw in range(3):
                acc = acc + xp[:, kh:kh + H, kw:kw + W, :] * dw[kh * 3 + kw]
        y = jnp.einsum('bhwc,cd->bhwd', acc, pw,
                       precision=jax.lax.Precision.HIGHEST)
        y = y * s + b
        return jnp.maximum(y, 0.0)

    x = sep(x, params['dw1'], params['pw1'], params['bn1s'], params['bn1b'])
    # Down_Attention
    if down_mode == 'avg':
        v = jnp.mean(x, axis=(1, 2))
    else:
        v = jnp.max(x, axis=(1, 2))
    v = jnp.maximum(v @ params['dfc1'], 0.0) @ params['dfc2']
    v = 1.0 / (1.0 + jnp.exp(-v))
    x1 = x * v[:, None, None, :]
    # Up_Attention
    w1 = jnp.mean((x > 0).astype(jnp.float32), axis=(1, 2))          # (B, C)
    w21 = C * 0.0001 + jnp.sum(w1, axis=1, keepdims=True)            # (B, 1)
    w22 = 1.0 / (w1 + 0.0001)
    w2 = jnp.log(w21 * w22)
    w2 = jnp.maximum(w2 @ params['ufc1'], 0.0) @ params['ufc2']
    w2 = 1.0 / (1.0 + jnp.exp(-w2))
    x2 = x * w2[:, None, None, :]
    out = sep(x1 + x2, params['dw2'], params['pw2'], params['bn2s'], params['bn2b'])
    return jnp.transpose(out, (0, 3, 1, 2))


# ------------------------- deterministic parameter init ----------------------
def init_params(key, C, ratio):
    Cr = C // ratio
    ks = jax.random.split(key, 16)

    def n(k, shape, scale):
        return jax.random.normal(k, shape, jnp.float32) * scale

    def bn(kg, kb, km, kv):
        g = 1.0 + 0.1 * jax.random.normal(kg, (C,), jnp.float32)
        b = 0.1 * jax.random.normal(kb, (C,), jnp.float32)
        m = 0.1 * jax.random.normal(km, (C,), jnp.float32)
        v = jax.random.uniform(kv, (C,), jnp.float32, minval=0.5, maxval=1.5)
        s = g / jnp.sqrt(v + 1e-5)
        return s.reshape(1, C), (b - m * s).reshape(1, C)

    p = {}
    # conv1 (torch depthwise weight (C,1,3,3) -> (9,C); pointwise (C,C) -> W^T)
    p['dw1'] = n(ks[0], (C, 3, 3), 1.0 / 3.0).reshape(C, 9).T
    p['pw1'] = n(ks[1], (C, C), 1.0 / math.sqrt(C)).T
    p['bn1s'], p['bn1b'] = bn(ks[2], ks[3], ks[4], ks[5])
    # Down_Attention FCs (torch Linear weight (out,in) -> pass transposed)
    p['dfc1'] = n(ks[6], (Cr, C), 1.0 / math.sqrt(C)).T      # (C, Cr)
    p['dfc2'] = n(ks[7], (C, Cr), 1.0 / math.sqrt(Cr)).T     # (Cr, C)
    # Up_Attention FCs
    p['ufc1'] = n(ks[8], (Cr, C), 1.0 / math.sqrt(C)).T
    p['ufc2'] = n(ks[9], (C, Cr), 1.0 / math.sqrt(Cr)).T
    # conv2
    p['dw2'] = n(ks[10], (C, 3, 3), 1.0 / 3.0).reshape(C, 9).T
    p['pw2'] = n(ks[11], (C, C), 1.0 / math.sqrt(C)).T
    p['bn2s'], p['bn2b'] = bn(ks[12], ks[13], ks[14], ks[15])
    return p


if __name__ == "__main__":
    key = jax.random.PRNGKey(0)
    kx, kp = jax.random.split(key)

    B, C, H, W = 2, 32, 16, 16
    ratio = 4
    down_mode = 'avg'   # Down_Attention(mode='avg', channels=32, ratio=4)

    x = jax.random.normal(kx, (B, C, H, W), jnp.float32)
    params = init_params(kp, C, ratio)

    out = attention_forward(x, params, down_mode=down_mode)
    out = jax.block_until_ready(out)

    ref = jax.block_until_ready(_ref_forward(x, params, down_mode=down_mode))
    # Kernel uses default (single-pass bf16) MXU precision + approx reciprocal;
    # reference is f32 HIGHEST, so allow 2e-2 instead of 1e-2.
    np.testing.assert_allclose(np.asarray(out), np.asarray(ref),
                               rtol=2e-2, atol=2e-2)
    print("KERNEL_OK")
</pallas_src>

<mosaic_0001>
module attributes {stable_mosaic.version = 11 : i64} {
  func.func @_attn_kernel(%arg0: i32, %arg1: memref<1x16x16x32xf32, #tpu.memory_space<vmem>>, %arg2: memref<288x32xf32, #tpu.memory_space<vmem>>, %arg3: memref<1x32xf32, #tpu.memory_space<vmem>>, %arg4: memref<32x8xf32, #tpu.memory_space<vmem>>, %arg5: memref<8x32xf32, #tpu.memory_space<vmem>>, %arg6: memref<32x8xf32, #tpu.memory_space<vmem>>, %arg7: memref<8x32xf32, #tpu.memory_space<vmem>>, %arg8: memref<288x32xf32, #tpu.memory_space<vmem>>, %arg9: memref<1x32xf32, #tpu.memory_space<vmem>>, %arg10: memref<1x16x16x32xf32, #tpu.memory_space<vmem>>, %arg11: memref<18x32x32xf32, #tpu.memory_space<vmem>>) attributes {dimension_semantics = [#tpu.dimension_semantics<parallel>], iteration_bounds = array<i64: 2>, scalar_prefetch = 0 : i64, scratch_operands = 1 : i64, tpu.core_type = #tpu.core_type<tc>, window_params = [{transform_indices = @transform_0, window_bounds = array<i64: 1, 16, 16, 32>}, {pipeline_mode = #tpu.pipeline_mode<synchronous>, transform_indices = @transform_1, window_bounds = array<i64: 288, 32>}, {pipeline_mode = #tpu.pipeline_mode<synchronous>, transform_indices = @transform_2, window_bounds = array<i64: 1, 32>}, {pipeline_mode = #tpu.pipeline_mode<synchronous>, transform_indices = @transform_3, window_bounds = array<i64: 32, 8>}, {pipeline_mode = #tpu.pipeline_mode<synchronous>, transform_indices = @transform_4, window_bounds = array<i64: 8, 32>}, {pipeline_mode = #tpu.pipeline_mode<synchronous>, transform_indices = @transform_5, window_bounds = array<i64: 32, 8>}, {pipeline_mode = #tpu.pipeline_mode<synchronous>, transform_indices = @transform_6, window_bounds = array<i64: 8, 32>}, {pipeline_mode = #tpu.pipeline_mode<synchronous>, transform_indices = @transform_7, window_bounds = array<i64: 288, 32>}, {pipeline_mode = #tpu.pipeline_mode<synchronous>, transform_indices = @transform_8, window_bounds = array<i64: 1, 32>}, {transform_indices = @transform_9, window_bounds = array<i64: 1, 16, 16, 32>}]} {
    %cst = arith.constant 0.000000e+00 : f32
    %0 = vector.broadcast %cst : f32 to vector<18x32x32xf32>
    %c0 = arith.constant 0 : index
    %c0_0 = arith.constant 0 : index
    %c0_1 = arith.constant 0 : index
    %1 = vector.load %arg11[%c0, %c0_0, %c0_1] : memref<18x32x32xf32, #tpu.memory_space<vmem>>, vector<18x32x32xf32>
    tpu.vector_store %arg11[%c0, %c0_0, %c0_1], %0 {strides = array<i32>} : memref<18x32x32xf32, #tpu.memory_space<vmem>>, vector<18x32x32xf32>,
    %c0_2 = arith.constant 0 : index
    %c0_3 = arith.constant 0 : index
    %c0_4 = arith.constant 0 : index
    %c0_5 = arith.constant 0 : index
    %2 = vector.load %arg1[%c0_2, %c0_3, %c0_4, %c0_5] : memref<1x16x16x32xf32, #tpu.memory_space<vmem>>, vector<1x16x16x32xf32>
    %3 = vector.shape_cast %2 : vector<1x16x16x32xf32> to vector<16x16x32xf32>
    %c1 = arith.constant 1 : index
    %c8 = arith.constant 8 : index
    %c0_6 = arith.constant 0 : index
    %4 = vector.load %arg11[%c1, %c8, %c0_6] : memref<18x32x32xf32, #tpu.memory_space<vmem>>, vector<16x16x32xf32>
    tpu.vector_store %arg11[%c1, %c8, %c0_6], %3 {strides = array<i32>} : memref<18x32x32xf32, #tpu.memory_space<vmem>>, vector<16x16x32xf32>,
    %c0_7 = arith.constant 0 : index
    %c7 = arith.constant 7 : index
    %c0_8 = arith.constant 0 : index
    %5 = vector.load %arg11[%c0_7, %c7, %c0_8] : memref<18x32x32xf32, #tpu.memory_space<vmem>>, vector<16x16x32xf32>
    %c0_9 = arith.constant 0 : index
    %c8_10 = arith.constant 8 : index
    %c0_11 = arith.constant 0 : index
    %6 = vector.load %arg11[%c0_9, %c8_10, %c0_11] : memref<18x32x32xf32, #tpu.memory_space<vmem>>, vector<16x16x32xf32>
    %c0_12 = arith.constant 0 : index
    %c9 = arith.constant 9 : index
    %c0_13 = arith.constant 0 : index
    %7 = vector.load %arg11[%c0_12, %c9, %c0_13] : memref<18x32x32xf32, #tpu.memory_space<vmem>>, vector<16x16x32xf32>
    %8 = tpu.concatenate %5, %6, %7 in 2 : vector<16x16x32xf32>, vector<16x16x32xf32>, vector<16x16x32xf32> -> vector<16x16x96xf32>
    %c1_14 = arith.constant 1 : index
    %c7_15 = arith.constant 7 : index
    %c0_16 = arith.constant 0 : index
    %9 = vector.load %arg11[%c1_14, %c7_15, %c0_16] : memref<18x32x32xf32, #tpu.memory_space<vmem>>, vector<16x16x32xf32>
    %c1_17 = arith.constant 1 : index
    %c8_18 = arith.constant 8 : index
    %c0_19 = arith.constant 0 : index
    %10 = vector.load %arg11[%c1_17, %c8_18, %c0_19] : memref<18x32x32xf32, #tpu.memory_space<vmem>>, vector<16x16x32xf32>
    %c1_20 = arith.constant 1 : index
    %c9_21 = arith.constant 9 : index
    %c0_22 = arith.constant 0 : index
    %11 = vector.load %arg11[%c1_20, %c9_21, %c0_22] : memref<18x32x32xf32, #tpu.memory_space<vmem>>, vector<16x16x32xf32>
    %12 = tpu.concatenate %9, %10, %11 in 2 : vector<16x16x32xf32>, vector<16x16x32xf32>, vector<16x16x32xf32> -> vector<16x16x96xf32>
    %c2 = arith.constant 2 : index
    %c7_23 = arith.constant 7 : index
    %c0_24 = arith.constant 0 : index
    %13 = vector.load %arg11[%c2, %c7_23, %c0_24] : memref<18x32x32xf32, #tpu.memory_space<vmem>>, vector<16x16x32xf32>
    %c2_25 = arith.constant 2 : index
    %c8_26 = arith.constant 8 : index
    %c0_27 = arith.constant 0 : index
    %14 = vector.load %arg11[%c2_25, %c8_26, %c0_27] : memref<18x32x32xf32, #tpu.memory_space<vmem>>, vector<16x16x32xf32>
    %c2_28 = arith.constant 2 : index
    %c9_29 = arith.constant 9 : index
    %c0_30 = arith.constant 0 : index
    %15 = vector.load %arg11[%c2_28, %c9_29, %c0_30] : memref<18x32x32xf32, #tpu.memory_space<vmem>>, vector<16x16x32xf32>
    %16 = tpu.concatenate %13, %14, %15 in 2 : vector<16x16x32xf32>, vector<16x16x32xf32>, vector<16x16x32xf32> -> vector<16x16x96xf32>
    %17 = tpu.concatenate %8, %12, %16 in 2 : vector<16x16x96xf32>, vector<16x16x96xf32>, vector<16x16x96xf32> -> vector<16x16x288xf32>
    %18 = vector.shape_cast %17 : vector<16x16x288xf32> to vector<256x288xf32>
    %c0_31 = arith.constant 0 : index
    %c0_32 = arith.constant 0 : index
    %19 = vector.load %arg2[%c0_31, %c0_32] : memref<288x32xf32, #tpu.memory_space<vmem>>, vector<288x32xf32>
    %cst_33 = arith.constant dense<0.000000e+00> : vector<256x32xf32>
    %20 = tpu.matmul %18, %19, %cst_33 {dimension_numbers = #tpu.dot_dimension_numbers<[1], [0], [0], [1], [0, 0, 1, 1], [], []>} : vector<256x288xf32>, vector<288x32xf32>, vector<256x32xf32> -> vector<256x32xf32>
    %c0_34 = arith.constant 0 : index
    %c0_35 = arith.constant 0 : index
    %21 = vector.load %arg3[%c0_34, %c0_35] : memref<1x32xf32, #tpu.memory_space<vmem>>, vector<1x32xf32>
    %22 = vector.broadcast %21 : vector<1x32xf32> to vector<256x32xf32>
    %23 = arith.addf %20, %22 : vector<256x32xf32>
    %cst_36 = arith.constant 0.000000e+00 : f32
    %24 = vector.broadcast %cst_36 : f32 to vector<256x32xf32>
    %25 = arith.maximumf %23, %24 : vector<256x32xf32>
    %cst_37 = arith.constant dense<0.000000e+00> : vector<32xf32>
    %26 = vector.multi_reduction <add>, %25, %cst_37 [0] : vector<256x32xf32> to vector<32xf32>
    %27 = vector.shape_cast %26 : vector<32xf32> to vector<1x32xf32>
    %cst_38 = arith.constant 2.560000e+02 : f32
    %28 = vector.broadcast %cst_38 : f32 to vector<1x32xf32>
    %29 = arith.divf %27, %28 : vector<1x32xf32>
    %c0_39 = arith.constant 0 : index
    %c0_40 = arith.constant 0 : index
    %30 = vector.load %arg4[%c0_39, %c0_40] : memref<32x8xf32, #tpu.memory_space<vmem>>, vector<32x8xf32>
    %cst_41 = arith.constant dense<0.000000e+00> : vector<1x8xf32>
    %31 = tpu.matmul %29, %30, %cst_41 {dimension_numbers = #tpu.dot_dimension_numbers<[1], [0], [0], [1], [0, 0, 1, 1], [], []>} : vector<1x32xf32>, vector<32x8xf32>, vector<1x8xf32> -> vector<1x8xf32>
    %cst_42 = arith.constant 0.000000e+00 : f32
    %32 = vector.broadcast %cst_42 : f32 to vector<1x8xf32>
    %33 = arith.maximumf %31, %32 : vector<1x8xf32>
    %c0_43 = arith.constant 0 : index
    %c0_44 = arith.constant 0 : index
    %34 = vector.load %arg5[%c0_43, %c0_44] : memref<8x32xf32, #tpu.memory_space<vmem>>, vector<8x32xf32>
    %cst_45 = arith.constant dense<0.000000e+00> : vector<1x32xf32>
    %35 = tpu.matmul %33, %34, %cst_45 {dimension_numbers = #tpu.dot_dimension_numbers<[1], [0], [0], [1], [0, 0, 1, 1], [], []>} : vector<1x8xf32>, vector<8x32xf32>, vector<1x32xf32> -> vector<1x32xf32>
    %cst_46 = arith.constant 0.000000e+00 : f32
    %36 = vector.broadcast %cst_46 : f32 to vector<1x32xf32>
    %37 = arith.subf %36, %35 : vector<1x32xf32>
    %38 = math.exp %37 : vector<1x32xf32>
    %cst_47 = arith.constant 1.000000e+00 : f32
    %39 = vector.broadcast %cst_47 : f32 to vector<1x32xf32>
    %40 = arith.addf %39, %38 : vector<1x32xf32>
    %41 = tpu.reciprocal %40 {approx = true} : vector<1x32xf32> -> vector<1x32xf32>
    %cst_48 = arith.constant 0.000000e+00 : f32
    %42 = vector.broadcast %cst_48 : f32 to vector<256x32xf32>
    %43 = arith.cmpf ogt, %25, %42 : vector<256x32xf32>
    %44 = arith.extui %43 : vector<256x32xi1> to vector<256x32xi32>
    %45 = arith.sitofp %44 : vector<256x32xi32> to vector<256x32xf32>
    %cst_49 = arith.constant dense<0.000000e+00> : vector<32xf32>
    %46 = vector.multi_reduction <add>, %45, %cst_49 [0] : vector<256x32xf32> to vector<32xf32>
    %47 = vector.shape_cast %46 : vector<32xf32> to vector<1x32xf32>
    %cst_50 = arith.constant 3.906250e-03 : f32
    %48 = vector.broadcast %cst_50 : f32 to vector<1x32xf32>
    %49 = arith.mulf %47, %48 : vector<1x32xf32>
    %cst_51 = arith.constant dense<0.000000e+00> : vector<1xf32>
    %50 = vector.multi_reduction <add>, %49, %cst_51 [1] : vector<1x32xf32> to vector<1xf32>
    %51 = vector.shape_cast %50 : vector<1xf32> to vector<1x1xf32>
    %cst_52 = arith.constant 3.200000e-03 : f32
    %52 = vector.broadcast %cst_52 : f32 to vector<1x1xf32>
    %53 = arith.addf %52, %51 : vector<1x1xf32>
    %cst_53 = arith.constant 9.99999974E-5 : f32
    %54 = vector.broadcast %cst_53 : f32 to vector<1x32xf32>
    %55 = arith.addf %49, %54 : vector<1x32xf32>
    %56 = vector.broadcast %53 : vector<1x1xf32> to vector<1x32xf32>
    %57 = arith.divf %56, %55 : vector<1x32xf32>
    %58 = math.log %57 : vector<1x32xf32>
    %c0_54 = arith.constant 0 : index
    %c0_55 = arith.constant 0 : index
    %59 = vector.load %arg6[%c0_54, %c0_55] : memref<32x8xf32, #tpu.memory_space<vmem>>, vector<32x8xf32>
    %cst_56 = arith.constant dense<0.000000e+00> : vector<1x8xf32>
    %60 = tpu.matmul %58, %59, %cst_56 {dimension_numbers = #tpu.dot_dimension_numbers<[1], [0], [0], [1], [0, 0, 1, 1], [], []>} : vector<1x32xf32>, vector<32x8xf32>, vector<1x8xf32> -> vector<1x8xf32>
    %cst_57 = arith.constant 0.000000e+00 : f32
    %61 = vector.broadcast %cst_57 : f32 to vector<1x8xf32>
    %62 = arith.maximumf %60, %61 : vector<1x8xf32>
    %c0_58 = arith.constant 0 : index
    %c0_59 = arith.constant 0 : index
    %63 = vector.load %arg7[%c0_58, %c0_59] : memref<8x32xf32, #tpu.memory_space<vmem>>, vector<8x32xf32>
    %cst_60 = arith.constant dense<0.000000e+00> : vector<1x32xf32>
    %64 = tpu.matmul %62, %63, %cst_60 {dimension_numbers = #tpu.dot_dimension_numbers<[1], [0], [0], [1], [0, 0, 1, 1], [], []>} : vector<1x8xf32>, vector<8x32xf32>, vector<1x32xf32> -> vector<1x32xf32>
    %cst_61 = arith.constant 0.000000e+00 : f32
    %65 = vector.broadcast %cst_61 : f32 to vector<1x32xf32>
    %66 = arith.subf %65, %64 : vector<1x32xf32>
    %67 = math.exp %66 : vector<1x32xf32>
    %cst_62 = arith.constant 1.000000e+00 : f32
    %68 = vector.broadcast %cst_62 : f32 to vector<1x32xf32>
    %69 = arith.addf %68, %67 : vector<1x32xf32>
    %70 = tpu.reciprocal %69 {approx = true} : vector<1x32xf32> -> vector<1x32xf32>
    %71 = arith.addf %41, %70 : vector<1x32xf32>
    %72 = vector.broadcast %71 : vector<1x32xf32> to vector<256x32xf32>
    %73 = arith.mulf %25, %72 : vector<256x32xf32>
    %74 = vector.shape_cast %73 : vector<256x32xf32> to vector<16x16x32xf32>
    %c1_63 = arith.constant 1 : index
    %c8_64 = arith.constant 8 : index
    %c0_65 = arith.constant 0 : index
    %75 = vector.load %arg11[%c1_63, %c8_64, %c0_65] : memref<18x32x32xf32, #tpu.memory_space<vmem>>, vector<16x16x32xf32>
    tpu.vector_store %arg11[%c1_63, %c8_64, %c0_65], %74 {strides = array<i32>} : memref<18x32x32xf32, #tpu.memory_space<vmem>>, vector<16x16x32xf32>,
    %c0_66 = arith.constant 0 : index
    %c7_67 = arith.constant 7 : index
    %c0_68 = arith.constant 0 : index
    %76 = vector.load %arg11[%c0_66, %c7_67, %c0_68] : memref<18x32x32xf32, #tpu.memory_space<vmem>>, vector<16x16x32xf32>
    %c0_69 = arith.constant 0 : index
    %c8_70 = arith.constant 8 : index
    %c0_71 = arith.constant 0 : index
    %77 = vector.load %arg11[%c0_69, %c8_70, %c0_71] : memref<18x32x32xf32, #tpu.memory_space<vmem>>, vector<16x16x32xf32>
    %c0_72 = arith.constant 0 : index
    %c9_73 = arith.constant 9 : index
    %c0_74 = arith.constant 0 : index
    %78 = vector.load %arg11[%c0_72, %c9_73, %c0_74] : memref<18x32x32xf32, #tpu.memory_space<vmem>>, vector<16x16x32xf32>
    %79 = tpu.concatenate %76, %77, %78 in 2 : vector<16x16x32xf32>, vector<16x16x32xf32>, vector<16x16x32xf32> -> vector<16x16x96xf32>
    %c1_75 = arith.constant 1 : index
    %c7_76 = arith.constant 7 : index
    %c0_77 = arith.constant 0 : index
    %80 = vector.load %arg11[%c1_75, %c7_76, %c0_77] : memref<18x32x32xf32, #tpu.memory_space<vmem>>, vector<16x16x32xf32>
    %c1_78 = arith.constant 1 : index
    %c8_79 = arith.constant 8 : index
    %c0_80 = arith.constant 0 : index
    %81 = vector.load %arg11[%c1_78, %c8_79, %c0_80] : memref<18x32x32xf32, #tpu.memory_space<vmem>>, vector<16x16x32xf32>
    %c1_81 = arith.constant 1 : index
    %c9_82 = arith.constant 9 : index
    %c0_83 = arith.constant 0 : index
    %82 = vector.load %arg11[%c1_81, %c9_82, %c0_83] : memref<18x32x32xf32, #tpu.memory_space<vmem>>, vector<16x16x32xf32>
    %83 = tpu.concatenate %80, %81, %82 in 2 : vector<16x16x32xf32>, vector<16x16x32xf32>, vector<16x16x32xf32> -> vector<16x16x96xf32>
    %c2_84 = arith.constant 2 : index
    %c7_85 = arith.constant 7 : index
    %c0_86 = arith.constant 0 : index
    %84 = vector.load %arg11[%c2_84, %c7_85, %c0_86] : memref<18x32x32xf32, #tpu.memory_space<vmem>>, vector<16x16x32xf32>
    %c2_87 = arith.constant 2 : index
    %c8_88 = arith.constant 8 : index
    %c0_89 = arith.constant 0 : index
    %85 = vector.load %arg11[%c2_87, %c8_88, %c0_89] : memref<18x32x32xf32, #tpu.memory_space<vmem>>, vector<16x16x32xf32>
    %c2_90 = arith.constant 2 : index
    %c9_91 = arith.constant 9 : index
    %c0_92 = arith.constant 0 : index
    %86 = vector.load %arg11[%c2_90, %c9_91, %c0_92] : memref<18x32x32xf32, #tpu.memory_space<vmem>>, vector<16x16x32xf32>
    %87 = tpu.concatenate %84, %85, %86 in 2 : vector<16x16x32xf32>, vector<16x16x32xf32>, vector<16x16x32xf32> -> vector<16x16x96xf32>
    %88 = tpu.concatenate %79, %83, %87 in 2 : vector<16x16x96xf32>, vector<16x16x96xf32>, vector<16x16x96xf32> -> vector<16x16x288xf32>
    %89 = vector.shape_cast %88 : vector<16x16x288xf32> to vector<256x288xf32>
    %c0_93 = arith.constant 0 : index
    %c0_94 = arith.constant 0 : index
    %90 = vector.load %arg8[%c0_93, %c0_94] : memref<288x32xf32, #tpu.memory_space<vmem>>, vector<288x32xf32>
    %cst_95 = arith.constant dense<0.000000e+00> : vector<256x32xf32>
    %91 = tpu.matmul %89, %90, %cst_95 {dimension_numbers = #tpu.dot_dimension_numbers<[1], [0], [0], [1], [0, 0, 1, 1], [], []>} : vector<256x288xf32>, vector<288x32xf32>, vector<256x32xf32> -> vector<256x32xf32>
    %c0_96 = arith.constant 0 : index
    %c0_97 = arith.constant 0 : index
    %92 = vector.load %arg9[%c0_96, %c0_97] : memref<1x32xf32, #tpu.memory_space<vmem>>, vector<1x32xf32>
    %93 = vector.broadcast %92 : vector<1x32xf32> to vector<256x32xf32>
    %94 = arith.addf %91, %93 : vector<256x32xf32>
    %cst_98 = arith.constant 0.000000e+00 : f32
    %95 = vector.broadcast %cst_98 : f32 to vector<256x32xf32>
    %96 = arith.maximumf %94, %95 : vector<256x32xf32>
    %97 = vector.shape_cast %96 : vector<256x32xf32> to vector<16x16x32xf32>
    %c0_99 = arith.constant 0 : index
    %c0_100 = arith.constant 0 : index
    %c0_101 = arith.constant 0 : index
    %c0_102 = arith.constant 0 : index
    %98 = vector.load %arg10[%c0_99, %c0_100, %c0_101, %c0_102] : memref<1x16x16x32xf32, #tpu.memory_space<vmem>>, vector<1x16x16x32xf32>
    %99 = vector.shape_cast %98 : vector<1x16x16x32xf32> to vector<16x16x32xf32>
    %100 = vector.shape_cast %97 : vector<16x16x32xf32> to vector<1x16x16x32xf32>
    tpu.vector_store %arg10[%c0_99, %c0_100, %c0_101, %c0_102], %100 {strides = array<i32>} : memref<1x16x16x32xf32, #tpu.memory_space<vmem>>, vector<1x16x16x32xf32>,
    return
  }
  func.func @transform_0(%arg0: i32) -> (i32, i32, i32, i32) {
    %c0_i32 = arith.constant 0 : i32
    %c0_i32_0 = arith.constant 0 : i32
    %c0_i32_1 = arith.constant 0 : i32
    %c0_i32_2 = arith.constant 0 : i32
    return %arg0, %c0_i32, %c0_i32_0, %c0_i32_1 : i32, i32, i32, i32
  }
  func.func @transform_1(%arg0: i32) -> (i32, i32) {
    %c0_i32 = arith.constant 0 : i32
    %c0_i32_0 = arith.constant 0 : i32
    %c0_i32_1 = arith.constant 0 : i32
    return %c0_i32, %c0_i32_0 : i32, i32
  }
  func.func @transform_2(%arg0: i32) -> (i32, i32) {
    %c0_i32 = arith.constant 0 : i32
    %c0_i32_0 = arith.constant 0 : i32
    %c0_i32_1 = arith.constant 0 : i32
    return %c0_i32, %c0_i32_0 : i32, i32
  }
  func.func @transform_3(%arg0: i32) -> (i32, i32) {
    %c0_i32 = arith.constant 0 : i32
    %c0_i32_0 = arith.constant 0 : i32
    %c0_i32_1 = arith.constant 0 : i32
    return %c0_i32, %c0_i32_0 : i32, i32
  }
  func.func @transform_4(%arg0: i32) -> (i32, i32) {
    %c0_i32 = arith.constant 0 : i32
    %c0_i32_0 = arith.constant 0 : i32
    %c0_i32_1 = arith.constant 0 : i32
    return %c0_i32, %c0_i32_0 : i32, i32
  }
  func.func @transform_5(%arg0: i32) -> (i32, i32) {
    %c0_i32 = arith.constant 0 : i32
    %c0_i32_0 = arith.constant 0 : i32
    %c0_i32_1 = arith.constant 0 : i32
    return %c0_i32, %c0_i32_0 : i32, i32
  }
  func.func @transform_6(%arg0: i32) -> (i32, i32) {
    %c0_i32 = arith.constant 0 : i32
    %c0_i32_0 = arith.constant 0 : i32
    %c0_i32_1 = arith.constant 0 : i32
    return %c0_i32, %c0_i32_0 : i32, i32
  }
  func.func @transform_7(%arg0: i32) -> (i32, i32) {
    %c0_i32 = arith.constant 0 : i32
    %c0_i32_0 = arith.constant 0 : i32
    %c0_i32_1 = arith.constant 0 : i32
    return %c0_i32, %c0_i32_0 : i32, i32
  }
  func.func @transform_8(%arg0: i32) -> (i32, i32) {
    %c0_i32 = arith.constant 0 : i32
    %c0_i32_0 = arith.constant 0 : i32
    %c0_i32_1 = arith.constant 0 : i32
    return %c0_i32, %c0_i32_0 : i32, i32
  }
  func.func @transform_9(%arg0: i32) -> (i32, i32, i32, i32) {
    %c0_i32 = arith.constant 0 : i32
    %c0_i32_0 = arith.constant 0 : i32
    %c0_i32_1 = arith.constant 0 : i32
    %c0_i32_2 = arith.constant 0 : i32
    return %arg0, %c0_i32, %c0_i32_0, %c0_i32_1 : i32, i32, i32, i32
  }
}

</mosaic_0001>

<llo_original>
// kernel: attention_forward.1
$region0: #{attention_forward.1}
  #allocation0 [shape = 'u32[]', space=smem, size = 0x4, offset = 0x4, fixed_abs, tag = 'smem constant byte address 0x4 - core index']
  #allocation1 [shape = 'u32[144,128]{1,0:T(1,128)}', space=vmem, size = 0x12000, scoped, tag = 'internal scratch']
  #allocation2 [shape = 'f32[18,32,32]{2,1,0:T(8,128)}', space=vmem, size = 0x48000, scoped, tag = 'scratch operand']
  %s0 = inlined_call_operand.vmem [shape: f32[2,16,16,32], index: 0, kind: input, shape index: {}]
  %s1 = inlined_call_operand.vmem [shape: f32[288,32], index: 1, kind: input, shape index: {}]
  %s2 = inlined_call_operand.vmem [shape: f32[1,32], index: 2, kind: input, shape index: {}]
  %s3 = inlined_call_operand.vmem [shape: f32[32,8], index: 3, kind: input, shape index: {}]
  %s4 = inlined_call_operand.vmem [shape: f32[8,32], index: 4, kind: input, shape index: {}]
  %s5 = inlined_call_operand.vmem [shape: f32[32,8], index: 5, kind: input, shape index: {}]
  %s6 = inlined_call_operand.vmem [shape: f32[8,32], index: 6, kind: input, shape index: {}]
  %s7 = inlined_call_operand.vmem [shape: f32[288,32], index: 7, kind: input, shape index: {}]
  %s8 = inlined_call_operand.vmem [shape: f32[1,32], index: 8, kind: input, shape index: {}]
  %s9 = inlined_call_operand.hbm [shape: f32[2,16,16,32], index: 9, kind: output, shape index: {}]
  %s10 = sld [smem:[#allocation0]]
  $region69: #{attention_forward.1} parent=0
    _
  %s12 = ssub.s32 1, %s10
  %s13 = scalar_select 0, %s12, %s10
  $region1: #{attention_forward.1} parent=0
    #allocation3 [shape = 'u8[262144]{0}', space=vmem, size = 0x40000, scoped, tag = 'output window, operand 0']
    #allocation4 [shape = 's32[2]{0}', space=sflag, size = 0x8, scoped, tag = 'scoped memory for attention_forward.1']
    %14 = vsyncpa [#allocation4], 0
    %s15 = scalar_lea.sflag [#allocation4], 1
    %16 = vsyncpa %s15, 0
    loop: start=0, step=1, limit=4
    $region2: #{attention_forward.1} parent=1 // loop_pre_header
      _
    $region3: #{attention_forward.1} parent=1 // loop_header
      %s18 = sphi 0, %s22
      %p19 = scmp.ge.s32.totalorder %s18, 4
      %s28 = sphi 0, %s30
      %s31 = sphi 0, %s28
      %s32 = sphi 0, %s31
      %s48 = sphi 0, %s32
      %s52 = sphi 0, %s52
      %s54 = sphi 0, %s52
      %s55 = sphi 0, %s54
      %s69 = sphi 0, %s55
      %s73 = sphi 0, %s73
      %s75 = sphi 0, %s73
      %s76 = sphi 0, %s75
      %s90 = sphi 0, %s76
      %s94 = sphi 0, %s94
      %s96 = sphi 0, %s94
      %s97 = sphi 0, %s96
      %s111 = sphi 0, %s97
      %s115 = sphi 0, %s115
      %s117 = sphi 0, %s115
      %s118 = sphi 0, %s117
      %s132 = sphi 0, %s118
      %s136 = sphi 0, %s136
      %s138 = sphi 0, %s136
      %s139 = sphi 0, %s138
      %s153 = sphi 0, %s139
      %s157 = sphi 0, %s157
      %s159 = sphi 0, %s157
      %s160 = sphi 0, %s159
      %s174 = sphi 0, %s160
      %s178 = sphi 0, %s178
      %s180 = sphi 0, %s178
      %s181 = sphi 0, %s180
      %s195 = sphi 0, %s181
      %s199 = sphi 0, %s199
      %s201 = sphi 0, %s199
      %s202 = sphi 0, %s201
      %s216 = sphi 0, %s202
      %s222 = sphi 0, %s224
      %s225 = sphi 0, %s222
      %s226 = sphi 0, %s225
      %s242 = sphi 0, %s226
    $region4: #{attention_forward.1} parent=1 // loop_header_branch
      %21 = sbr.rel (%p19) target = $region8
    $region5: #{attention_forward.1} parent=1 // loop_body
      %s23 = ssub.s32 %s18, 1
      %s24 = ssub.s32 %s18, 2
      %s25 = sadd.s32 %s18, 1
      %s26 = ssub.s32 %s18, %s25
      %p27 = scmp.eq.s32.totalorder %s26, 0
      %s29 = sadd.s32 %s28, 1
      %s30 = scalar_select %p27, %s28, %s29
      %p33 = pneg %p27
      %p34 = scmp.eq.s32.totalorder %s18, 1
      %p35 = por %p33, %p34
      %p36 = scmp.ne.s32.totalorder %s28, %s31
      %p37 = scmp.eq.s32.totalorder %s18, 0
      %p38 = por %p36, %p37
      %p39 = scmp.ne.s32.totalorder %s28, %s31
      %p40 = scmp.eq.s32.totalorder %s23, 1
      %p41 = por %p39, %p40
      %p42 = scmp.ne.s32.totalorder %s31, %s32
      %p43 = scmp.eq.s32.totalorder %s23, 0
      %p44 = por %p42, %p43
      %p45 = scmp.ne.s32.totalorder %s31, %s32
      %p46 = scmp.eq.s32.totalorder %s24, 1
      %p47 = por %p45, %p46
      %p49 = scmp.ne.s32.totalorder %s32, %s48
      %p50 = scmp.eq.s32.totalorder %s24, 0
      %p51 = por %p49, %p50
      %s53 = sadd.s32 %s52, 1
      %p56 = scmp.eq.s32.totalorder %s18, 1
      %p57 = scmp.ne.s32.totalorder %s52, %s54
      %p58 = scmp.eq.s32.totalorder %s18, 0
      %p59 = por %p57, %p58
      %p60 = scmp.ne.s32.totalorder %s52, %s54
      %p61 = scmp.eq.s32.totalorder %s23, 1
      %p62 = por %p60, %p61
      %p63 = scmp.ne.s32.totalorder %s54, %s55
      %p64 = scmp.eq.s32.totalorder %s23, 0
      %p65 = por %p63, %p64
      %p66 = scmp.ne.s32.totalorder %s54, %s55
      %p67 = scmp.eq.s32.totalorder %s24, 1
      %p68 = por %p66, %p67
      %p70 = scmp.ne.s32.totalorder %s55, %s69
      %p71 = scmp.eq.s32.totalorder %s24, 0
      %p72 = por %p70, %p71
      %s74 = sadd.s32 %s73, 1
      %p77 = scmp.eq.s32.totalorder %s18, 1
      %p78 = scmp.ne.s32.totalorder %s73, %s75
      %p79 = scmp.eq.s32.totalorder %s18, 0
      %p80 = por %p78, %p79
      %p81 = scmp.ne.s32.totalorder %s73, %s75
      %p82 = scmp.eq.s32.totalorder %s23, 1
      %p83 = por %p81, %p82
      %p84 = scmp.ne.s32.totalorder %s75, %s76
      %p85 = scmp.eq.s32.totalorder %s23, 0
      %p86 = por %p84, %p85
      %p87 = scmp.ne.s32.totalorder %s75, %s76
      %p88 = scmp.eq.s32.totalorder %s24, 1
      %p89 = por %p87, %p88
      %p91 = scmp.ne.s32.totalorder %s76, %s90
      %p92 = scmp.eq.s32.totalorder %s24, 0
      %p93 = por %p91, %p92
      %s95 = sadd.s32 %s94, 1
      %p98 = scmp.eq.s32.totalorder %s18, 1
      %p99 = scmp.ne.s32.totalorder %s94, %s96
      %p100 = scmp.eq.s32.totalorder %s18, 0
      %p101 = por %p99, %p100
      %p102 = scmp.ne.s32.totalorder %s94, %s96
      %p103 = scmp.eq.s32.totalorder %s23, 1
      %p104 = por %p102, %p103
      %p105 = scmp.ne.s32.totalorder %s96, %s97
      %p106 = scmp.eq.s32.totalorder %s23, 0
      %p107 = por %p105, %p106
      %p108 = scmp.ne.s32.totalorder %s96, %s97
      %p109 = scmp.eq.s32.totalorder %s24, 1
      %p110 = por %p108, %p109
      %p112 = scmp.ne.s32.totalorder %s97, %s111
      %p113 = scmp.eq.s32.totalorder %s24, 0
      %p114 = por %p112, %p113
      %s116 = sadd.s32 %s115, 1
      %p119 = scmp.eq.s32.totalorder %s18, 1
      %p120 = scmp.ne.s32.totalorder %s115, %s117
      %p121 = scmp.eq.s32.totalorder %s18, 0
      %p122 = por %p120, %p121
      %p123 = scmp.ne.s32.totalorder %s115, %s117
      %p124 = scmp.eq.s32.totalorder %s23, 1
      %p125 = por %p123, %p124
      %p126 = scmp.ne.s32.totalorder %s117, %s118
      %p127 = scmp.eq.s32.totalorder %s23, 0
      %p128 = por %p126, %p127
      %p129 = scmp.ne.s32.totalorder %s117, %s118
      %p130 = scmp.eq.s32.totalorder %s24, 1
      %p131 = por %p129, %p130
      %p133 = scmp.ne.s32.totalorder %s118, %s132
      %p134 = scmp.eq.s32.totalorder %s24, 0
      %p135 = por %p133, %p134
      %s137 = sadd.s32 %s136, 1
      %p140 = scmp.eq.s32.totalorder %s18, 1
      %p141 = scmp.ne.s32.totalorder %s136, %s138
      %p142 = scmp.eq.s32.totalorder %s18, 0
      %p143 = por %p141, %p142
      %p144 = scmp.ne.s32.totalorder %s136, %s138
      %p145 = scmp.eq.s32.totalorder %s23, 1
      %p146 = por %p144, %p145
      %p147 = scmp.ne.s32.totalorder %s138, %s139
      %p148 = scmp.eq.s32.totalorder %s23, 0
      %p149 = por %p147, %p148
      %p150 = scmp.ne.s32.totalorder %s138, %s139
      %p151 = scmp.eq.s32.totalorder %s24, 1
      %p152 = por %p150, %p151
      %p154 = scmp.ne.s32.totalorder %s139, %s153
      %p155 = scmp.eq.s32.totalorder %s24, 0
      %p156 = por %p154, %p155
      %s158 = sadd.s32 %s157, 1
      %p161 = scmp.eq.s32.totalorder %s18, 1
      %p162 = scmp.ne.s32.totalorder %s157, %s159
      %p163 = scmp.eq.s32.totalorder %s18, 0
      %p164 = por %p162, %p163
      %p165 = scmp.ne.s32.totalorder %s157, %s159
      %p166 = scmp.eq.s32.totalorder %s23, 1
      %p167 = por %p165, %p166
      %p168 = scmp.ne.s32.totalorder %s159, %s160
      %p169 = scmp.eq.s32.totalorder %s23, 0
      %p170 = por %p168, %p169
      %p171 = scmp.ne.s32.totalorder %s159, %s160
      %p172 = scmp.eq.s32.totalorder %s24, 1
      %p173 = por %p171, %p172
      %p175 = scmp.ne.s32.totalorder %s160, %s174
      %p176 = scmp.eq.s32.totalorder %s24, 0
      %p177 = por %p175, %p176
      %s179 = sadd.s32 %s178, 1
      %p182 = scmp.eq.s32.totalorder %s18, 1
      %p183 = scmp.ne.s32.totalorder %s178, %s180
      %p184 = scmp.eq.s32.totalorder %s18, 0
      %p185 = por %p183, %p184
      %p186 = scmp.ne.s32.totalorder %s178, %s180
      %p187 = scmp.eq.s32.totalorder %s23, 1
      %p188 = por %p186, %p187
      %p189 = scmp.ne.s32.totalorder %s180, %s181
      %p190 = scmp.eq.s32.totalorder %s23, 0
      %p191 = por %p189, %p190
      %p192 = scmp.ne.s32.totalorder %s180, %s181
      %p193 = scmp.eq.s32.totalorder %s24, 1
      %p194 = por %p192, %p193
      %p196 = scmp.ne.s32.totalorder %s181, %s195
      %p197 = scmp.eq.s32.totalorder %s24, 0
      %p198 = por %p196, %p197
      %s200 = sadd.s32 %s199, 1
      %p203 = scmp.eq.s32.totalorder %s18, 1
      %p204 = scmp.ne.s32.totalorder %s199, %s201
      %p205 = scmp.eq.s32.totalorder %s18, 0
      %p206 = por %p204, %p205
      %p207 = scmp.ne.s32.totalorder %s199, %s201
      %p208 = scmp.eq.s32.totalorder %s23, 1
      %p209 = por %p207, %p208
      %p210 = scmp.ne.s32.totalorder %s201, %s202
      %p211 = scmp.eq.s32.totalorder %s23, 0
      %p212 = por %p210, %p211
      %p213 = scmp.ne.s32.totalorder %s201, %s202
      %p214 = scmp.eq.s32.totalorder %s24, 1
      %p215 = por %p213, %p214
      %p217 = scmp.ne.s32.totalorder %s202, %s216
      %p218 = scmp.eq.s32.totalorder %s24, 0
      %p219 = por %p217, %p218
      %s220 = ssub.s32 %s18, %s25
      %p221 = scmp.eq.s32.totalorder %s220, 0
      %s223 = sadd.s32 %s222, 1
      %s224 = scalar_select %p221, %s222, %s223
      %p227 = pneg %p221
      %p228 = scmp.eq.s32.totalorder %s18, 1
      %p229 = por %p227, %p228
      %p230 = scmp.ne.s32.totalorder %s222, %s225
      %p231 = scmp.eq.s32.totalorder %s18, 0
      %p232 = por %p230, %p231
      %p233 = scmp.ne.s32.totalorder %s222, %s225
      %p234 = scmp.eq.s32.totalorder %s23, 1
      %p235 = por %p233, %p234
      %p236 = scmp.ne.s32.totalorder %s225, %s226
      %p237 = scmp.eq.s32.totalorder %s23, 0
      %p238 = por %p236, %p237
      %p239 = scmp.ne.s32.totalorder %s225, %s226
      %p240 = scmp.eq.s32.totalorder %s24, 1
      %p241 = por %p239, %p240
      %p243 = scmp.ne.s32.totalorder %s226, %s242
      %p244 = scmp.eq.s32.totalorder %s24, 0
      %p245 = por %p243, %p244
      %p246 = scmp.le.s32.totalorder 1, %s18
      %p247 = scmp.lt.s32.totalorder %s18, 3
      %p248 = pnand %p246, %p247
      %p249 = pneg %p248
      // Predicated region
      $region9: #{attention_forward.1} parent=5 // pred_check
        _
      $region10: #{attention_forward.1} parent=5 // pred_check_branch
        %251 = sbr.rel (%p248) target = $region12
      $region11: #{attention_forward.1} parent=5 // pred_region
        %s252 = ssub.s32 %s18, 1
        // Predicated region
        $region13: #{attention_forward.1} parent=11 // pred_check
          %p253 = pneg %p65
        $region14: #{attention_forward.1} parent=11 // pred_check_branch
          %255 = sbr.rel (%p253) target = $region16
        $region15: #{attention_forward.1} parent=11 // pred_region
          _
        $region16: #{attention_forward.1} parent=11 // pred_fallthru
          _
        // Predicated region
        $region17: #{attention_forward.1} parent=11 // pred_check
          %p256 = pneg %p86
        $region18: #{attention_forward.1} parent=11 // pred_check_branch
          %258 = sbr.rel (%p256) target = $region20
        $region19: #{attention_forward.1} parent=11 // pred_region
          _
        $region20: #{attention_forward.1} parent=11 // pred_fallthru
          _
        // Predicated region
        $region21: #{attention_forward.1} parent=11 // pred_check
          %p259 = pneg %p107
        $region22: #{attention_forward.1} parent=11 // pred_check_branch
          %261 = sbr.rel (%p259) target = $region24
        $region23: #{attention_forward.1} parent=11 // pred_region
          _
        $region24: #{attention_forward.1} parent=11 // pred_fallthru
          _
        // Predicated region
        $region25: #{attention_forward.1} parent=11 // pred_check
          %p262 = pneg %p128
        $region26: #{attention_forward.1} parent=11 // pred_check_branch
          %264 = sbr.rel (%p262) target = $region28
        $region27: #{attention_forward.1} parent=11 // pred_region
          _
        $region28: #{attention_forward.1} parent=11 // pred_fallthru
          _
        // Predicated region
        $region29: #{attention_forward.1} parent=11 // pred_check
          %p265 = pneg %p149
        $region30: #{attention_forward.1} parent=11 // pred_check_branch
          %267 = sbr.rel (%p265) target = $region32
        $region31: #{attention_forward.1} parent=11 // pred_region
          _
        $region32: #{attention_forward.1} parent=11 // pred_fallthru
          _
        // Predicated region
        $region33: #{attention_forward.1} parent=11 // pred_check
          %p268 = pneg %p170
        $region34: #{attention_forward.1} parent=11 // pred_check_branch
          %270 = sbr.rel (%p268) target = $region36
        $region35: #{attention_forward.1} parent=11 // pred_region
          _
        $region36: #{attention_forward.1} parent=11 // pred_fallthru
          _
        // Predicated region
        $region37: #{attention_forward.1} parent=11 // pred_check
          %p271 = pneg %p191
        $region38: #{attention_forward.1} parent=11 // pred_check_branch
          %273 = sbr.rel (%p271) target = $region40
        $region39: #{attention_forward.1} parent=11 // pred_region
          _
        $region40: #{attention_forward.1} parent=11 // pred_fallthru
          _
        // Predicated region
        $region41: #{attention_forward.1} parent=11 // pred_check
          %p274 = pneg %p212
        $region42: #{attention_forward.1} parent=11 // pred_check_branch
          %276 = sbr.rel (%p274) target = $region44
        $region43: #{attention_forward.1} parent=11 // pred_region
          _
        $region44: #{attention_forward.1} parent=11 // pred_fallthru
          _
      $region12: #{attention_forward.1} parent=5 // pred_fallthru
        _
      %p277 = scmp.lt.s32.totalorder %s18, 2
      // Predicated region
      $region45: #{attention_forward.1} parent=5 // pred_check
        %p278 = pneg %p277
      $region46: #{attention_forward.1} parent=5 // pred_check_branch
        %280 = sbr.rel (%p278) target = $region48
      $region47: #{attention_forward.1} parent=5 // pred_region
        // Predicated region
        $region49: #{attention_forward.1} parent=47 // pred_check
          %p281 = pneg %p38
        $region50: #{attention_forward.1} parent=47 // pred_check_branch
          %283 = sbr.rel (%p281) target = $region52
        $region51: #{attention_forward.1} parent=47 // pred_region
          %p284 = scmp.lt.s32.totalorder %s18, 1
          %s285 = scalar_select %p284, %s18, 1
          %s286 = smul.addr %s285, 32
          %s287 = smul.addr %s286, 8
          %s288 = scalar_lea.vmem %s0, %s287
        $region52: #{attention_forward.1} parent=47 // pred_fallthru
          _
      $region48: #{attention_forward.1} parent=5 // pred_fallthru
        _
      %p289 = scmp.le.s32.totalorder 1, %s18
      %p290 = scmp.lt.s32.totalorder %s18, 3
      %p291 = pnand %p289, %p290
      %p292 = pneg %p291
      // Predicated region
      $region53: #{attention_forward.1} parent=5 // pred_check
        _
      $region54: #{attention_forward.1} parent=5 // pred_check_branch
        %294 = sbr.rel (%p291) target = $region56
      $region55: #{attention_forward.1} parent=5 // pred_region
        %s295 = ssub.s32 %s18, 1
        %p296 = scmp.lt.s32.totalorder %s23, 1
        %s297 = scalar_select %p296, %s23, 1
        %s298 = smul.addr %s297, 32
        %s299 = smul.addr %s298, 8
        %s300 = scalar_lea.vmem %s0, %s299
        %p301 = pneg %p44
        %p302 = pneg %p41
        %p303 = pneg %p65
        %p304 = pneg %p62
        %p305 = pneg %p86
        %p306 = pneg %p83
        %p307 = pneg %p107
        %p308 = pneg %p104
        %p309 = pneg %p128
        %p310 = pneg %p125
        %p311 = pneg %p149
        %p312 = pneg %p146
        %p313 = pneg %p170
        %p314 = pneg %p167
        %p315 = pneg %p191
        %p316 = pneg %p188
        %p317 = pneg %p212
        %p318 = pneg %p209
        %p319 = pneg %p238
        %p320 = pneg %p235
        %s321 = sand.u32 %s225, 1
        %s322 = scalar_lea.sflag [#allocation4], %s321
        %s323 = sand.u32 %s225, 1
        %s324 = smul.addr %s323, 256
        %s325 = scalar_lea.vmem [#allocation3], %s324
        %p326 = scmp.lt.s32.totalorder %s23, 1
        %s327 = scalar_select %p326, %s23, 1
        %s328 = smul.addr %s327, 32
        %s329 = smul.addr %s328, 8
        %s330 = scalar_lea.vmem %s0, %s329
        %vm331 = vcmask 261120
        %332 = vst.msk [vmem:[#allocation2] sm:$0xff] %vm331, 0.0
        %333 = vst.msk [vmem:[#allocation2 + $0x8] sm:$0xff] %vm331, 0.0
        %334 = vst.msk [vmem:[#allocation2 + $0x10] sm:$0xff] %vm331, 0.0
        %335 = vst.msk [vmem:[#allocation2 + $0x18] sm:$0xff] %vm331, 0.0
        %336 = vst.msk [vmem:[#allocation2 + $0x20] sm:$0xff] %vm331, 0.0
        %337 = vst.msk [vmem:[#allocation2 + $0x28] sm:$0xff] %vm331, 0.0
        %338 = vst.msk [vmem:[#allocation2 + $0x30] sm:$0xff] %vm331, 0.0
        %339 = vst.msk [vmem:[#allocation2 + $0x38] sm:$0xff] %vm331, 0.0
        %340 = vst.msk [vmem:[#allocation2 + $0x40] sm:$0xff] %vm331, 0.0
        %341 = vst.msk [vmem:[#allocation2 + $0x48] sm:$0xff] %vm331, 0.0
        %342 = vst.msk [vmem:[#allocation2 + $0x50] sm:$0xff] %vm331, 0.0
        %343 = vst.msk [vmem:[#allocation2 + $0x58] sm:$0xff] %vm331, 0.0
        %344 = vst.msk [vmem:[#allocation2 + $0x60] sm:$0xff] %vm331, 0.0
        %345 = vst.msk [vmem:[#allocation2 + $0x68] sm:$0xff] %vm331, 0.0
        %346 = vst.msk [vmem:[#allocation2 + $0x70] sm:$0xff] %vm331, 0.0
        %347 = vst.msk [vmem:[#allocation2 + $0x78] sm:$0xff] %vm331, 0.0
        %348 = vst.msk [vmem:[#allocation2 + $0x80] sm:$0xff] %vm331, 0.0
        %349 = vst.msk [vmem:[#allocation2 + $0x88] sm:$0xff] %vm331, 0.0
        %350 = vst.msk [vmem:[#allocation2 + $0x90] sm:$0xff] %vm331, 0.0
        %351 = vst.msk [vmem:[#allocation2 + $0x98] sm:$0xff] %vm331, 0.0
        %352 = vst.msk [vmem:[#allocation2 + $0xa0] sm:$0xff] %vm331, 0.0
        %353 = vst.msk [vmem:[#allocation2 + $0xa8] sm:$0xff] %vm331, 0.0
        %354 = vst.msk [vmem:[#allocation2 + $0xb0] sm:$0xff] %vm331, 0.0
        %355 = vst.msk [vmem:[#allocation2 + $0xb8] sm:$0xff] %vm331, 0.0
        %356 = vst.msk [vmem:[#allocation2 + $0xc0] sm:$0xff] %vm331, 0.0
        %357 = vst.msk [vmem:[#allocation2 + $0xc8] sm:$0xff] %vm331, 0.0
        %358 = vst.msk [vmem:[#allocation2 + $0xd0] sm:$0xff] %vm331, 0.0
        %359 = vst.msk [vmem:[#allocation2 + $0xd8] sm:$0xff] %vm331, 0.0
        %360 = vst.msk [vmem:[#allocation2 + $0xe0] sm:$0xff] %vm331, 0.0
        %361 = vst.msk [vmem:[#allocation2 + $0xe8] sm:$0xff] %vm331, 0.0
        %362 = vst.msk [vmem:[#allocation2 + $0xf0] sm:$0xff] %vm331, 0.0
        %363 = vst.msk [vmem:[#allocation2 + $0xf8] sm:$0xff] %vm331, 0.0
        %364 = vst.msk [vmem:[#allocation2 + $0x100] sm:$0xff] %vm331, 0.0
        %365 = vst.msk [vmem:[#allocation2 + $0x108] sm:$0xff] %vm331, 0.0
        %366 = vst.msk [vmem:[#allocation2 + $0x110] sm:$0xff] %vm331, 0.0
        %367 = vst.msk [vmem:[#allocation2 + $0x118] sm:$0xff] %vm331, 0.0
        %368 = vst.msk [vmem:[#allocation2 + $0x120] sm:$0xff] %vm331, 0.0
        %369 = vst.msk [vmem:[#allocation2 + $0x128] sm:$0xff] %vm331, 0.0
        %370 = vst.msk [vmem:[#allocation2 + $0x130] sm:$0xff] %vm331, 0.0
        %371 = vst.msk [vmem:[#allocation2 + $0x138] sm:$0xff] %vm331, 0.0
        %372 = vst.msk [vmem:[#allocation2 + $0x140] sm:$0xff] %vm331, 0.0
        %373 = vst.msk [vmem:[#allocation2 + $0x148] sm:$0xff] %vm331, 0.0
        %374 = vst.msk [vmem:[#allocation2 + $0x150] sm:$0xff] %vm331, 0.0
        %375 = vst.msk [vmem:[#allocation2 + $0x158] sm:$0xff] %vm331, 0.0
        %376 = vst.msk [vmem:[#allocation2 + $0x160] sm:$0xff] %vm331, 0.0
        %377 = vst.msk [vmem:[#allocation2 + $0x168] sm:$0xff] %vm331, 0.0
        %378 = vst.msk [vmem:[#allocation2 + $0x170] sm:$0xff] %vm331, 0.0
        %379 = vst.msk [vmem:[#allocation2 + $0x178] sm:$0xff] %vm331, 0.0
        %380 = vst.msk [vmem:[#allocation2 + $0x180] sm:$0xff] %vm331, 0.0
        %381 = vst.msk [vmem:[#allocation2 + $0x188] sm:$0xff] %vm331, 0.0
        %382 = vst.msk [vmem:[#allocation2 + $0x190] sm:$0xff] %vm331, 0.0
        %383 = vst.msk [vmem:[#allocation2 + $0x198] sm:$0xff] %vm331, 0.0
        %384 = vst.msk [vmem:[#allocation2 + $0x1a0] sm:$0xff] %vm331, 0.0
        %385 = vst.msk [vmem:[#allocation2 + $0x1a8] sm:$0xff] %vm331, 0.0
        %386 = vst.msk [vmem:[#allocation2 + $0x1b0] sm:$0xff] %vm331, 0.0
        %387 = vst.msk [vmem:[#allocation2 + $0x1b8] sm:$0xff] %vm331, 0.0
        %388 = vst.msk [vmem:[#allocation2 + $0x1c0] sm:$0xff] %vm331, 0.0
        %389 = vst.msk [vmem:[#allocation2 + $0x1c8] sm:$0xff] %vm331, 0.0
        %390 = vst.msk [vmem:[#allocation2 + $0x1d0] sm:$0xff] %vm331, 0.0
        %391 = vst.msk [vmem:[#allocation2 + $0x1d8] sm:$0xff] %vm331, 0.0
        %392 = vst.msk [vmem:[#allocation2 + $0x1e0] sm:$0xff] %vm331, 0.0
        %393 = vst.msk [vmem:[#allocation2 + $0x1e8] sm:$0xff] %vm331, 0.0
        %394 = vst.msk [vmem:[#allocation2 + $0x1f0] sm:$0xff] %vm331, 0.0
        %395 = vst.msk [vmem:[#allocation2 + $0x1f8] sm:$0xff] %vm331, 0.0
        %396 = vst.msk [vmem:[#allocation2 + $0x200] sm:$0xff] %vm331, 0.0
        %397 = vst.msk [vmem:[#allocation2 + $0x208] sm:$0xff] %vm331, 0.0
        %398 = vst.msk [vmem:[#allocation2 + $0x210] sm:$0xff] %vm331, 0.0
        %399 = vst.msk [vmem:[#allocation2 + $0x218] sm:$0xff] %vm331, 0.0
        %400 = vst.msk [vmem:[#allocation2 + $0x220] sm:$0xff] %vm331, 0.0
        %401 = vst.msk [vmem:[#allocation2 + $0x228] sm:$0xff] %vm331, 0.0
        %402 = vst.msk [vmem:[#allocation2 + $0x230] sm:$0xff] %vm331, 0.0
        %403 = vst.msk [vmem:[#allocation2 + $0x238] sm:$0xff] %vm331, 0.0
        %v404 = vld [vmem:[%s330] sm:$0xff]
        %v405 = vld [vmem:[%s330 + $0x8] sm:$0xff]
        %v406 = vld [vmem:[%s330 + $0x10] sm:$0xff]
        %v407 = vld [vmem:[%s330 + $0x18] sm:$0xff]
        %v408 = vld [vmem:[%s330 + $0x20] sm:$0xff]
        %v409 = vld [vmem:[%s330 + $0x28] sm:$0xff]
        %v410 = vld [vmem:[%s330 + $0x30] sm:$0xff]
        %v411 = vld [vmem:[%s330 + $0x38] sm:$0xff]
        %v412 = vld [vmem:[%s330 + $0x40] sm:$0xff]
        %v413 = vld [vmem:[%s330 + $0x48] sm:$0xff]
        %v414 = vld [vmem:[%s330 + $0x50] sm:$0xff]
        %v415 = vld [vmem:[%s330 + $0x58] sm:$0xff]
        %v416 = vld [vmem:[%s330 + $0x60] sm:$0xff]
        %v417 = vld [vmem:[%s330 + $0x68] sm:$0xff]
        %v418 = vld [vmem:[%s330 + $0x70] sm:$0xff]
        %v419 = vld [vmem:[%s330 + $0x78] sm:$0xff]
        %v420 = vld [vmem:[%s330 + $0x80] sm:$0xff]
        %v421 = vld [vmem:[%s330 + $0x88] sm:$0xff]
        %v422 = vld [vmem:[%s330 + $0x90] sm:$0xff]
        %v423 = vld [vmem:[%s330 + $0x98] sm:$0xff]
        %v424 = vld [vmem:[%s330 + $0xa0] sm:$0xff]
        %v425 = vld [vmem:[%s330 + $0xa8] sm:$0xff]
        %v426 = vld [vmem:[%s330 + $0xb0] sm:$0xff]
        %v427 = vld [vmem:[%s330 + $0xb8] sm:$0xff]
        %v428 = vld [vmem:[%s330 + $0xc0] sm:$0xff]
        %v429 = vld [vmem:[%s330 + $0xc8] sm:$0xff]
        %v430 = vld [vmem:[%s330 + $0xd0] sm:$0xff]
        %v431 = vld [vmem:[%s330 + $0xd8] sm:$0xff]
        %v432 = vld [vmem:[%s330 + $0xe0] sm:$0xff]
        %v433 = vld [vmem:[%s330 + $0xe8] sm:$0xff]
        %v434 = vld [vmem:[%s330 + $0xf0] sm:$0xff]
        %v435 = vld [vmem:[%s330 + $0xf8] sm:$0xff]
        %s436 = scalar_lea.vmem [#allocation2], 32
        %437 = vst.msk [vmem:[%s436 + $0x8] sm:$0xff] %vm331, %v404
        %438 = vst.msk [vmem:[%s436 + $0x10] sm:$0xff] %vm331, %v405
        %439 = vst.msk [vmem:[%s436 + $0x28] sm:$0xff] %vm331, %v406
        %440 = vst.msk [vmem:[%s436 + $0x30] sm:$0xff] %vm331, %v407
        %441 = vst.msk [vmem:[%s436 + $0x48] sm:$0xff] %vm331, %v408
        %442 = vst.msk [vmem:[%s436 + $0x50] sm:$0xff] %vm331, %v409
        %443 = vst.msk [vmem:[%s436 + $0x68] sm:$0xff] %vm331, %v410
        %444 = vst.msk [vmem:[%s436 + $0x70] sm:$0xff] %vm331, %v411
        %445 = vst.msk [vmem:[%s436 + $0x88] sm:$0xff] %vm331, %v412
        %446 = vst.msk [vmem:[%s436 + $0x90] sm:$0xff] %vm331, %v413
        %447 = vst.msk [vmem:[%s436 + $0xa8] sm:$0xff] %vm331, %v414
        %448 = vst.msk [vmem:[%s436 + $0xb0] sm:$0xff] %vm331, %v415
        %449 = vst.msk [vmem:[%s436 + $0xc8] sm:$0xff] %vm331, %v416
        %450 = vst.msk [vmem:[%s436 + $0xd0] sm:$0xff] %vm331, %v417
        %451 = vst.msk [vmem:[%s436 + $0xe8] sm:$0xff] %vm331, %v418
        %452 = vst.msk [vmem:[%s436 + $0xf0] sm:$0xff] %vm331, %v419
        %453 = vst.msk [vmem:[%s436 + $0x108] sm:$0xff] %vm331, %v420
        %454 = vst.msk [vmem:[%s436 + $0x110] sm:$0xff] %vm331, %v421
        %455 = vst.msk [vmem:[%s436 + $0x128] sm:$0xff] %vm331, %v422
        %456 = vst.msk [vmem:[%s436 + $0x130] sm:$0xff] %vm331, %v423
        %457 = vst.msk [vmem:[%s436 + $0x148] sm:$0xff] %vm331, %v424
        %458 = vst.msk [vmem:[%s436 + $0x150] sm:$0xff] %vm331, %v425
        %459 = vst.msk [vmem:[%s436 + $0x168] sm:$0xff] %vm331, %v426
        %460 = vst.msk [vmem:[%s436 + $0x170] sm:$0xff] %vm331, %v427
        %461 = vst.msk [vmem:[%s436 + $0x188] sm:$0xff] %vm331, %v428
        %462 = vst.msk [vmem:[%s436 + $0x190] sm:$0xff] %vm331, %v429
        %463 = vst.msk [vmem:[%s436 + $0x1a8] sm:$0xff] %vm331, %v430
        %464 = vst.msk [vmem:[%s436 + $0x1b0] sm:$0xff] %vm331, %v431
        %465 = vst.msk [vmem:[%s436 + $0x1c8] sm:$0xff] %vm331, %v432
        %466 = vst.msk [vmem:[%s436 + $0x1d0] sm:$0xff] %vm331, %v433
        %467 = vst.msk [vmem:[%s436 + $0x1e8] sm:$0xff] %vm331, %v434
        %468 = vst.msk [vmem:[%s436 + $0x1f0] sm:$0xff] %vm331, %v435
        %v469 = vld [vmem:[#allocation2 + $0x7] sm:$0xff]
        %v470 = vld [vmem:[#allocation2 + $0xf] sm:$0xff]
        %v471 = vld [vmem:[#allocation2 + $0x27] sm:$0xff]
        %v472 = vld [vmem:[#allocation2 + $0x2f] sm:$0xff]
        %v473 = vld [vmem:[#allocation2 + $0x47] sm:$0xff]
        %v474 = vld [vmem:[#allocation2 + $0x4f] sm:$0xff]
        %v475 = vld [vmem:[#allocation2 + $0x67] sm:$0xff]
        %v476 = vld [vmem:[#allocation2 + $0x6f] sm:$0xff]
        %v477 = vld [vmem:[#allocation2 + $0x87] sm:$0xff]
        %v478 = vld [vmem:[#allocation2 + $0x8f] sm:$0xff]
        %v479 = vld [vmem:[#allocation2 + $0xa7] sm:$0xff]
        %v480 = vld [vmem:[#allocation2 + $0xaf] sm:$0xff]
        %v481 = vld [vmem:[#allocation2 + $0xc7] sm:$0xff]
        %v482 = vld [vmem:[#allocation2 + $0xcf] sm:$0xff]
        %v483 = vld [vmem:[#allocation2 + $0xe7] sm:$0xff]
        %v484 = vld [vmem:[#allocation2 + $0xef] sm:$0xff]
        %v485 = vld [vmem:[#allocation2 + $0x107] sm:$0xff]
        %v486 = vld [vmem:[#allocation2 + $0x10f] sm:$0xff]
        %v487 = vld [vmem:[#allocation2 + $0x127] sm:$0xff]
        %v488 = vld [vmem:[#allocation2 + $0x12f] sm:$0xff]
        %v489 = vld [vmem:[#allocation2 + $0x147] sm:$0xff]
        %v490 = vld [vmem:[#allocation2 + $0x14f] sm:$0xff]
        %v491 = vld [vmem:[#allocation2 + $0x167] sm:$0xff]
        %v492 = vld [vmem:[#allocation2 + $0x16f] sm:$0xff]
        %v493 = vld [vmem:[#allocation2 + $0x187] sm:$0xff]
        %v494 = vld [vmem:[#allocation2 + $0x18f] sm:$0xff]
        %v495 = vld [vmem:[#allocation2 + $0x1a7] sm:$0xff]
        %v496 = vld [vmem:[#allocation2 + $0x1af] sm:$0xff]
        %v497 = vld [vmem:[#allocation2 + $0x1c7] sm:$0xff]
        %v498 = vld [vmem:[#allocation2 + $0x1cf] sm:$0xff]
        %v499 = vld [vmem:[#allocation2 + $0x1e7] sm:$0xff]
        %v500 = vld [vmem:[#allocation2 + $0x1ef] sm:$0xff]
        %v501 = vld [vmem:[#allocation2 + $0x8] sm:$0xff]
        %v502 = vld [vmem:[#allocation2 + $0x10] sm:$0xff]
        %v503 = vld [vmem:[#allocation2 + $0x28] sm:$0xff]
        %v504 = vld [vmem:[#allocation2 + $0x30] sm:$0xff]
        %v505 = vld [vmem:[#allocation2 + $0x48] sm:$0xff]
        %v506 = vld [vmem:[#allocation2 + $0x50] sm:$0xff]
        %v507 = vld [vmem:[#allocation2 + $0x68] sm:$0xff]
        %v508 = vld [vmem:[#allocation2 + $0x70] sm:$0xff]
        %v509 = vld [vmem:[#allocation2 + $0x88] sm:$0xff]
        %v510 = vld [vmem:[#allocation2 + $0x90] sm:$0xff]
        %v511 = vld [vmem:[#allocation2 + $0xa8] sm:$0xff]
        %v512 = vld [vmem:[#allocation2 + $0xb0] sm:$0xff]
        %v513 = vld [vmem:[#allocation2 + $0xc8] sm:$0xff]
        %v514 = vld [vmem:[#allocation2 + $0xd0] sm:$0xff]
        %v515 = vld [vmem:[#allocation2 + $0xe8] sm:$0xff]
        %v516 = vld [vmem:[#allocation2 + $0xf0] sm:$0xff]
        %v517 = vld [vmem:[#allocation2 + $0x108] sm:$0xff]
        %v518 = vld [vmem:[#allocation2 + $0x110] sm:$0xff]
        %v519 = vld [vmem:[#allocation2 + $0x128] sm:$0xff]
        %v520 = vld [vmem:[#allocation2 + $0x130] sm:$0xff]
        %v521 = vld [vmem:[#allocation2 + $0x148] sm:$0xff]
        %v522 = vld [vmem:[#allocation2 + $0x150] sm:$0xff]
        %v523 = vld [vmem:[#allocation2 + $0x168] sm:$0xff]
        %v524 = vld [vmem:[#allocation2 + $0x170] sm:$0xff]
        %v525 = vld [vmem:[#allocation2 + $0x188] sm:$0xff]
        %v526 = vld [vmem:[#allocation2 + $0x190] sm:$0xff]
        %v527 = vld [vmem:[#allocation2 + $0x1a8] sm:$0xff]
        %v528 = vld [vmem:[#allocation2 + $0x1b0] sm:$0xff]
        %v529 = vld [vmem:[#allocation2 + $0x1c8] sm:$0xff]
        %v530 = vld [vmem:[#allocation2 + $0x1d0] sm:$0xff]
        %v531 = vld [vmem:[#allocation2 + $0x1e8] sm:$0xff]
        %v532 = vld [vmem:[#allocation2 + $0x1f0] sm:$0xff]
        %v533 = vld [vmem:[#allocation2 + $0x9] sm:$0xff]
        %v534 = vld [vmem:[#allocation2 + $0x11] sm:$0xff]
        %v535 = vld [vmem:[#allocation2 + $0x29] sm:$0xff]
        %v536 = vld [vmem:[#allocation2 + $0x31] sm:$0xff]
        %v537 = vld [vmem:[#allocation2 + $0x49] sm:$0xff]
        %v538 = vld [vmem:[#allocation2 + $0x51] sm:$0xff]
        %v539 = vld [vmem:[#allocation2 + $0x69] sm:$0xff]
        %v540 = vld [vmem:[#allocation2 + $0x71] sm:$0xff]
        %v541 = vld [vmem:[#allocation2 + $0x89] sm:$0xff]
        %v542 = vld [vmem:[#allocation2 + $0x91] sm:$0xff]
        %v543 = vld [vmem:[#allocation2 + $0xa9] sm:$0xff]
        %v544 = vld [vmem:[#allocation2 + $0xb1] sm:$0xff]
        %v545 = vld [vmem:[#allocation2 + $0xc9] sm:$0xff]
        %v546 = vld [vmem:[#allocation2 + $0xd1] sm:$0xff]
        %v547 = vld [vmem:[#allocation2 + $0xe9] sm:$0xff]
        %v548 = vld [vmem:[#allocation2 + $0xf1] sm:$0xff]
        %v549 = vld [vmem:[#allocation2 + $0x109] sm:$0xff]
        %v550 = vld [vmem:[#allocation2 + $0x111] sm:$0xff]
        %v551 = vld [vmem:[#allocation2 + $0x129] sm:$0xff]
        %v552 = vld [vmem:[#allocation2 + $0x131] sm:$0xff]
        %v553 = vld [vmem:[#allocation2 + $0x149] sm:$0xff]
        %v554 = vld [vmem:[#allocation2 + $0x151] sm:$0xff]
        %v555 = vld [vmem:[#allocation2 + $0x169] sm:$0xff]
        %v556 = vld [vmem:[#allocation2 + $0x171] sm:$0xff]
        %v557 = vld [vmem:[#allocation2 + $0x189] sm:$0xff]
        %v558 = vld [vmem:[#allocation2 + $0x191] sm:$0xff]
        %v559 = vld [vmem:[#allocation2 + $0x1a9] sm:$0xff]
        %v560 = vld [vmem:[#allocation2 + $0x1b1] sm:$0xff]
        %v561 = vld [vmem:[#allocation2 + $0x1c9] sm:$0xff]
        %v562 = vld [vmem:[#allocation2 + $0x1d1] sm:$0xff]
        %v563 = vld [vmem:[#allocation2 + $0x1e9] sm:$0xff]
        %v564 = vld [vmem:[#allocation2 + $0x1f1] sm:$0xff]
        %597 = vrot.lane.b32.xlu0 %v501, 32
        %v598 = vpop.permute.xlu0 %597
        %599 = vrot.lane.b32.xlu0 %v502, 32
        %v600 = vpop.permute.xlu0 %599
        %601 = vrot.lane.b32.xlu0 %v503, 32
        %v602 = vpop.permute.xlu0 %601
        %603 = vrot.lane.b32.xlu0 %v504, 32
        %v604 = vpop.permute.xlu0 %603
        %605 = vrot.lane.b32.xlu0 %v505, 32
        %v606 = vpop.permute.xlu0 %605
        %607 = vrot.lane.b32.xlu0 %v506, 32
        %v608 = vpop.permute.xlu0 %607
        %609 = vrot.lane.b32.xlu0 %v507, 32
        %v610 = vpop.permute.xlu0 %609
        %611 = vrot.lane.b32.xlu0 %v508, 32
        %v612 = vpop.permute.xlu0 %611
        %613 = vrot.lane.b32.xlu0 %v509, 32
        %v614 = vpop.permute.xlu0 %613
        %615 = vrot.lane.b32.xlu0 %v510, 32
        %v616 = vpop.permute.xlu0 %615
        %617 = vrot.lane.b32.xlu0 %v511, 32
        %v618 = vpop.permute.xlu0 %617
        %619 = vrot.lane.b32.xlu0 %v512, 32
        %v620 = vpop.permute.xlu0 %619
        %621 = vrot.lane.b32.xlu0 %v513, 32
        %v622 = vpop.permute.xlu0 %621
        %623 = vrot.lane.b32.xlu0 %v514, 32
        %v624 = vpop.permute.xlu0 %623
        %625 = vrot.lane.b32.xlu0 %v515, 32
        %v626 = vpop.permute.xlu0 %625
        %627 = vrot.lane.b32.xlu0 %v516, 32
        %v628 = vpop.permute.xlu0 %627
        %629 = vrot.lane.b32.xlu0 %v517, 32
        %v630 = vpop.permute.xlu0 %629
        %631 = vrot.lane.b32.xlu0 %v518, 32
        %v632 = vpop.permute.xlu0 %631
        %633 = vrot.lane.b32.xlu0 %v519, 32
        %v634 = vpop.permute.xlu0 %633
        %635 = vrot.lane.b32.xlu0 %v520, 32
        %v636 = vpop.permute.xlu0 %635
        %637 = vrot.lane.b32.xlu0 %v521, 32
        %v638 = vpop.permute.xlu0 %637
        %639 = vrot.lane.b32.xlu0 %v522, 32
        %v640 = vpop.permute.xlu0 %639
        %641 = vrot.lane.b32.xlu0 %v523, 32
        %v642 = vpop.permute.xlu0 %641
        %643 = vrot.lane.b32.xlu0 %v524, 32
        %v644 = vpop.permute.xlu0 %643
        %645 = vrot.lane.b32.xlu0 %v525, 32
        %v646 = vpop.permute.xlu0 %645
        %647 = vrot.lane.b32.xlu0 %v526, 32
        %v648 = vpop.permute.xlu0 %647
        %649 = vrot.lane.b32.xlu0 %v527, 32
        %v650 = vpop.permute.xlu0 %649
        %651 = vrot.lane.b32.xlu0 %v528, 32
        %v652 = vpop.permute.xlu0 %651
        %653 = vrot.lane.b32.xlu0 %v529, 32
        %v654 = vpop.permute.xlu0 %653
        %655 = vrot.lane.b32.xlu0 %v530, 32
        %v656 = vpop.permute.xlu0 %655
        %657 = vrot.lane.b32.xlu0 %v531, 32
        %v658 = vpop.permute.xlu0 %657
        %659 = vrot.lane.b32.xlu0 %v532, 32
        %v660 = vpop.permute.xlu0 %659
        %725 = vrot.lane.b32.xlu0 %v533, 64
        %v726 = vpop.permute.xlu0 %725
        %727 = vrot.lane.b32.xlu0 %v534, 64
        %v728 = vpop.permute.xlu0 %727
        %729 = vrot.lane.b32.xlu0 %v535, 64
        %v730 = vpop.permute.xlu0 %729
        %731 = vrot.lane.b32.xlu0 %v536, 64
        %v732 = vpop.permute.xlu0 %731
        %733 = vrot.lane.b32.xlu0 %v537, 64
        %v734 = vpop.permute.xlu0 %733
        %735 = vrot.lane.b32.xlu0 %v538, 64
        %v736 = vpop.permute.xlu0 %735
        %737 = vrot.lane.b32.xlu0 %v539, 64
        %v738 = vpop.permute.xlu0 %737
        %739 = vrot.lane.b32.xlu0 %v540, 64
        %v740 = vpop.permute.xlu0 %739
        %741 = vrot.lane.b32.xlu0 %v541, 64
        %v742 = vpop.permute.xlu0 %741
        %743 = vrot.lane.b32.xlu0 %v542, 64
        %v744 = vpop.permute.xlu0 %743
        %745 = vrot.lane.b32.xlu0 %v543, 64
        %v746 = vpop.permute.xlu0 %745
        %747 = vrot.lane.b32.xlu0 %v544, 64
        %v748 = vpop.permute.xlu0 %747
        %749 = vrot.lane.b32.xlu0 %v545, 64
        %v750 = vpop.permute.xlu0 %749
        %751 = vrot.lane.b32.xlu0 %v546, 64
        %v752 = vpop.permute.xlu0 %751
        %753 = vrot.lane.b32.xlu0 %v547, 64
        %v754 = vpop.permute.xlu0 %753
        %755 = vrot.lane.b32.xlu0 %v548, 64
        %v756 = vpop.permute.xlu0 %755
        %757 = vrot.lane.b32.xlu0 %v549, 64
        %v758 = vpop.permute.xlu0 %757
        %759 = vrot.lane.b32.xlu0 %v550, 64
        %v760 = vpop.permute.xlu0 %759
        %761 = vrot.lane.b32.xlu0 %v551, 64
        %v762 = vpop.permute.xlu0 %761
        %763 = vrot.lane.b32.xlu0 %v552, 64
        %v764 = vpop.permute.xlu0 %763
        %765 = vrot.lane.b32.xlu0 %v553, 64
        %v766 = vpop.permute.xlu0 %765
        %767 = vrot.lane.b32.xlu0 %v554, 64
        %v768 = vpop.permute.xlu0 %767
        %769 = vrot.lane.b32.xlu0 %v555, 64
        %v770 = vpop.permute.xlu0 %769
        %771 = vrot.lane.b32.xlu0 %v556, 64
        %v772 = vpop.permute.xlu0 %771
        %773 = vrot.lane.b32.xlu0 %v557, 64
        %v774 = vpop.permute.xlu0 %773
        %775 = vrot.lane.b32.xlu0 %v558, 64
        %v776 = vpop.permute.xlu0 %775
        %777 = vrot.lane.b32.xlu0 %v559, 64
        %v778 = vpop.permute.xlu0 %777
        %779 = vrot.lane.b32.xlu0 %v560, 64
        %v780 = vpop.permute.xlu0 %779
        %781 = vrot.lane.b32.xlu0 %v561, 64
        %v782 = vpop.permute.xlu0 %781
        %783 = vrot.lane.b32.xlu0 %v562, 64
        %v784 = vpop.permute.xlu0 %783
        %785 = vrot.lane.b32.xlu0 %v563, 64
        %v786 = vpop.permute.xlu0 %785
        %787 = vrot.lane.b32.xlu0 %v564, 64
        %v788 = vpop.permute.xlu0 %787
        %v821 = vsel %vm331, %v469, %v598
        %v822 = vsel %vm331, %v470, %v600
        %v823 = vsel %vm331, %v471, %v602
        %v824 = vsel %vm331, %v472, %v604
        %v825 = vsel %vm331, %v473, %v606
        %v826 = vsel %vm331, %v474, %v608
        %v827 = vsel %vm331, %v475, %v610
        %v828 = vsel %vm331, %v476, %v612
        %v829 = vsel %vm331, %v477, %v614
        %v830 = vsel %vm331, %v478, %v616
        %v831 = vsel %vm331, %v479, %v618
        %v832 = vsel %vm331, %v480, %v620
        %v833 = vsel %vm331, %v481, %v622
        %v834 = vsel %vm331, %v482, %v624
        %v835 = vsel %vm331, %v483, %v626
        %v836 = vsel %vm331, %v484, %v628
        %v837 = vsel %vm331, %v485, %v630
        %v838 = vsel %vm331, %v486, %v632
        %v839 = vsel %vm331, %v487, %v634
        %v840 = vsel %vm331, %v488, %v636
        %v841 = vsel %vm331, %v489, %v638
        %v842 = vsel %vm331, %v490, %v640
        %v843 = vsel %vm331, %v491, %v642
        %v844 = vsel %vm331, %v492, %v644
        %v845 = vsel %vm331, %v493, %v646
        %v846 = vsel %vm331, %v494, %v648
        %v847 = vsel %vm331, %v495, %v650
        %v848 = vsel %vm331, %v496, %v652
        %v849 = vsel %vm331, %v497, %v654
        %v850 = vsel %vm331, %v498, %v656
        %v851 = vsel %vm331, %v499, %v658
        %v852 = vsel %vm331, %v500, %v660
        %vm853 = vcmask 523264
        %v854 = vsel %vm853, %v821, %v726
        %v855 = vsel %vm853, %v822, %v728
        %v856 = vsel %vm853, %v823, %v730
        %v857 = vsel %vm853, %v824, %v732
        %v858 = vsel %vm853, %v825, %v734
        %v859 = vsel %vm853, %v826, %v736
        %v860 = vsel %vm853, %v827, %v738
        %v861 = vsel %vm853, %v828, %v740
        %v862 = vsel %vm853, %v829, %v742
        %v863 = vsel %vm853, %v830, %v744
        %v864 = vsel %vm853, %v831, %v746
        %v865 = vsel %vm853, %v832, %v748
        %v866 = vsel %vm853, %v833, %v750
        %v867 = vsel %vm853, %v834, %v752
        %v868 = vsel %vm853, %v835, %v754
        %v869 = vsel %vm853, %v836, %v756
        %v870 = vsel %vm853, %v837, %v758
        %v871 = vsel %vm853, %v838, %v760
        %v872 = vsel %vm853, %v839, %v762
        %v873 = vsel %vm853, %v840, %v764
        %v874 = vsel %vm853, %v841, %v766
        %v875 = vsel %vm853, %v842, %v768
        %v876 = vsel %vm853, %v843, %v770
        %v877 = vsel %vm853, %v844, %v772
        %v878 = vsel %vm853, %v845, %v774
        %v879 = vsel %vm853, %v846, %v776
        %v880 = vsel %vm853, %v847, %v778
        %v881 = vsel %vm853, %v848, %v780
        %v882 = vsel %vm853, %v849, %v782
        %v883 = vsel %vm853, %v850, %v784
        %v884 = vsel %vm853, %v851, %v786
        %v885 = vsel %vm853, %v852, %v788
        %v886 = vld [vmem:[%s436 + $0x7] sm:$0xff]
        %v887 = vld [vmem:[%s436 + $0xf] sm:$0xff]
        %v888 = vld [vmem:[%s436 + $0x27] sm:$0xff]
        %v889 = vld [vmem:[%s436 + $0x2f] sm:$0xff]
        %v890 = vld [vmem:[%s436 + $0x47] sm:$0xff]
        %v891 = vld [vmem:[%s436 + $0x4f] sm:$0xff]
        %v892 = vld [vmem:[%s436 + $0x67] sm:$0xff]
        %v893 = vld [vmem:[%s436 + $0x6f] sm:$0xff]
        %v894 = vld [vmem:[%s436 + $0x87] sm:$0xff]
        %v895 = vld [vmem:[%s436 + $0x8f] sm:$0xff]
        %v896 = vld [vmem:[%s436 + $0xa7] sm:$0xff]
        %v897 = vld [vmem:[%s436 + $0xaf] sm:$0xff]
        %v898 = vld [vmem:[%s436 + $0xc7] sm:$0xff]
        %v899 = vld [vmem:[%s436 + $0xcf] sm:$0xff]
        %v900 = vld [vmem:[%s436 + $0xe7] sm:$0xff]
        %v901 = vld [vmem:[%s436 + $0xef] sm:$0xff]
        %v902 = vld [vmem:[%s436 + $0x107] sm:$0xff]
        %v903 = vld [vmem:[%s436 + $0x10f] sm:$0xff]
        %v904 = vld [vmem:[%s436 + $0x127] sm:$0xff]
        %v905 = vld [vmem:[%s436 + $0x12f] sm:$0xff]
        %v906 = vld [vmem:[%s436 + $0x147] sm:$0xff]
        %v907 = vld [vmem:[%s436 + $0x14f] sm:$0xff]
        %v908 = vld [vmem:[%s436 + $0x167] sm:$0xff]
        %v909 = vld [vmem:[%s436 + $0x16f] sm:$0xff]
        %v910 = vld [vmem:[%s436 + $0x187] sm:$0xff]
        %v911 = vld [vmem:[%s436 + $0x18f] sm:$0xff]
        %v912 = vld [vmem:[%s436 + $0x1a7] sm:$0xff]
        %v913 = vld [vmem:[%s436 + $0x1af] sm:$0xff]
        %v914 = vld [vmem:[%s436 + $0x1c7] sm:$0xff]
        %v915 = vld [vmem:[%s436 + $0x1cf] sm:$0xff]
        %v916 = vld [vmem:[%s436 + $0x1e7] sm:$0xff]
        %v917 = vld [vmem:[%s436 + $0x1ef] sm:$0xff]
        %v918 = vld [vmem:[%s436 + $0x8] sm:$0xff]
        %v919 = vld [vmem:[%s436 + $0x10] sm:$0xff]
        %v920 = vld [vmem:[%s436 + $0x28] sm:$0xff]
        %v921 = vld [vmem:[%s436 + $0x30] sm:$0xff]
        %v922 = vld [vmem:[%s436 + $0x48] sm:$0xff]
        %v923 = vld [vmem:[%s436 + $0x50] sm:$0xff]
        %v924 = vld [vmem:[%s436 + $0x68] sm:$0xff]
        %v925 = vld [vmem:[%s436 + $0x70] sm:$0xff]
        %v926 = vld [vmem:[%s436 + $0x88] sm:$0xff]
        %v927 = vld [vmem:[%s436 + $0x90] sm:$0xff]
        %v928 = vld [vmem:[%s436 + $0xa8] sm:$0xff]
        %v929 = vld [vmem:[%s436 + $0xb0] sm:$0xff]
        %v930 = vld [vmem:[%s436 + $0xc8] sm:$0xff]
        %v931 = vld [vmem:[%s436 + $0xd0] sm:$0xff]
        %v932 = vld [vmem:[%s436 + $0xe8] sm:$0xff]
        %v933 = vld [vmem:[%s436 + $0xf0] sm:$0xff]
        %v934 = vld [vmem:[%s436 + $0x108] sm:$0xff]
        %v935 = vld [vmem:[%s436 + $0x110] sm:$0xff]
        %v936 = vld [vmem:[%s436 + $0x128] sm:$0xff]
        %v937 = vld [vmem:[%s436 + $0x130] sm:$0xff]
        %v938 = vld [vmem:[%s436 + $0x148] sm:$0xff]
        %v939 = vld [vmem:[%s436 + $0x150] sm:$0xff]
        %v940 = vld [vmem:[%s436 + $0x168] sm:$0xff]
        %v941 = vld [vmem:[%s436 + $0x170] sm:$0xff]
        %v942 = vld [vmem:[%s436 + $0x188] sm:$0xff]
        %v943 = vld [vmem:[%s436 + $0x190] sm:$0xff]
        %v944 = vld [vmem:[%s436 + $0x1a8] sm:$0xff]
        %v945 = vld [vmem:[%s436 + $0x1b0] sm:$0xff]
        %v946 = vld [vmem:[%s436 + $0x1c8] sm:$0xff]
        %v947 = vld [vmem:[%s436 + $0x1d0] sm:$0xff]
        %v948 = vld [vmem:[%s436 + $0x1e8] sm:$0xff]
        %v949 = vld [vmem:[%s436 + $0x1f0] sm:$0xff]
        %v950 = vld [vmem:[%s436 + $0x9] sm:$0xff]
        %v951 = vld [vmem:[%s436 + $0x11] sm:$0xff]
        %v952 = vld [vmem:[%s436 + $0x29] sm:$0xff]
        %v953 = vld [vmem:[%s436 + $0x31] sm:$0xff]
        %v954 = vld [vmem:[%s436 + $0x49] sm:$0xff]
        %v955 = vld [vmem:[%s436 + $0x51] sm:$0xff]
        %v956 = vld [vmem:[%s436 + $0x69] sm:$0xff]
        %v957 = vld [vmem:[%s436 + $0x71] sm:$0xff]
        %v958 = vld [vmem:[%s436 + $0x89] sm:$0xff]
        %v959 = vld [vmem:[%s436 + $0x91] sm:$0xff]
        %v960 = vld [vmem:[%s436 + $0xa9] sm:$0xff]
        %v961 = vld [vmem:[%s436 + $0xb1] sm:$0xff]
        %v962 = vld [vmem:[%s436 + $0xc9] sm:$0xff]
        %v963 = vld [vmem:[%s436 + $0xd1] sm:$0xff]
        %v964 = vld [vmem:[%s436 + $0xe9] sm:$0xff]
        %v965 = vld [vmem:[%s436 + $0xf1] sm:$0xff]
        %v966 = vld [vmem:[%s436 + $0x109] sm:$0xff]
        %v967 = vld [vmem:[%s436 + $0x111] sm:$0xff]
        %v968 = vld [vmem:[%s436 + $0x129] sm:$0xff]
        %v969 = vld [vmem:[%s436 + $0x131] sm:$0xff]
        %v970 = vld [vmem:[%s436 + $0x149] sm:$0xff]
        %v971 = vld [vmem:[%s436 + $0x151] sm:$0xff]
        %v972 = vld [vmem:[%s436 + $0x169] sm:$0xff]
        %v973 = vld [vmem:[%s436 + $0x171] sm:$0xff]
        %v974 = vld [vmem:[%s436 + $0x189] sm:$0xff]
        %v975 = vld [vmem:[%s436 + $0x191] sm:$0xff]
        %v976 = vld [vmem:[%s436 + $0x1a9] sm:$0xff]
        %v977 = vld [vmem:[%s436 + $0x1b1] sm:$0xff]
        %v978 = vld [vmem:[%s436 + $0x1c9] sm:$0xff]
        %v979 = vld [vmem:[%s436 + $0x1d1] sm:$0xff]
        %v980 = vld [vmem:[%s436 + $0x1e9] sm:$0xff]
        %v981 = vld [vmem:[%s436 + $0x1f1] sm:$0xff]
        %1014 = vrot.lane.b32.xlu0 %v918, 32
        %v1015 = vpop.permute.xlu0 %1014
        %1016 = vrot.lane.b32.xlu0 %v919, 32
        %v1017 = vpop.permute.xlu0 %1016
        %1018 = vrot.lane.b32.xlu0 %v920, 32
        %v1019 = vpop.permute.xlu0 %1018
        %1020 = vrot.lane.b32.xlu0 %v921, 32
        %v1021 = vpop.permute.xlu0 %1020
        %1022 = vrot.lane.b32.xlu0 %v922, 32
        %v1023 = vpop.permute.xlu0 %1022
        %1024 = vrot.lane.b32.xlu0 %v923, 32
        %v1025 = vpop.permute.xlu0 %1024
        %1026 = vrot.lane.b32.xlu0 %v924, 32
        %v1027 = vpop.permute.xlu0 %1026
        %1028 = vrot.lane.b32.xlu0 %v925, 32
        %v1029 = vpop.permute.xlu0 %1028
        %1030 = vrot.lane.b32.xlu0 %v926, 32
        %v1031 = vpop.permute.xlu0 %1030
        %1032 = vrot.lane.b32.xlu0 %v927, 32
        %v1033 = vpop.permute.xlu0 %1032
        %1034 = vrot.lane.b32.xlu0 %v928, 32
        %v1035 = vpop.permute.xlu0 %1034
        %1036 = vrot.lane.b32.xlu0 %v929, 32
        %v1037 = vpop.permute.xlu0 %1036
        %1038 = vrot.lane.b32.xlu0 %v930, 32
        %v1039 = vpop.permute.xlu0 %1038
        %1040 = vrot.lane.b32.xlu0 %v931, 32
        %v1041 = vpop.permute.xlu0 %1040
        %1042 = vrot.lane.b32.xlu0 %v932, 32
        %v1043 = vpop.permute.xlu0 %1042
        %1044 = vrot.lane.b32.xlu0 %v933, 32
        %v1045 = vpop.permute.xlu0 %1044
        %1046 = vrot.lane.b32.xlu0 %v934, 32
        %v1047 = vpop.permute.xlu0 %1046
        %1048 = vrot.lane.b32.xlu0 %v935, 32
        %v1049 = vpop.permute.xlu0 %1048
        %1050 = vrot.lane.b32.xlu0 %v936, 32
        %v1051 = vpop.permute.xlu0 %1050
        %1052 = vrot.lane.b32.xlu0 %v937, 32
        %v1053 = vpop.permute.xlu0 %1052
        %1054 = vrot.lane.b32.xlu0 %v938, 32
        %v1055 = vpop.permute.xlu0 %1054
        %1056 = vrot.lane.b32.xlu0 %v939, 32
        %v1057 = vpop.permute.xlu0 %1056
        %1058 = vrot.lane.b32.xlu0 %v940, 32
        %v1059 = vpop.permute.xlu0 %1058
        %1060 = vrot.lane.b32.xlu0 %v941, 32
        %v1061 = vpop.permute.xlu0 %1060
        %1062 = vrot.lane.b32.xlu0 %v942, 32
        %v1063 = vpop.permute.xlu0 %1062
        %1064 = vrot.lane.b32.xlu0 %v943, 32
        %v1065 = vpop.permute.xlu0 %1064
        %1066 = vrot.lane.b32.xlu0 %v944, 32
        %v1067 = vpop.permute.xlu0 %1066
        %1068 = vrot.lane.b32.xlu0 %v945, 32
        %v1069 = vpop.permute.xlu0 %1068
        %1070 = vrot.lane.b32.xlu0 %v946, 32
        %v1071 = vpop.permute.xlu0 %1070
        %1072 = vrot.lane.b32.xlu0 %v947, 32
        %v1073 = vpop.permute.xlu0 %1072
        %1074 = vrot.lane.b32.xlu0 %v948, 32
        %v1075 = vpop.permute.xlu0 %1074
        %1076 = vrot.lane.b32.xlu0 %v949, 32
        %v1077 = vpop.permute.xlu0 %1076
        %1142 = vrot.lane.b32.xlu0 %v950, 64
        %v1143 = vpop.permute.xlu0 %1142
        %1144 = vrot.lane.b32.xlu0 %v951, 64
        %v1145 = vpop.permute.xlu0 %1144
        %1146 = vrot.lane.b32.xlu0 %v952, 64
        %v1147 = vpop.permute.xlu0 %1146
        %1148 = vrot.lane.b32.xlu0 %v953, 64
        %v1149 = vpop.permute.xlu0 %1148
        %1150 = vrot.lane.b32.xlu0 %v954, 64
        %v1151 = vpop.permute.xlu0 %1150
        %1152 = vrot.lane.b32.xlu0 %v955, 64
        %v1153 = vpop.permute.xlu0 %1152
        %1154 = vrot.lane.b32.xlu0 %v956, 64
        %v1155 = vpop.permute.xlu0 %1154
        %1156 = vrot.lane.b32.xlu0 %v957, 64
        %v1157 = vpop.permute.xlu0 %1156
        %1158 = vrot.lane.b32.xlu0 %v958, 64
        %v1159 = vpop.permute.xlu0 %1158
        %1160 = vrot.lane.b32.xlu0 %v959, 64
        %v1161 = vpop.permute.xlu0 %1160
        %1162 = vrot.lane.b32.xlu0 %v960, 64
        %v1163 = vpop.permute.xlu0 %1162
        %1164 = vrot.lane.b32.xlu0 %v961, 64
        %v1165 = vpop.permute.xlu0 %1164
        %1166 = vrot.lane.b32.xlu0 %v962, 64
        %v1167 = vpop.permute.xlu0 %1166
        %1168 = vrot.lane.b32.xlu0 %v963, 64
        %v1169 = vpop.permute.xlu0 %1168
        %1170 = vrot.lane.b32.xlu0 %v964, 64
        %v1171 = vpop.permute.xlu0 %1170
        %1172 = vrot.lane.b32.xlu0 %v965, 64
        %v1173 = vpop.permute.xlu0 %1172
        %1174 = vrot.lane.b32.xlu0 %v966, 64
        %v1175 = vpop.permute.xlu0 %1174
        %1176 = vrot.lane.b32.xlu0 %v967, 64
        %v1177 = vpop.permute.xlu0 %1176
        %1178 = vrot.lane.b32.xlu0 %v968, 64
        %v1179 = vpop.permute.xlu0 %1178
        %1180 = vrot.lane.b32.xlu0 %v969, 64
        %v1181 = vpop.permute.xlu0 %1180
        %1182 = vrot.lane.b32.xlu0 %v970, 64
        %v1183 = vpop.permute.xlu0 %1182
        %1184 = vrot.lane.b32.xlu0 %v971, 64
        %v1185 = vpop.permute.xlu0 %1184
        %1186 = vrot.lane.b32.xlu0 %v972, 64
        %v1187 = vpop.permute.xlu0 %1186
        %1188 = vrot.lane.b32.xlu0 %v973, 64
        %v1189 = vpop.permute.xlu0 %1188
        %1190 = vrot.lane.b32.xlu0 %v974, 64
        %v1191 = vpop.permute.xlu0 %1190
        %1192 = vrot.lane.b32.xlu0 %v975, 64
        %v1193 = vpop.permute.xlu0 %1192
        %1194 = vrot.lane.b32.xlu0 %v976, 64
        %v1195 = vpop.permute.xlu0 %1194
        %1196 = vrot.lane.b32.xlu0 %v977, 64
        %v1197 = vpop.permute.xlu0 %1196
        %1198 = vrot.lane.b32.xlu0 %v978, 64
        %v1199 = vpop.permute.xlu0 %1198
        %1200 = vrot.lane.b32.xlu0 %v979, 64
        %v1201 = vpop.permute.xlu0 %1200
        %1202 = vrot.lane.b32.xlu0 %v980, 64
        %v1203 = vpop.permute.xlu0 %1202
        %1204 = vrot.lane.b32.xlu0 %v981, 64
        %v1205 = vpop.permute.xlu0 %1204
        %v1238 = vsel %vm331, %v886, %v1015
        %v1239 = vsel %vm331, %v887, %v1017
        %v1240 = vsel %vm331, %v888, %v1019
        %v1241 = vsel %vm331, %v889, %v1021
        %v1242 = vsel %vm331, %v890, %v1023
        %v1243 = vsel %vm331, %v891, %v1025
        %v1244 = vsel %vm331, %v892, %v1027
        %v1245 = vsel %vm331, %v893, %v1029
        %v1246 = vsel %vm331, %v894, %v1031
        %v1247 = vsel %vm331, %v895, %v1033
        %v1248 = vsel %vm331, %v896, %v1035
        %v1249 = vsel %vm331, %v897, %v1037
        %v1250 = vsel %vm331, %v898, %v1039
        %v1251 = vsel %vm331, %v899, %v1041
        %v1252 = vsel %vm331, %v900, %v1043
        %v1253 = vsel %vm331, %v901, %v1045
        %v1254 = vsel %vm331, %v902, %v1047
        %v1255 = vsel %vm331, %v903, %v1049
        %v1256 = vsel %vm331, %v904, %v1051
        %v1257 = vsel %vm331, %v905, %v1053
        %v1258 = vsel %vm331, %v906, %v1055
        %v1259 = vsel %vm331, %v907, %v1057
        %v1260 = vsel %vm331, %v908, %v1059
        %v1261 = vsel %vm331, %v909, %v1061
        %v1262 = vsel %vm331, %v910, %v1063
        %v1263 = vsel %vm331, %v911, %v1065
        %v1264 = vsel %vm331, %v912, %v1067
        %v1265 = vsel %vm331, %v913, %v1069
        %v1266 = vsel %vm331, %v914, %v1071
        %v1267 = vsel %vm331, %v915, %v1073
        %v1268 = vsel %vm331, %v916, %v1075
        %v1269 = vsel %vm331, %v917, %v1077
        %v1270 = vsel %vm853, %v1238, %v1143
        %v1271 = vsel %vm853, %v1239, %v1145
        %v1272 = vsel %vm853, %v1240, %v1147
        %v1273 = vsel %vm853, %v1241, %v1149
        %v1274 = vsel %vm853, %v1242, %v1151
        %v1275 = vsel %vm853, %v1243, %v1153
        %v1276 = vsel %vm853, %v1244, %v1155
        %v1277 = vsel %vm853, %v1245, %v1157
        %v1278 = vsel %vm853, %v1246, %v1159
        %v1279 = vsel %vm853, %v1247, %v1161
        %v1280 = vsel %vm853, %v1248, %v1163
        %v1281 = vsel %vm853, %v1249, %v1165
        %v1282 = vsel %vm853, %v1250, %v1167
        %v1283 = vsel %vm853, %v1251, %v1169
        %v1284 = vsel %vm853, %v1252, %v1171
        %v1285 = vsel %vm853, %v1253, %v1173
        %v1286 = vsel %vm853, %v1254, %v1175
        %v1287 = vsel %vm853, %v1255, %v1177
        %v1288 = vsel %vm853, %v1256, %v1179
        %v1289 = vsel %vm853, %v1257, %v1181
        %v1290 = vsel %vm853, %v1258, %v1183
        %v1291 = vsel %vm853, %v1259, %v1185
        %v1292 = vsel %vm853, %v1260, %v1187
        %v1293 = vsel %vm853, %v1261, %v1189
        %v1294 = vsel %vm853, %v1262, %v1191
        %v1295 = vsel %vm853, %v1263, %v1193
        %v1296 = vsel %vm853, %v1264, %v1195
        %v1297 = vsel %vm853, %v1265, %v1197
        %v1298 = vsel %vm853, %v1266, %v1199
        %v1299 = vsel %vm853, %v1267, %v1201
        %v1300 = vsel %vm853, %v1268, %v1203
        %v1301 = vsel %vm853, %v1269, %v1205
        %s1302 = scalar_lea.vmem [#allocation2], 64
        %v1303 = vld [vmem:[%s1302 + $0x7] sm:$0xff]
        %v1304 = vld [vmem:[%s1302 + $0xf] sm:$0xff]
        %v1305 = vld [vmem:[%s1302 + $0x27] sm:$0xff]
        %v1306 = vld [vmem:[%s1302 + $0x2f] sm:$0xff]
        %v1307 = vld [vmem:[%s1302 + $0x47] sm:$0xff]
        %v1308 = vld [vmem:[%s1302 + $0x4f] sm:$0xff]
        %v1309 = vld [vmem:[%s1302 + $0x67] sm:$0xff]
        %v1310 = vld [vmem:[%s1302 + $0x6f] sm:$0xff]
        %v1311 = vld [vmem:[%s1302 + $0x87] sm:$0xff]
        %v1312 = vld [vmem:[%s1302 + $0x8f] sm:$0xff]
        %v1313 = vld [vmem:[%s1302 + $0xa7] sm:$0xff]
        %v1314 = vld [vmem:[%s1302 + $0xaf] sm:$0xff]
        %v1315 = vld [vmem:[%s1302 + $0xc7] sm:$0xff]
        %v1316 = vld [vmem:[%s1302 + $0xcf] sm:$0xff]
        %v1317 = vld [vmem:[%s1302 + $0xe7] sm:$0xff]
        %v1318 = vld [vmem:[%s1302 + $0xef] sm:$0xff]
        %v1319 = vld [vmem:[%s1302 + $0x107] sm:$0xff]
        %v1320 = vld [vmem:[%s1302 + $0x10f] sm:$0xff]
        %v1321 = vld [vmem:[%s1302 + $0x127] sm:$0xff]
        %v1322 = vld [vmem:[%s1302 + $0x12f] sm:$0xff]
        %v1323 = vld [vmem:[%s1302 + $0x147] sm:$0xff]
        %v1324 = vld [vmem:[%s1302 + $0x14f] sm:$0xff]
        %v1325 = vld [vmem:[%s1302 + $0x167] sm:$0xff]
        %v1326 = vld [vmem:[%s1302 + $0x16f] sm:$0xff]
        %v1327 = vld [vmem:[%s1302 + $0x187] sm:$0xff]
        %v1328 = vld [vmem:[%s1302 + $0x18f] sm:$0xff]
        %v1329 = vld [vmem:[%s1302 + $0x1a7] sm:$0xff]
        %v1330 = vld [vmem:[%s1302 + $0x1af] sm:$0xff]
        %v1331 = vld [vmem:[%s1302 + $0x1c7] sm:$0xff]
        %v1332 = vld [vmem:[%s1302 + $0x1cf] sm:$0xff]
        %v1333 = vld [vmem:[%s1302 + $0x1e7] sm:$0xff]
        %v1334 = vld [vmem:[%s1302 + $0x1ef] sm:$0xff]
        %v1335 = vld [vmem:[%s1302 + $0x8] sm:$0xff]
        %v1336 = vld [vmem:[%s1302 + $0x10] sm:$0xff]
        %v1337 = vld [vmem:[%s1302 + $0x28] sm:$0xff]
        %v1338 = vld [vmem:[%s1302 + $0x30] sm:$0xff]
        %v1339 = vld [vmem:[%s1302 + $0x48] sm:$0xff]
        %v1340 = vld [vmem:[%s1302 + $0x50] sm:$0xff]
        %v1341 = vld [vmem:[%s1302 + $0x68] sm:$0xff]
        %v1342 = vld [vmem:[%s1302 + $0x70] sm:$0xff]
        %v1343 = vld [vmem:[%s1302 + $0x88] sm:$0xff]
        %v1344 = vld [vmem:[%s1302 + $0x90] sm:$0xff]
        %v1345 = vld [vmem:[%s1302 + $0xa8] sm:$0xff]
        %v1346 = vld [vmem:[%s1302 + $0xb0] sm:$0xff]
        %v1347 = vld [vmem:[%s1302 + $0xc8] sm:$0xff]
        %v1348 = vld [vmem:[%s1302 + $0xd0] sm:$0xff]
        %v1349 = vld [vmem:[%s1302 + $0xe8] sm:$0xff]
        %v1350 = vld [vmem:[%s1302 + $0xf0] sm:$0xff]
        %v1351 = vld [vmem:[%s1302 + $0x108] sm:$0xff]
        %v1352 = vld [vmem:[%s1302 + $0x110] sm:$0xff]
        %v1353 = vld [vmem:[%s1302 + $0x128] sm:$0xff]
        %v1354 = vld [vmem:[%s1302 + $0x130] sm:$0xff]
        %v1355 = vld [vmem:[%s1302 + $0x148] sm:$0xff]
        %v1356 = vld [vmem:[%s1302 + $0x150] sm:$0xff]
        %v1357 = vld [vmem:[%s1302 + $0x168] sm:$0xff]
        %v1358 = vld [vmem:[%s1302 + $0x170] sm:$0xff]
        %v1359 = vld [vmem:[%s1302 + $0x188] sm:$0xff]
        %v1360 = vld [vmem:[%s1302 + $0x190] sm:$0xff]
        %v1361 = vld [vmem:[%s1302 + $0x1a8] sm:$0xff]
        %v1362 = vld [vmem:[%s1302 + $0x1b0] sm:$0xff]
        %v1363 = vld [vmem:[%s1302 + $0x1c8] sm:$0xff]
        %v1364 = vld [vmem:[%s1302 + $0x1d0] sm:$0xff]
        %v1365 = vld [vmem:[%s1302 + $0x1e8] sm:$0xff]
        %v1366 = vld [vmem:[%s1302 + $0x1f0] sm:$0xff]
        %v1367 = vld [vmem:[%s1302 + $0x9] sm:$0xff]
        %v1368 = vld [vmem:[%s1302 + $0x11] sm:$0xff]
        %v1369 = vld [vmem:[%s1302 + $0x29] sm:$0xff]
        %v1370 = vld [vmem:[%s1302 + $0x31] sm:$0xff]
        %v1371 = vld [vmem:[%s1302 + $0x49] sm:$0xff]
        %v1372 = vld [vmem:[%s1302 + $0x51] sm:$0xff]
        %v1373 = vld [vmem:[%s1302 + $0x69] sm:$0xff]
        %v1374 = vld [vmem:[%s1302 + $0x71] sm:$0xff]
        %v1375 = vld [vmem:[%s1302 + $0x89] sm:$0xff]
        %v1376 = vld [vmem:[%s1302 + $0x91] sm:$0xff]
        %v1377 = vld [vmem:[%s1302 + $0xa9] sm:$0xff]
        %v1378 = vld [vmem:[%s1302 + $0xb1] sm:$0xff]
        %v1379 = vld [vmem:[%s1302 + $0xc9] sm:$0xff]
        %v1380 = vld [vmem:[%s1302 + $0xd1] sm:$0xff]
        %v1381 = vld [vmem:[%s1302 + $0xe9] sm:$0xff]
        %v1382 = vld [vmem:[%s1302 + $0xf1] sm:$0xff]
        %v1383 = vld [vmem:[%s1302 + $0x109] sm:$0xff]
        %v1384 = vld [vmem:[%s1302 + $0x111] sm:$0xff]
        %v1385 = vld [vmem:[%s1302 + $0x129] sm:$0xff]
        %v1386 = vld [vmem:[%s1302 + $0x131] sm:$0xff]
        %v1387 = vld [vmem:[%s1302 + $0x149] sm:$0xff]
        %v1388 = vld [vmem:[%s1302 + $0x151] sm:$0xff]
        %v1389 = vld [vmem:[%s1302 + $0x169] sm:$0xff]
        %v1390 = vld [vmem:[%s1302 + $0x171] sm:$0xff]
        %v1391 = vld [vmem:[%s1302 + $0x189] sm:$0xff]
        %v1392 = vld [vmem:[%s1302 + $0x191] sm:$0xff]
        %v1393 = vld [vmem:[%s1302 + $0x1a9] sm:$0xff]
        %v1394 = vld [vmem:[%s1302 + $0x1b1] sm:$0xff]
        %v1395 = vld [vmem:[%s1302 + $0x1c9] sm:$0xff]
        %v1396 = vld [vmem:[%s1302 + $0x1d1] sm:$0xff]
        %v1397 = vld [vmem:[%s1302 + $0x1e9] sm:$0xff]
        %v1398 = vld [vmem:[%s1302 + $0x1f1] sm:$0xff]
        %1431 = vrot.lane.b32.xlu0 %v1335, 32
        %v1432 = vpop.permute.xlu0 %1431
        %1433 = vrot.lane.b32.xlu0 %v1336, 32
        %v1434 = vpop.permute.xlu0 %1433
        %1435 = vrot.lane.b32.xlu0 %v1337, 32
        %v1436 = vpop.permute.xlu0 %1435
        %1437 = vrot.lane.b32.xlu0 %v1338, 32
        %v1438 = vpop.permute.xlu0 %1437
        %1439 = vrot.lane.b32.xlu0 %v1339, 32
        %v1440 = vpop.permute.xlu0 %1439
        %1441 = vrot.lane.b32.xlu0 %v1340, 32
        %v1442 = vpop.permute.xlu0 %1441
        %1443 = vrot.lane.b32.xlu0 %v1341, 32
        %v1444 = vpop.permute.xlu0 %1443
        %1445 = vrot.lane.b32.xlu0 %v1342, 32
        %v1446 = vpop.permute.xlu0 %1445
        %1447 = vrot.lane.b32.xlu0 %v1343, 32
        %v1448 = vpop.permute.xlu0 %1447
        %1449 = vrot.lane.b32.xlu0 %v1344, 32
        %v1450 = vpop.permute.xlu0 %1449
        %1451 = vrot.lane.b32.xlu0 %v1345, 32
        %v1452 = vpop.permute.xlu0 %1451
        %1453 = vrot.lane.b32.xlu0 %v1346, 32
        %v1454 = vpop.permute.xlu0 %1453
        %1455 = vrot.lane.b32.xlu0 %v1347, 32
        %v1456 = vpop.permute.xlu0 %1455
        %1457 = vrot.lane.b32.xlu0 %v1348, 32
        %v1458 = vpop.permute.xlu0 %1457
        %1459 = vrot.lane.b32.xlu0 %v1349, 32
        %v1460 = vpop.permute.xlu0 %1459
        %1461 = vrot.lane.b32.xlu0 %v1350, 32
        %v1462 = vpop.permute.xlu0 %1461
        %1463 = vrot.lane.b32.xlu0 %v1351, 32
        %v1464 = vpop.permute.xlu0 %1463
        %1465 = vrot.lane.b32.xlu0 %v1352, 32
        %v1466 = vpop.permute.xlu0 %1465
        %1467 = vrot.lane.b32.xlu0 %v1353, 32
        %v1468 = vpop.permute.xlu0 %1467
        %1469 = vrot.lane.b32.xlu0 %v1354, 32
        %v1470 = vpop.permute.xlu0 %1469
        %1471 = vrot.lane.b32.xlu0 %v1355, 32
        %v1472 = vpop.permute.xlu0 %1471
        %1473 = vrot.lane.b32.xlu0 %v1356, 32
        %v1474 = vpop.permute.xlu0 %1473
        %1475 = vrot.lane.b32.xlu0 %v1357, 32
        %v1476 = vpop.permute.xlu0 %1475
        %1477 = vrot.lane.b32.xlu0 %v1358, 32
        %v1478 = vpop.permute.xlu0 %1477
        %1479 = vrot.lane.b32.xlu0 %v1359, 32
        %v1480 = vpop.permute.xlu0 %1479
        %1481 = vrot.lane.b32.xlu0 %v1360, 32
        %v1482 = vpop.permute.xlu0 %1481
        %1483 = vrot.lane.b32.xlu0 %v1361, 32
        %v1484 = vpop.permute.xlu0 %1483
        %1485 = vrot.lane.b32.xlu0 %v1362, 32
        %v1486 = vpop.permute.xlu0 %1485
        %1487 = vrot.lane.b32.xlu0 %v1363, 32
        %v1488 = vpop.permute.xlu0 %1487
        %1489 = vrot.lane.b32.xlu0 %v1364, 32
        %v1490 = vpop.permute.xlu0 %1489
        %1491 = vrot.lane.b32.xlu0 %v1365, 32
        %v1492 = vpop.permute.xlu0 %1491
        %1493 = vrot.lane.b32.xlu0 %v1366, 32
        %v1494 = vpop.permute.xlu0 %1493
        %1559 = vrot.lane.b32.xlu0 %v1367, 64
        %v1560 = vpop.permute.xlu0 %1559
        %1561 = vrot.lane.b32.xlu0 %v1368, 64
        %v1562 = vpop.permute.xlu0 %1561
        %1563 = vrot.lane.b32.xlu0 %v1369, 64
        %v1564 = vpop.permute.xlu0 %1563
        %1565 = vrot.lane.b32.xlu0 %v1370, 64
        %v1566 = vpop.permute.xlu0 %1565
        %1567 = vrot.lane.b32.xlu0 %v1371, 64
        %v1568 = vpop.permute.xlu0 %1567
        %1569 = vrot.lane.b32.xlu0 %v1372, 64
        %v1570 = vpop.permute.xlu0 %1569
        %1571 = vrot.lane.b32.xlu0 %v1373, 64
        %v1572 = vpop.permute.xlu0 %1571
        %1573 = vrot.lane.b32.xlu0 %v1374, 64
        %v1574 = vpop.permute.xlu0 %1573
        %1575 = vrot.lane.b32.xlu0 %v1375, 64
        %v1576 = vpop.permute.xlu0 %1575
        %1577 = vrot.lane.b32.xlu0 %v1376, 64
        %v1578 = vpop.permute.xlu0 %1577
        %1579 = vrot.lane.b32.xlu0 %v1377, 64
        %v1580 = vpop.permute.xlu0 %1579
        %1581 = vrot.lane.b32.xlu0 %v1378, 64
        %v1582 = vpop.permute.xlu0 %1581
        %1583 = vrot.lane.b32.xlu0 %v1379, 64
        %v1584 = vpop.permute.xlu0 %1583
        %1585 = vrot.lane.b32.xlu0 %v1380, 64
        %v1586 = vpop.permute.xlu0 %1585
        %1587 = vrot.lane.b32.xlu0 %v1381, 64
        %v1588 = vpop.permute.xlu0 %1587
        %1589 = vrot.lane.b32.xlu0 %v1382, 64
        %v1590 = vpop.permute.xlu0 %1589
        %1591 = vrot.lane.b32.xlu0 %v1383, 64
        %v1592 = vpop.permute.xlu0 %1591
        %1593 = vrot.lane.b32.xlu0 %v1384, 64
        %v1594 = vpop.permute.xlu0 %1593
        %1595 = vrot.lane.b32.xlu0 %v1385, 64
        %v1596 = vpop.permute.xlu0 %1595
        %1597 = vrot.lane.b32.xlu0 %v1386, 64
        %v1598 = vpop.permute.xlu0 %1597
        %1599 = vrot.lane.b32.xlu0 %v1387, 64
        %v1600 = vpop.permute.xlu0 %1599
        %1601 = vrot.lane.b32.xlu0 %v1388, 64
        %v1602 = vpop.permute.xlu0 %1601
        %1603 = vrot.lane.b32.xlu0 %v1389, 64
        %v1604 = vpop.permute.xlu0 %1603
        %1605 = vrot.lane.b32.xlu0 %v1390, 64
        %v1606 = vpop.permute.xlu0 %1605
        %1607 = vrot.lane.b32.xlu0 %v1391, 64
        %v1608 = vpop.permute.xlu0 %1607
        %1609 = vrot.lane.b32.xlu0 %v1392, 64
        %v1610 = vpop.permute.xlu0 %1609
        %1611 = vrot.lane.b32.xlu0 %v1393, 64
        %v1612 = vpop.permute.xlu0 %1611
        %1613 = vrot.lane.b32.xlu0 %v1394, 64
        %v1614 = vpop.permute.xlu0 %1613
        %1615 = vrot.lane.b32.xlu0 %v1395, 64
        %v1616 = vpop.permute.xlu0 %1615
        %1617 = vrot.lane.b32.xlu0 %v1396, 64
        %v1618 = vpop.permute.xlu0 %1617
        %1619 = vrot.lane.b32.xlu0 %v1397, 64
        %v1620 = vpop.permute.xlu0 %1619
        %1621 = vrot.lane.b32.xlu0 %v1398, 64
        %v1622 = vpop.permute.xlu0 %1621
        %v1655 = vsel %vm331, %v1303, %v1432
        %v1656 = vsel %vm331, %v1304, %v1434
        %v1657 = vsel %vm331, %v1305, %v1436
        %v1658 = vsel %vm331, %v1306, %v1438
        %v1659 = vsel %vm331, %v1307, %v1440
        %v1660 = vsel %vm331, %v1308, %v1442
        %v1661 = vsel %vm331, %v1309, %v1444
        %v1662 = vsel %vm331, %v1310, %v1446
        %v1663 = vsel %vm331, %v1311, %v1448
        %v1664 = vsel %vm331, %v1312, %v1450
        %v1665 = vsel %vm331, %v1313, %v1452
        %v1666 = vsel %vm331, %v1314, %v1454
        %v1667 = vsel %vm331, %v1315, %v1456
        %v1668 = vsel %vm331, %v1316, %v1458
        %v1669 = vsel %vm331, %v1317, %v1460
        %v1670 = vsel %vm331, %v1318, %v1462
        %v1671 = vsel %vm331, %v1319, %v1464
        %v1672 = vsel %vm331, %v1320, %v1466
        %v1673 = vsel %vm331, %v1321, %v1468
        %v1674 = vsel %vm331, %v1322, %v1470
        %v1675 = vsel %vm331, %v1323, %v1472
        %v1676 = vsel %vm331, %v1324, %v1474
        %v1677 = vsel %vm331, %v1325, %v1476
        %v1678 = vsel %vm331, %v1326, %v1478
        %v1679 = vsel %vm331, %v1327, %v1480
        %v1680 = vsel %vm331, %v1328, %v1482
        %v1681 = vsel %vm331, %v1329, %v1484
        %v1682 = vsel %vm331, %v1330, %v1486
        %v1683 = vsel %vm331, %v1331, %v1488
        %v1684 = vsel %vm331, %v1332, %v1490
        %v1685 = vsel %vm331, %v1333, %v1492
        %v1686 = vsel %vm331, %v1334, %v1494
        %v1687 = vsel %vm853, %v1655, %v1560
        %v1688 = vsel %vm853, %v1656, %v1562
        %v1689 = vsel %vm853, %v1657, %v1564
        %v1690 = vsel %vm853, %v1658, %v1566
        %v1691 = vsel %vm853, %v1659, %v1568
        %v1692 = vsel %vm853, %v1660, %v1570
        %v1693 = vsel %vm853, %v1661, %v1572
        %v1694 = vsel %vm853, %v1662, %v1574
        %v1695 = vsel %vm853, %v1663, %v1576
        %v1696 = vsel %vm853, %v1664, %v1578
        %v1697 = vsel %vm853, %v1665, %v1580
        %v1698 = vsel %vm853, %v1666, %v1582
        %v1699 = vsel %vm853, %v1667, %v1584
        %v1700 = vsel %vm853, %v1668, %v1586
        %v1701 = vsel %vm853, %v1669, %v1588
        %v1702 = vsel %vm853, %v1670, %v1590
        %v1703 = vsel %vm853, %v1671, %v1592
        %v1704 = vsel %vm853, %v1672, %v1594
        %v1705 = vsel %vm853, %v1673, %v1596
        %v1706 = vsel %vm853, %v1674, %v1598
        %v1707 = vsel %vm853, %v1675, %v1600
        %v1708 = vsel %vm853, %v1676, %v1602
        %v1709 = vsel %vm853, %v1677, %v1604
        %v1710 = vsel %vm853, %v1678, %v1606
        %v1711 = vsel %vm853, %v1679, %v1608
        %v1712 = vsel %vm853, %v1680, %v1610
        %v1713 = vsel %vm853, %v1681, %v1612
        %v1714 = vsel %vm853, %v1682, %v1614
        %v1715 = vsel %vm853, %v1683, %v1616
        %v1716 = vsel %vm853, %v1684, %v1618
        %v1717 = vsel %vm853, %v1685, %v1620
        %v1718 = vsel %vm853, %v1686, %v1622
        %1751 = vrot.lane.b32.xlu0 %v1270, 96
        %v1752 = vpop.permute.xlu0 %1751
        %1753 = vrot.lane.b32.xlu0 %v1271, 96
        %v1754 = vpop.permute.xlu0 %1753
        %1755 = vrot.lane.b32.xlu0 %v1272, 96
        %v1756 = vpop.permute.xlu0 %1755
        %1757 = vrot.lane.b32.xlu0 %v1273, 96
        %v1758 = vpop.permute.xlu0 %1757
        %1759 = vrot.lane.b32.xlu0 %v1274, 96
        %v1760 = vpop.permute.xlu0 %1759
        %1761 = vrot.lane.b32.xlu0 %v1275, 96
        %v1762 = vpop.permute.xlu0 %1761
        %1763 = vrot.lane.b32.xlu0 %v1276, 96
        %v1764 = vpop.permute.xlu0 %1763
        %1765 = vrot.lane.b32.xlu0 %v1277, 96
        %v1766 = vpop.permute.xlu0 %1765
        %1767 = vrot.lane.b32.xlu0 %v1278, 96
        %v1768 = vpop.permute.xlu0 %1767
        %1769 = vrot.lane.b32.xlu0 %v1279, 96
        %v1770 = vpop.permute.xlu0 %1769
        %1771 = vrot.lane.b32.xlu0 %v1280, 96
        %v1772 = vpop.permute.xlu0 %1771
        %1773 = vrot.lane.b32.xlu0 %v1281, 96
        %v1774 = vpop.permute.xlu0 %1773
        %1775 = vrot.lane.b32.xlu0 %v1282, 96
        %v1776 = vpop.permute.xlu0 %1775
        %1777 = vrot.lane.b32.xlu0 %v1283, 96
        %v1778 = vpop.permute.xlu0 %1777
        %1779 = vrot.lane.b32.xlu0 %v1284, 96
        %v1780 = vpop.permute.xlu0 %1779
        %1781 = vrot.lane.b32.xlu0 %v1285, 96
        %v1782 = vpop.permute.xlu0 %1781
        %1783 = vrot.lane.b32.xlu0 %v1286, 96
        %v1784 = vpop.permute.xlu0 %1783
        %1785 = vrot.lane.b32.xlu0 %v1287, 96
        %v1786 = vpop.permute.xlu0 %1785
        %1787 = vrot.lane.b32.xlu0 %v1288, 96
        %v1788 = vpop.permute.xlu0 %1787
        %1789 = vrot.lane.b32.xlu0 %v1289, 96
        %v1790 = vpop.permute.xlu0 %1789
        %1791 = vrot.lane.b32.xlu0 %v1290, 96
        %v1792 = vpop.permute.xlu0 %1791
        %1793 = vrot.lane.b32.xlu0 %v1291, 96
        %v1794 = vpop.permute.xlu0 %1793
        %1795 = vrot.lane.b32.xlu0 %v1292, 96
        %v1796 = vpop.permute.xlu0 %1795
        %1797 = vrot.lane.b32.xlu0 %v1293, 96
        %v1798 = vpop.permute.xlu0 %1797
        %1799 = vrot.lane.b32.xlu0 %v1294, 96
        %v1800 = vpop.permute.xlu0 %1799
        %1801 = vrot.lane.b32.xlu0 %v1295, 96
        %v1802 = vpop.permute.xlu0 %1801
        %1803 = vrot.lane.b32.xlu0 %v1296, 96
        %v1804 = vpop.permute.xlu0 %1803
        %1805 = vrot.lane.b32.xlu0 %v1297, 96
        %v1806 = vpop.permute.xlu0 %1805
        %1807 = vrot.lane.b32.xlu0 %v1298, 96
        %v1808 = vpop.permute.xlu0 %1807
        %1809 = vrot.lane.b32.xlu0 %v1299, 96
        %v1810 = vpop.permute.xlu0 %1809
        %1811 = vrot.lane.b32.xlu0 %v1300, 96
        %v1812 = vpop.permute.xlu0 %1811
        %1813 = vrot.lane.b32.xlu0 %v1301, 96
        %v1814 = vpop.permute.xlu0 %1813
        %1879 = vrot.lane.b32.xlu0 %v1687, 64
        %v1880 = vpop.permute.xlu0 %1879
        %1881 = vrot.lane.b32.xlu0 %v1688, 64
        %v1882 = vpop.permute.xlu0 %1881
        %1883 = vrot.lane.b32.xlu0 %v1689, 64
        %v1884 = vpop.permute.xlu0 %1883
        %1885 = vrot.lane.b32.xlu0 %v1690, 64
        %v1886 = vpop.permute.xlu0 %1885
        %1887 = vrot.lane.b32.xlu0 %v1691, 64
        %v1888 = vpop.permute.xlu0 %1887
        %1889 = vrot.lane.b32.xlu0 %v1692, 64
        %v1890 = vpop.permute.xlu0 %1889
        %1891 = vrot.lane.b32.xlu0 %v1693, 64
        %v1892 = vpop.permute.xlu0 %1891
        %1893 = vrot.lane.b32.xlu0 %v1694, 64
        %v1894 = vpop.permute.xlu0 %1893
        %1895 = vrot.lane.b32.xlu0 %v1695, 64
        %v1896 = vpop.permute.xlu0 %1895
        %1897 = vrot.lane.b32.xlu0 %v1696, 64
        %v1898 = vpop.permute.xlu0 %1897
        %1899 = vrot.lane.b32.xlu0 %v1697, 64
        %v1900 = vpop.permute.xlu0 %1899
        %1901 = vrot.lane.b32.xlu0 %v1698, 64
        %v1902 = vpop.permute.xlu0 %1901
        %1903 = vrot.lane.b32.xlu0 %v1699, 64
        %v1904 = vpop.permute.xlu0 %1903
        %1905 = vrot.lane.b32.xlu0 %v1700, 64
        %v1906 = vpop.permute.xlu0 %1905
        %1907 = vrot.lane.b32.xlu0 %v1701, 64
        %v1908 = vpop.permute.xlu0 %1907
        %1909 = vrot.lane.b32.xlu0 %v1702, 64
        %v1910 = vpop.permute.xlu0 %1909
        %1911 = vrot.lane.b32.xlu0 %v1703, 64
        %v1912 = vpop.permute.xlu0 %1911
        %1913 = vrot.lane.b32.xlu0 %v1704, 64
        %v1914 = vpop.permute.xlu0 %1913
        %1915 = vrot.lane.b32.xlu0 %v1705, 64
        %v1916 = vpop.permute.xlu0 %1915
        %1917 = vrot.lane.b32.xlu0 %v1706, 64
        %v1918 = vpop.permute.xlu0 %1917
        %1919 = vrot.lane.b32.xlu0 %v1707, 64
        %v1920 = vpop.permute.xlu0 %1919
        %1921 = vrot.lane.b32.xlu0 %v1708, 64
        %v1922 = vpop.permute.xlu0 %1921
        %1923 = vrot.lane.b32.xlu0 %v1709, 64
        %v1924 = vpop.permute.xlu0 %1923
        %1925 = vrot.lane.b32.xlu0 %v1710, 64
        %v1926 = vpop.permute.xlu0 %1925
        %1927 = vrot.lane.b32.xlu0 %v1711, 64
        %v1928 = vpop.permute.xlu0 %1927
        %1929 = vrot.lane.b32.xlu0 %v1712, 64
        %v1930 = vpop.permute.xlu0 %1929
        %1931 = vrot.lane.b32.xlu0 %v1713, 64
        %v1932 = vpop.permute.xlu0 %1931
        %1933 = vrot.lane.b32.xlu0 %v1714, 64
        %v1934 = vpop.permute.xlu0 %1933
        %1935 = vrot.lane.b32.xlu0 %v1715, 64
        %v1936 = vpop.permute.xlu0 %1935
        %1937 = vrot.lane.b32.xlu0 %v1716, 64
        %v1938 = vpop.permute.xlu0 %1937
        %1939 = vrot.lane.b32.xlu0 %v1717, 64
        %v1940 = vpop.permute.xlu0 %1939
        %1941 = vrot.lane.b32.xlu0 %v1718, 64
        %v1942 = vpop.permute.xlu0 %1941
        %vm1975 = vcmask 785408
        %v1976 = vsel %vm1975, %v854, %v1752
        %v1977 = vsel %vm1975, %v855, %v1754
        %v1978 = vsel %vm1975, %v856, %v1756
        %v1979 = vsel %vm1975, %v857, %v1758
        %v1980 = vsel %vm1975, %v858, %v1760
        %v1981 = vsel %vm1975, %v859, %v1762
        %v1982 = vsel %vm1975, %v860, %v1764
        %v1983 = vsel %vm1975, %v861, %v1766
        %v1984 = vsel %vm1975, %v862, %v1768
        %v1985 = vsel %vm1975, %v863, %v1770
        %v1986 = vsel %vm1975, %v864, %v1772
        %v1987 = vsel %vm1975, %v865, %v1774
        %v1988 = vsel %vm1975, %v866, %v1776
        %v1989 = vsel %vm1975, %v867, %v1778
        %v1990 = vsel %vm1975, %v868, %v1780
        %v1991 = vsel %vm1975, %v869, %v1782
        %v1992 = vsel %vm1975, %v870, %v1784
        %v1993 = vsel %vm1975, %v871, %v1786
        %v1994 = vsel %vm1975, %v872, %v1788
        %v1995 = vsel %vm1975, %v873, %v1790
        %v1996 = vsel %vm1975, %v874, %v1792
        %v1997 = vsel %vm1975, %v875, %v1794
        %v1998 = vsel %vm1975, %v876, %v1796
        %v1999 = vsel %vm1975, %v877, %v1798
        %v2000 = vsel %vm1975, %v878, %v1800
        %v2001 = vsel %vm1975, %v879, %v1802
        %v2002 = vsel %vm1975, %v880, %v1804
        %v2003 = vsel %vm1975, %v881, %v1806
        %v2004 = vsel %vm1975, %v882, %v1808
        %v2005 = vsel %vm1975, %v883, %v1810
        %v2006 = vsel %vm1975, %v884, %v1812
        %v2007 = vsel %vm1975, %v885, %v1814
        %v2008 = vsel %vm853, %v1752, %v1880
        %v2009 = vsel %vm853, %v1754, %v1882
        %v2010 = vsel %vm853, %v1756, %v1884
        %v2011 = vsel %vm853, %v1758, %v1886
        %v2012 = vsel %vm853, %v1760, %v1888
        %v2013 = vsel %vm853, %v1762, %v1890
        %v2014 = vsel %vm853, %v1764, %v1892
        %v2015 = vsel %vm853, %v1766, %v1894
        %v2016 = vsel %vm853, %v1768, %v1896
        %v2017 = vsel %vm853, %v1770, %v1898
        %v2018 = vsel %vm853, %v1772, %v1900
        %v2019 = vsel %vm853, %v1774, %v1902
        %v2020 = vsel %vm853, %v1776, %v1904
        %v2021 = vsel %vm853, %v1778, %v1906
        %v2022 = vsel %vm853, %v1780, %v1908
        %v2023 = vsel %vm853, %v1782, %v1910
        %v2024 = vsel %vm853, %v1784, %v1912
        %v2025 = vsel %vm853, %v1786, %v1914
        %v2026 = vsel %vm853, %v1788, %v1916
        %v2027 = vsel %vm853, %v1790, %v1918
        %v2028 = vsel %vm853, %v1792, %v1920
        %v2029 = vsel %vm853, %v1794, %v1922
        %v2030 = vsel %vm853, %v1796, %v1924
        %v2031 = vsel %vm853, %v1798, %v1926
        %v2032 = vsel %vm853, %v1800, %v1928
        %v2033 = vsel %vm853, %v1802, %v1930
        %v2034 = vsel %vm853, %v1804, %v1932
        %v2035 = vsel %vm853, %v1806, %v1934
        %v2036 = vsel %vm853, %v1808, %v1936
        %v2037 = vsel %vm853, %v1810, %v1938
        %v2038 = vsel %vm853, %v1812, %v1940
        %v2039 = vsel %vm853, %v1814, %v1942
        %v2040 = vld [vmem:[%s1] sm:$0xff]
        %v2041 = vld [vmem:[%s1 + $0x8] sm:$0xff]
        %v2042 = vld [vmem:[%s1 + $0x10] sm:$0xff]
        %v2043 = vld [vmem:[%s1 + $0x18] sm:$0xff]
        %v2044 = vld [vmem:[%s1 + $0x20] sm:$0xff]
        %v2045 = vld [vmem:[%s1 + $0x28] sm:$0xff]
        %v2046 = vld [vmem:[%s1 + $0x30] sm:$0xff]
        %v2047 = vld [vmem:[%s1 + $0x38] sm:$0xff]
        %v2048 = vld [vmem:[%s1 + $0x40] sm:$0xff]
        %v2049 = vld [vmem:[%s1 + $0x48] sm:$0xff]
        %v2050 = vld [vmem:[%s1 + $0x50] sm:$0xff]
        %v2051 = vld [vmem:[%s1 + $0x58] sm:$0xff]
        %v2052 = vld [vmem:[%s1 + $0x60] sm:$0xff]
        %v2053 = vld [vmem:[%s1 + $0x68] sm:$0xff]
        %v2054 = vld [vmem:[%s1 + $0x70] sm:$0xff]
        %v2055 = vld [vmem:[%s1 + $0x78] sm:$0xff]
        %v2056 = vld [vmem:[%s1 + $0x80] sm:$0xff]
        %v2057 = vld [vmem:[%s1 + $0x88] sm:$0xff]
        %v2058 = vld [vmem:[%s1 + $0x90] sm:$0xff]
        %v2059 = vld [vmem:[%s1 + $0x98] sm:$0xff]
        %v2060 = vld [vmem:[%s1 + $0xa0] sm:$0xff]
        %v2061 = vld [vmem:[%s1 + $0xa8] sm:$0xff]
        %v2062 = vld [vmem:[%s1 + $0xb0] sm:$0xff]
        %v2063 = vld [vmem:[%s1 + $0xb8] sm:$0xff]
        %v2064 = vld [vmem:[%s1 + $0xc0] sm:$0xff]
        %v2065 = vld [vmem:[%s1 + $0xc8] sm:$0xff]
        %v2066 = vld [vmem:[%s1 + $0xd0] sm:$0xff]
        %v2067 = vld [vmem:[%s1 + $0xd8] sm:$0xff]
        %v2068 = vld [vmem:[%s1 + $0xe0] sm:$0xff]
        %v2069 = vld [vmem:[%s1 + $0xe8] sm:$0xff]
        %v2070 = vld [vmem:[%s1 + $0xf0] sm:$0xff]
        %v2071 = vld [vmem:[%s1 + $0xf8] sm:$0xff]
        %v2072 = vld [vmem:[%s1 + $0x100] sm:$0xff]
        %v2073 = vld [vmem:[%s1 + $0x108] sm:$0xff]
        %v2074 = vld [vmem:[%s1 + $0x110] sm:$0xff]
        %v2075 = vld [vmem:[%s1 + $0x118] sm:$0xff]
        %v2076 = vld [vmem:[%s2] sm:$0x1]
        %v2078 = vlaneseq
        %v2079 = vshrl.u32 %v2078, 7
        %v2080 = vsub.s32 0, %v2079
        %v2081 = vrot.slane %v2076, %v2080
        %v2083 = vsel %vm331, %v1880, 0
        %v2085 = vsel %vm331, %v1882, 0
        %v2087 = vsel %vm331, %v1884, 0
        %v2089 = vsel %vm331, %v1886, 0
        %v2091 = vsel %vm331, %v1888, 0
        %v2093 = vsel %vm331, %v1890, 0
        %v2095 = vsel %vm331, %v1892, 0
        %v2097 = vsel %vm331, %v1894, 0
        %v2099 = vsel %vm331, %v1896, 0
        %v2101 = vsel %vm331, %v1898, 0
        %v2103 = vsel %vm331, %v1900, 0
        %v2105 = vsel %vm331, %v1902, 0
        %v2107 = vsel %vm331, %v1904, 0
        %v2109 = vsel %vm331, %v1906, 0
        %v2111 = vsel %vm331, %v1908, 0
        %v2113 = vsel %vm331, %v1910, 0
        %v2115 = vsel %vm331, %v1912, 0
        %v2117 = vsel %vm331, %v1914, 0
        %v2119 = vsel %vm331, %v1916, 0
        %v2121 = vsel %vm331, %v1918, 0
        %v2123 = vsel %vm331, %v1920, 0
        %v2125 = vsel %vm331, %v1922, 0
        %v2127 = vsel %vm331, %v1924, 0
        %v2129 = vsel %vm331, %v1926, 0
        %v2131 = vsel %vm331, %v1928, 0
        %v2133 = vsel %vm331, %v1930, 0
        %v2135 = vsel %vm331, %v1932, 0
        %v2137 = vsel %vm331, %v1934, 0
        %v2139 = vsel %vm331, %v1936, 0
        %v2141 = vsel %vm331, %v1938, 0
        %v2143 = vsel %vm331, %v1940, 0
        %v2145 = vsel %vm331, %v1942, 0
        %2147 = vmatprep.subr.mxu0 0.0
        %2148 = vmatpush1.msra.mxu0 %v2040
        %2149 = vmatprep.subr.mxu0 0.0
        %2150 = vmatpush1.msra.mxu0 %v2041
        %2151 = vmatprep.subr.mxu0 0.0
        %2152 = vmatpush1.msra.mxu0 %v2042
        %2153 = vmatprep.subr.mxu0 0.0
        %2154 = vmatpush1.msra.mxu0 %v2043
        %2155 = vmatprep.subr.mxu0 0.0
        %2156 = vmatpush1.msra.mxu0 %v2044
        %2157 = vmatprep.subr.mxu0 0.0
        %2158 = vmatpush1.msra.mxu0 %v2045
        %2159 = vmatprep.subr.mxu0 0.0
        %2160 = vmatpush1.msra.mxu0 %v2046
        %2161 = vmatprep.subr.mxu0 0.0
        %2162 = vmatpush1.msra.mxu0 %v2047
        %2163 = vmatprep.subr.mxu0 0.0
        %2164 = vmatpush1.msra.mxu0 %v2048
        %2165 = vmatprep.subr.mxu0 0.0
        %2166 = vmatpush1.msra.mxu0 %v2049
        %2167 = vmatprep.subr.mxu0 0.0
        %2168 = vmatpush1.msra.mxu0 %v2050
        %2169 = vmatprep.subr.mxu0 0.0
        %2170 = vmatpush1.msra.mxu0 %v2051
        %2171 = vmatprep.subr.mxu0 0.0
        %2172 = vmatpush1.msra.mxu0 %v2052
        %2173 = vmatprep.subr.mxu0 0.0
        %2174 = vmatpush1.msra.mxu0 %v2053
        %2175 = vmatprep.subr.mxu0 0.0
        %2176 = vmatpush1.msra.mxu0 %v2054
        %2177 = vmatprep.subr.mxu0 0.0
        %2178 = vmatpush1.msra.mxu0 %v2055
        %2179 = vmatprep.subr.mxu0 0.0
        %2180 = vmatpush1.msra.mxu0 %v2056
        %2181 = vmatprep.subr.mxu0 0.0
        %2182 = vmatpush1.msra.mxu0 %v2057
        %2183 = vmatprep.subr.mxu0 0.0
        %2184 = vmatpush1.msra.mxu0 %v2058
        %2185 = vmatprep.subr.mxu0 0.0
        %2186 = vmatpush1.msra.mxu0 %v2059
        %2187 = vmatprep.subr.mxu0 0.0
        %2188 = vmatpush1.msra.mxu0 %v2060
        %2189 = vmatprep.subr.mxu0 0.0
        %2190 = vmatpush1.msra.mxu0 %v2061
        %2191 = vmatprep.subr.mxu0 0.0
        %2192 = vmatpush1.msra.mxu0 %v2062
        %2193 = vmatprep.subr.mxu0 0.0
        %2194 = vmatpush1.msra.mxu0 %v2063
        %2195 = vmatprep.subr.mxu0 0.0
        %2196 = vmatpush1.msra.mxu0 %v2064
        %2197 = vmatprep.subr.mxu0 0.0
        %2198 = vmatpush1.msra.mxu0 %v2065
        %2199 = vmatprep.subr.mxu0 0.0
        %2200 = vmatpush1.msra.mxu0 %v2066
        %2201 = vmatprep.subr.mxu0 0.0
        %2202 = vmatpush1.msra.mxu0 %v2067
        %2203 = vmatprep.subr.mxu0 0.0
        %2204 = vmatpush1.msra.mxu0 %v2068
        %2205 = vmatprep.subr.mxu0 0.0
        %2206 = vmatpush1.msra.mxu0 %v2069
        %2207 = vmatprep.subr.mxu0 0.0
        %2208 = vmatpush1.msra.mxu0 %v2070
        %2209 = vmatprep.subr.mxu0 0.0
        %2210 = vmatpush1.msra.mxu0 %v2071
        %2211 = vmatprep.mubr.f32.mxu0 %v2008
        %2212 = vmatmul.mubr.f32.gmra.mrb[0].mxu0 %v1976
        %v2213 = vpop.f32.mrb[0].mxu0
        %v2214 = vadd.f32 %v2081, %v2213
        %v2215 = vpop.f32.mrb[0].mxu0
        %2216 = vmatprep.mubr.f32.mxu0 %v2009
        %2217 = vmatmul.mubr.f32.gmra.mrb[0].mxu0 %v1977
        %v2218 = vpop.f32.mrb[0].mxu0
        %v2219 = vadd.f32 %v2081, %v2218
        %v2220 = vpop.f32.mrb[0].mxu0
        %2221 = vmatprep.mubr.f32.mxu0 %v2010
        %2222 = vmatmul.mubr.f32.gmra.mrb[0].mxu0 %v1978
        %v2223 = vpop.f32.mrb[0].mxu0
        %v2224 = vadd.f32 %v2081, %v2223
        %v2225 = vpop.f32.mrb[0].mxu0
        %2226 = vmatprep.mubr.f32.mxu0 %v2011
        %2227 = vmatmul.mubr.f32.gmra.mrb[0].mxu0 %v1979
        %v2228 = vpop.f32.mrb[0].mxu0
        %v2229 = vadd.f32 %v2081, %v2228
        %v2230 = vpop.f32.mrb[0].mxu0
        %2231 = vmatprep.mubr.f32.mxu0 %v2012
        %2232 = vmatmul.mubr.f32.gmra.mrb[0].mxu0 %v1980
        %v2233 = vpop.f32.mrb[0].mxu0
        %v2234 = vadd.f32 %v2081, %v2233
        %v2235 = vpop.f32.mrb[0].mxu0
        %2236 = vmatprep.mubr.f32.mxu0 %v2013
        %2237 = vmatmul.mubr.f32.gmra.mrb[0].mxu0 %v1981
        %v2238 = vpop.f32.mrb[0].mxu0
        %v2239 = vadd.f32 %v2081, %v2238
        %v2240 = vpop.f32.mrb[0].mxu0
        %2241 = vmatprep.mubr.f32.mxu0 %v2014
        %2242 = vmatmul.mubr.f32.gmra.mrb[0].mxu0 %v1982
        %v2243 = vpop.f32.mrb[0].mxu0
        %v2244 = vadd.f32 %v2081, %v2243
        %v2245 = vpop.f32.mrb[0].mxu0
        %2246 = vmatprep.mubr.f32.mxu0 %v2015
        %2247 = vmatmul.mubr.f32.gmra.mrb[0].mxu0 %v1983
        %v2248 = vpop.f32.mrb[0].mxu0
        %v2249 = vadd.f32 %v2081, %v2248
        %v2250 = vpop.f32.mrb[0].mxu0
        %2251 = vmatprep.mubr.f32.mxu0 %v2016
        %2252 = vmatmul.mubr.f32.gmra.mrb[0].mxu0 %v1984
        %v2253 = vpop.f32.mrb[0].mxu0
        %v2254 = vadd.f32 %v2081, %v2253
        %v2255 = vpop.f32.mrb[0].mxu0
        %2256 = vmatprep.mubr.f32.mxu0 %v2017
        %2257 = vmatmul.mubr.f32.gmra.mrb[0].mxu0 %v1985
        %v2258 = vpop.f32.mrb[0].mxu0
        %v2259 = vadd.f32 %v2081, %v2258
        %v2260 = vpop.f32.mrb[0].mxu0
        %2261 = vmatprep.mubr.f32.mxu0 %v2018
        %2262 = vmatmul.mubr.f32.gmra.mrb[0].mxu0 %v1986
        %v2263 = vpop.f32.mrb[0].mxu0
        %v2264 = vadd.f32 %v2081, %v2263
        %v2265 = vpop.f32.mrb[0].mxu0
        %2266 = vmatprep.mubr.f32.mxu0 %v2019
        %2267 = vmatmul.mubr.f32.gmra.mrb[0].mxu0 %v1987
        %v2268 = vpop.f32.mrb[0].mxu0
        %v2269 = vadd.f32 %v2081, %v2268
        %v2270 = vpop.f32.mrb[0].mxu0
        %2271 = vmatprep.mubr.f32.mxu0 %v2020
        %2272 = vmatmul.mubr.f32.gmra.mrb[0].mxu0 %v1988
        %v2273 = vpop.f32.mrb[0].mxu0
        %v2274 = vadd.f32 %v2081, %v2273
        %v2275 = vpop.f32.mrb[0].mxu0
        %2276 = vmatprep.mubr.f32.mxu0 %v2021
        %2277 = vmatmul.mubr.f32.gmra.mrb[0].mxu0 %v1989
        %v2278 = vpop.f32.mrb[0].mxu0
        %v2279 = vadd.f32 %v2081, %v2278
        %v2280 = vpop.f32.mrb[0].mxu0
        %2281 = vmatprep.mubr.f32.mxu0 %v2022
        %2282 = vmatmul.mubr.f32.gmra.mrb[0].mxu0 %v1990
        %v2283 = vpop.f32.mrb[0].mxu0
        %v2284 = vadd.f32 %v2081, %v2283
        %v2285 = vpop.f32.mrb[0].mxu0
        %2286 = vmatprep.mubr.f32.mxu0 %v2023
        %2287 = vmatmul.mubr.f32.gmra.mrb[0].mxu0 %v1991
        %v2288 = vpop.f32.mrb[0].mxu0
        %v2289 = vadd.f32 %v2081, %v2288
        %v2290 = vpop.f32.mrb[0].mxu0
        %2291 = vmatprep.mubr.f32.mxu0 %v2024
        %2292 = vmatmul.mubr.f32.gmra.mrb[0].mxu0 %v1992
        %v2293 = vpop.f32.mrb[0].mxu0
        %v2294 = vadd.f32 %v2081, %v2293
        %v2295 = vpop.f32.mrb[0].mxu0
        %2296 = vmatprep.mubr.f32.mxu0 %v2025
        %2297 = vmatmul.mubr.f32.gmra.mrb[0].mxu0 %v1993
        %v2298 = vpop.f32.mrb[0].mxu0
        %v2299 = vadd.f32 %v2081, %v2298
        %v2300 = vpop.f32.mrb[0].mxu0
        %2301 = vmatprep.mubr.f32.mxu0 %v2026
        %2302 = vmatmul.mubr.f32.gmra.mrb[0].mxu0 %v1994
        %v2303 = vpop.f32.mrb[0].mxu0
        %v2304 = vadd.f32 %v2081, %v2303
        %v2305 = vpop.f32.mrb[0].mxu0
        %2306 = vmatprep.mubr.f32.mxu0 %v2027
        %2307 = vmatmul.mubr.f32.gmra.mrb[0].mxu0 %v1995
        %v2308 = vpop.f32.mrb[0].mxu0
        %v2309 = vadd.f32 %v2081, %v2308
        %v2310 = vpop.f32.mrb[0].mxu0
        %2311 = vmatprep.mubr.f32.mxu0 %v2028
        %2312 = vmatmul.mubr.f32.gmra.mrb[0].mxu0 %v1996
        %v2313 = vpop.f32.mrb[0].mxu0
        %v2314 = vadd.f32 %v2081, %v2313
        %v2315 = vpop.f32.mrb[0].mxu0
        %2316 = vmatprep.mubr.f32.mxu0 %v2029
        %2317 = vmatmul.mubr.f32.gmra.mrb[0].mxu0 %v1997
        %v2318 = vpop.f32.mrb[0].mxu0
        %v2319 = vadd.f32 %v2081, %v2318
        %v2320 = vpop.f32.mrb[0].mxu0
        %2321 = vmatprep.mubr.f32.mxu0 %v2030
        %2322 = vmatmul.mubr.f32.gmra.mrb[0].mxu0 %v1998
        %v2323 = vpop.f32.mrb[0].mxu0
        %v2324 = vadd.f32 %v2081, %v2323
        %v2325 = vpop.f32.mrb[0].mxu0
        %2326 = vmatprep.mubr.f32.mxu0 %v2031
        %2327 = vmatmul.mubr.f32.gmra.mrb[0].mxu0 %v1999
        %v2328 = vpop.f32.mrb[0].mxu0
        %v2329 = vadd.f32 %v2081, %v2328
        %v2330 = vpop.f32.mrb[0].mxu0
        %2331 = vmatprep.mubr.f32.mxu0 %v2032
        %2332 = vmatmul.mubr.f32.gmra.mrb[0].mxu0 %v2000
        %v2333 = vpop.f32.mrb[0].mxu0
        %v2334 = vadd.f32 %v2081, %v2333
        %v2335 = vpop.f32.mrb[0].mxu0
        %2336 = vmatprep.mubr.f32.mxu0 %v2033
        %2337 = vmatmul.mubr.f32.gmra.mrb[0].mxu0 %v2001
        %v2338 = vpop.f32.mrb[0].mxu0
        %v2339 = vadd.f32 %v2081, %v2338
        %v2340 = vpop.f32.mrb[0].mxu0
        %2341 = vmatprep.mubr.f32.mxu0 %v2034
        %2342 = vmatmul.mubr.f32.gmra.mrb[0].mxu0 %v2002
        %v2343 = vpop.f32.mrb[0].mxu0
        %v2344 = vadd.f32 %v2081, %v2343
        %v2345 = vpop.f32.mrb[0].mxu0
        %2346 = vmatprep.mubr.f32.mxu0 %v2035
        %2347 = vmatmul.mubr.f32.gmra.mrb[0].mxu0 %v2003
        %v2348 = vpop.f32.mrb[0].mxu0
        %v2349 = vadd.f32 %v2081, %v2348
        %v2350 = vpop.f32.mrb[0].mxu0
        %2351 = vmatprep.mubr.f32.mxu0 %v2036
        %2352 = vmatmul.mubr.f32.gmra.mrb[0].mxu0 %v2004
        %v2353 = vpop.f32.mrb[0].mxu0
        %v2354 = vadd.f32 %v2081, %v2353
        %v2355 = vpop.f32.mrb[0].mxu0
        %2356 = vmatprep.mubr.f32.mxu0 %v2037
        %2357 = vmatmul.mubr.f32.gmra.mrb[0].mxu0 %v2005
        %v2358 = vpop.f32.mrb[0].mxu0
        %v2359 = vadd.f32 %v2081, %v2358
        %v2360 = vpop.f32.mrb[0].mxu0
        %2361 = vmatprep.mubr.f32.mxu0 %v2038
        %2362 = vmatmul.mubr.f32.gmra.mrb[0].mxu0 %v2006
        %v2363 = vpop.f32.mrb[0].mxu0
        %v2364 = vadd.f32 %v2081, %v2363
        %v2365 = vpop.f32.mrb[0].mxu0
        %2366 = vmatprep.mubr.f32.mxu0 %v2039
        %2367 = vmatmul.mubr.f32.gmra.mrb[0].mxu0 %v2007
        %v2368 = vpop.f32.mrb[0].mxu0
        %v2369 = vadd.f32 %v2081, %v2368
        %v2370 = vpop.f32.mrb[0].mxu0
        %2371 = vdwg.mxu0
        %2372 = vmatprep.subr.mxu0 0.0
        %2373 = vmatpush1.msra.mxu0 %v2072
        %2374 = vmatprep.subr.mxu0 0.0
        %2375 = vmatpush1.msra.mxu0 %v2073
        %2376 = vmatprep.subr.mxu0 0.0
        %2377 = vmatpush1.msra.mxu0 %v2074
        %2378 = vmatprep.subr.mxu0 0.0
        %2379 = vmatpush1.msra.mxu0 %v2075
        %2380 = vmatprep.subr.mxu0 0.0
        %2381 = vmatpush1.msra.mxu0 0.0
        %2382 = vmatprep.subr.mxu0 0.0
        %2383 = vmatpush1.msra.mxu0 0.0
        %2384 = vmatprep.subr.mxu0 0.0
        %2385 = vmatpush1.msra.mxu0 0.0
        %2386 = vmatprep.subr.mxu0 0.0
        %2387 = vmatpush1.msra.mxu0 0.0
        %2388 = vmatprep.subr.mxu0 0.0
        %2389 = vmatpush1.msra.mxu0 0.0
        %2390 = vmatprep.subr.mxu0 0.0
        %2391 = vmatpush1.msra.mxu0 0.0
        %2392 = vmatprep.subr.mxu0 0.0
        %2393 = vmatpush1.msra.mxu0 0.0
        %2394 = vmatprep.subr.mxu0 0.0
        %2395 = vmatpush1.msra.mxu0 0.0
        %2396 = vmatprep.subr.mxu0 0.0
        %2397 = vmatpush1.msra.mxu0 0.0
        %2398 = vmatprep.subr.mxu0 0.0
        %2399 = vmatpush1.msra.mxu0 0.0
        %2400 = vmatprep.subr.mxu0 0.0
        %2401 = vmatpush1.msra.mxu0 0.0
        %2402 = vmatprep.subr.mxu0 0.0
        %2403 = vmatpush1.msra.mxu0 0.0
        %2404 = vmatprep.subr.mxu0 0.0
        %2405 = vmatpush1.msra.mxu0 0.0
        %2406 = vmatprep.subr.mxu0 0.0
        %2407 = vmatpush1.msra.mxu0 0.0
        %2408 = vmatprep.subr.mxu0 0.0
        %2409 = vmatpush1.msra.mxu0 0.0
        %2410 = vmatprep.subr.mxu0 0.0
        %2411 = vmatpush1.msra.mxu0 0.0
        %2412 = vmatprep.subr.mxu0 0.0
        %2413 = vmatpush1.msra.mxu0 0.0
        %2414 = vmatprep.subr.mxu0 0.0
        %2415 = vmatpush1.msra.mxu0 0.0
        %2416 = vmatprep.subr.mxu0 0.0
        %2417 = vmatpush1.msra.mxu0 0.0
        %2418 = vmatprep.subr.mxu0 0.0
        %2419 = vmatpush1.msra.mxu0 0.0
        %2420 = vmatprep.subr.mxu0 0.0
        %2421 = vmatpush1.msra.mxu0 0.0
        %2422 = vmatprep.subr.mxu0 0.0
        %2423 = vmatpush1.msra.mxu0 0.0
        %2424 = vmatprep.subr.mxu0 0.0
        %2425 = vmatpush1.msra.mxu0 0.0
        %2426 = vmatprep.subr.mxu0 0.0
        %2427 = vmatpush1.msra.mxu0 0.0
        %2428 = vmatprep.subr.mxu0 0.0
        %2429 = vmatpush1.msra.mxu0 0.0
        %2430 = vmatprep.subr.mxu0 0.0
        %2431 = vmatpush1.msra.mxu0 0.0
        %2432 = vmatprep.subr.mxu0 0.0
        %2433 = vmatpush1.msra.mxu0 0.0
        %2434 = vmatprep.subr.mxu0 0.0
        %2435 = vmatpush1.msra.mxu0 0.0
        %2436 = vmatprep.mubr.f32.mxu0 0.0
        %2437 = vmatmul.mubr.f32.gmra.mrb[0].mxu0 %v2083
        %v2438 = vpop.f32.mrb[0].mxu0
        %v2439 = vadd.f32 %v2214, %v2438
        %v2440 = vpop.f32.mrb[0].mxu0
        %2441 = vmatprep.mubr.f32.mxu0 0.0
        %2442 = vmatmul.mubr.f32.gmra.mrb[0].mxu0 %v2085
        %v2443 = vpop.f32.mrb[0].mxu0
        %v2444 = vadd.f32 %v2219, %v2443
        %v2445 = vpop.f32.mrb[0].mxu0
        %2446 = vmatprep.mubr.f32.mxu0 0.0
        %2447 = vmatmul.mubr.f32.gmra.mrb[0].mxu0 %v2087
        %v2448 = vpop.f32.mrb[0].mxu0
        %v2449 = vadd.f32 %v2224, %v2448
        %v2450 = vpop.f32.mrb[0].mxu0
        %2451 = vmatprep.mubr.f32.mxu0 0.0
        %2452 = vmatmul.mubr.f32.gmra.mrb[0].mxu0 %v2089
        %v2453 = vpop.f32.mrb[0].mxu0
        %v2454 = vadd.f32 %v2229, %v2453
        %v2455 = vpop.f32.mrb[0].mxu0
        %2456 = vmatprep.mubr.f32.mxu0 0.0
        %2457 = vmatmul.mubr.f32.gmra.mrb[0].mxu0 %v2091
        %v2458 = vpop.f32.mrb[0].mxu0
        %v2459 = vadd.f32 %v2234, %v2458
        %v2460 = vpop.f32.mrb[0].mxu0
        %2461 = vmatprep.mubr.f32.mxu0 0.0
        %2462 = vmatmul.mubr.f32.gmra.mrb[0].mxu0 %v2093
        %v2463 = vpop.f32.mrb[0].mxu0
        %v2464 = vadd.f32 %v2239, %v2463
        %v2465 = vpop.f32.mrb[0].mxu0
        %2466 = vmatprep.mubr.f32.mxu0 0.0
        %2467 = vmatmul.mubr.f32.gmra.mrb[0].mxu0 %v2095
        %v2468 = vpop.f32.mrb[0].mxu0
        %v2469 = vadd.f32 %v2244, %v2468
        %v2470 = vpop.f32.mrb[0].mxu0
        %2471 = vmatprep.mubr.f32.mxu0 0.0
        %2472 = vmatmul.mubr.f32.gmra.mrb[0].mxu0 %v2097
        %v2473 = vpop.f32.mrb[0].mxu0
        %v2474 = vadd.f32 %v2249, %v2473
        %v2475 = vpop.f32.mrb[0].mxu0
        %2476 = vmatprep.mubr.f32.mxu0 0.0
        %2477 = vmatmul.mubr.f32.gmra.mrb[0].mxu0 %v2099
        %v2478 = vpop.f32.mrb[0].mxu0
        %v2479 = vadd.f32 %v2254, %v2478
        %v2480 = vpop.f32.mrb[0].mxu0
        %2481 = vmatprep.mubr.f32.mxu0 0.0
        %2482 = vmatmul.mubr.f32.gmra.mrb[0].mxu0 %v2101
        %v2483 = vpop.f32.mrb[0].mxu0
        %v2484 = vadd.f32 %v2259, %v2483
        %v2485 = vpop.f32.mrb[0].mxu0
        %2486 = vmatprep.mubr.f32.mxu0 0.0
        %2487 = vmatmul.mubr.f32.gmra.mrb[0].mxu0 %v2103
        %v2488 = vpop.f32.mrb[0].mxu0
        %v2489 = vadd.f32 %v2264, %v2488
        %v2490 = vpop.f32.mrb[0].mxu0
        %2491 = vmatprep.mubr.f32.mxu0 0.0
        %2492 = vmatmul.mubr.f32.gmra.mrb[0].mxu0 %v2105
        %v2493 = vpop.f32.mrb[0].mxu0
        %v2494 = vadd.f32 %v2269, %v2493
        %v2495 = vpop.f32.mrb[0].mxu0
        %2496 = vmatprep.mubr.f32.mxu0 0.0
        %2497 = vmatmul.mubr.f32.gmra.mrb[0].mxu0 %v2107
        %v2498 = vpop.f32.mrb[0].mxu0
        %v2499 = vadd.f32 %v2274, %v2498
        %v2500 = vpop.f32.mrb[0].mxu0
        %2501 = vmatprep.mubr.f32.mxu0 0.0
        %2502 = vmatmul.mubr.f32.gmra.mrb[0].mxu0 %v2109
        %v2503 = vpop.f32.mrb[0].mxu0
        %v2504 = vadd.f32 %v2279, %v2503
        %v2505 = vpop.f32.mrb[0].mxu0
        %2506 = vmatprep.mubr.f32.mxu0 0.0
        %2507 = vmatmul.mubr.f32.gmra.mrb[0].mxu0 %v2111
        %v2508 = vpop.f32.mrb[0].mxu0
        %v2509 = vadd.f32 %v2284, %v2508
        %v2510 = vpop.f32.mrb[0].mxu0
        %2511 = vmatprep.mubr.f32.mxu0 0.0
        %2512 = vmatmul.mubr.f32.gmra.mrb[0].mxu0 %v2113
        %v2513 = vpop.f32.mrb[0].mxu0
        %v2514 = vadd.f32 %v2289, %v2513
        %v2515 = vpop.f32.mrb[0].mxu0
        %2516 = vmatprep.mubr.f32.mxu0 0.0
        %2517 = vmatmul.mubr.f32.gmra.mrb[0].mxu0 %v2115
        %v2518 = vpop.f32.mrb[0].mxu0
        %v2519 = vadd.f32 %v2294, %v2518
        %v2520 = vpop.f32.mrb[0].mxu0
        %2521 = vmatprep.mubr.f32.mxu0 0.0
        %2522 = vmatmul.mubr.f32.gmra.mrb[0].mxu0 %v2117
        %v2523 = vpop.f32.mrb[0].mxu0
        %v2524 = vadd.f32 %v2299, %v2523
        %v2525 = vpop.f32.mrb[0].mxu0
        %2526 = vmatprep.mubr.f32.mxu0 0.0
        %2527 = vmatmul.mubr.f32.gmra.mrb[0].mxu0 %v2119
        %v2528 = vpop.f32.mrb[0].mxu0
        %v2529 = vadd.f32 %v2304, %v2528
        %v2530 = vpop.f32.mrb[0].mxu0
        %2531 = vmatprep.mubr.f32.mxu0 0.0
        %2532 = vmatmul.mubr.f32.gmra.mrb[0].mxu0 %v2121
        %v2533 = vpop.f32.mrb[0].mxu0
        %v2534 = vadd.f32 %v2309, %v2533
        %v2535 = vpop.f32.mrb[0].mxu0
        %2536 = vmatprep.mubr.f32.mxu0 0.0
        %2537 = vmatmul.mubr.f32.gmra.mrb[0].mxu0 %v2123
        %v2538 = vpop.f32.mrb[0].mxu0
        %v2539 = vadd.f32 %v2314, %v2538
        %v2540 = vpop.f32.mrb[0].mxu0
        %2541 = vmatprep.mubr.f32.mxu0 0.0
        %2542 = vmatmul.mubr.f32.gmra.mrb[0].mxu0 %v2125
        %v2543 = vpop.f32.mrb[0].mxu0
        %v2544 = vadd.f32 %v2319, %v2543
        %v2545 = vpop.f32.mrb[0].mxu0
        %2546 = vmatprep.mubr.f32.mxu0 0.0
        %2547 = vmatmul.mubr.f32.gmra.mrb[0].mxu0 %v2127
        %v2548 = vpop.f32.mrb[0].mxu0
        %v2549 = vadd.f32 %v2324, %v2548
        %v2550 = vpop.f32.mrb[0].mxu0
        %2551 = vmatprep.mubr.f32.mxu0 0.0
        %2552 = vmatmul.mubr.f32.gmra.mrb[0].mxu0 %v2129
        %v2553 = vpop.f32.mrb[0].mxu0
        %v2554 = vadd.f32 %v2329, %v2553
        %v2555 = vpop.f32.mrb[0].mxu0
        %2556 = vmatprep.mubr.f32.mxu0 0.0
        %2557 = vmatmul.mubr.f32.gmra.mrb[0].mxu0 %v2131
        %v2558 = vpop.f32.mrb[0].mxu0
        %v2559 = vadd.f32 %v2334, %v2558
        %v2560 = vpop.f32.mrb[0].mxu0
        %2561 = vmatprep.mubr.f32.mxu0 0.0
        %2562 = vmatmul.mubr.f32.gmra.mrb[0].mxu0 %v2133
        %v2563 = vpop.f32.mrb[0].mxu0
        %v2564 = vadd.f32 %v2339, %v2563
        %v2565 = vpop.f32.mrb[0].mxu0
        %2566 = vmatprep.mubr.f32.mxu0 0.0
        %2567 = vmatmul.mubr.f32.gmra.mrb[0].mxu0 %v2135
        %v2568 = vpop.f32.mrb[0].mxu0
        %v2569 = vadd.f32 %v2344, %v2568
        %v2570 = vpop.f32.mrb[0].mxu0
        %2571 = vmatprep.mubr.f32.mxu0 0.0
        %2572 = vmatmul.mubr.f32.gmra.mrb[0].mxu0 %v2137
        %v2573 = vpop.f32.mrb[0].mxu0
        %v2574 = vadd.f32 %v2349, %v2573
        %v2575 = vpop.f32.mrb[0].mxu0
        %2576 = vmatprep.mubr.f32.mxu0 0.0
        %2577 = vmatmul.mubr.f32.gmra.mrb[0].mxu0 %v2139
        %v2578 = vpop.f32.mrb[0].mxu0
        %v2579 = vadd.f32 %v2354, %v2578
        %v2580 = vpop.f32.mrb[0].mxu0
        %2581 = vmatprep.mubr.f32.mxu0 0.0
        %2582 = vmatmul.mubr.f32.gmra.mrb[0].mxu0 %v2141
        %v2583 = vpop.f32.mrb[0].mxu0
        %v2584 = vadd.f32 %v2359, %v2583
        %v2585 = vpop.f32.mrb[0].mxu0
        %2586 = vmatprep.mubr.f32.mxu0 0.0
        %2587 = vmatmul.mubr.f32.gmra.mrb[0].mxu0 %v2143
        %v2588 = vpop.f32.mrb[0].mxu0
        %v2589 = vadd.f32 %v2364, %v2588
        %v2590 = vpop.f32.mrb[0].mxu0
        %2591 = vmatprep.mubr.f32.mxu0 0.0
        %2592 = vmatmul.mubr.f32.gmra.mrb[0].mxu0 %v2145
        %v2593 = vpop.f32.mrb[0].mxu0
        %v2594 = vadd.f32 %v2369, %v2593
        %v2595 = vpop.f32.mrb[0].mxu0
        %2596 = vdwg.mxu0
        %v2597 = vmax.f32 %v2439, 0.0
        %v2598 = vmax.f32 %v2444, 0.0
        %v2599 = vmax.f32 %v2449, 0.0
        %v2600 = vmax.f32 %v2454, 0.0
        %v2601 = vmax.f32 %v2459, 0.0
        %v2602 = vmax.f32 %v2464, 0.0
        %v2603 = vmax.f32 %v2469, 0.0
        %v2604 = vmax.f32 %v2474, 0.0
        %v2605 = vmax.f32 %v2479, 0.0
        %v2606 = vmax.f32 %v2484, 0.0
        %v2607 = vmax.f32 %v2489, 0.0
        %v2608 = vmax.f32 %v2494, 0.0
        %v2609 = vmax.f32 %v2499, 0.0
        %v2610 = vmax.f32 %v2504, 0.0
        %v2611 = vmax.f32 %v2509, 0.0
        %v2612 = vmax.f32 %v2514, 0.0
        %v2613 = vmax.f32 %v2519, 0.0
        %v2614 = vmax.f32 %v2524, 0.0
        %v2615 = vmax.f32 %v2529, 0.0
        %v2616 = vmax.f32 %v2534, 0.0
        %v2617 = vmax.f32 %v2539, 0.0
        %v2618 = vmax.f32 %v2544, 0.0
        %v2619 = vmax.f32 %v2549, 0.0
        %v2620 = vmax.f32 %v2554, 0.0
        %v2621 = vmax.f32 %v2559, 0.0
        %v2622 = vmax.f32 %v2564, 0.0
        %v2623 = vmax.f32 %v2569, 0.0
        %v2624 = vmax.f32 %v2574, 0.0
        %v2625 = vmax.f32 %v2579, 0.0
        %v2626 = vmax.f32 %v2584, 0.0
        %v2627 = vmax.f32 %v2589, 0.0
        %v2628 = vmax.f32 %v2594, 0.0
        %v2629 = vsel %vm331, %v2597, 0.0
        %v2630 = vsel %vm331, %v2598, 0.0
        %v2631 = vadd.f32 %v2629, %v2630
        %v2632 = vsel %vm331, %v2599, 0.0
        %v2633 = vadd.f32 %v2631, %v2632
        %v2634 = vsel %vm331, %v2600, 0.0
        %v2635 = vadd.f32 %v2633, %v2634
        %v2636 = vsel %vm331, %v2601, 0.0
        %v2637 = vadd.f32 %v2635, %v2636
        %v2638 = vsel %vm331, %v2602, 0.0
        %v2639 = vadd.f32 %v2637, %v2638
        %v2640 = vsel %vm331, %v2603, 0.0
        %v2641 = vadd.f32 %v2639, %v2640
        %v2642 = vsel %vm331, %v2604, 0.0
        %v2643 = vadd.f32 %v2641, %v2642
        %v2644 = vsel %vm331, %v2605, 0.0
        %v2645 = vadd.f32 %v2643, %v2644
        %v2646 = vsel %vm331, %v2606, 0.0
        %v2647 = vadd.f32 %v2645, %v2646
        %v2648 = vsel %vm331, %v2607, 0.0
        %v2649 = vadd.f32 %v2647, %v2648
        %v2650 = vsel %vm331, %v2608, 0.0
        %v2651 = vadd.f32 %v2649, %v2650
        %v2652 = vsel %vm331, %v2609, 0.0
        %v2653 = vadd.f32 %v2651, %v2652
        %v2654 = vsel %vm331, %v2610, 0.0
        %v2655 = vadd.f32 %v2653, %v2654
        %v2656 = vsel %vm331, %v2611, 0.0
        %v2657 = vadd.f32 %v2655, %v2656
        %v2658 = vsel %vm331, %v2612, 0.0
        %v2659 = vadd.f32 %v2657, %v2658
        %v2660 = vsel %vm331, %v2613, 0.0
        %v2661 = vadd.f32 %v2659, %v2660
        %v2662 = vsel %vm331, %v2614, 0.0
        %v2663 = vadd.f32 %v2661, %v2662
        %v2664 = vsel %vm331, %v2615, 0.0
        %v2665 = vadd.f32 %v2663, %v2664
        %v2666 = vsel %vm331, %v2616, 0.0
        %v2667 = vadd.f32 %v2665, %v2666
        %v2668 = vsel %vm331, %v2617, 0.0
        %v2669 = vadd.f32 %v2667, %v2668
        %v2670 = vsel %vm331, %v2618, 0.0
        %v2671 = vadd.f32 %v2669, %v2670
        %v2672 = vsel %vm331, %v2619, 0.0
        %v2673 = vadd.f32 %v2671, %v2672
        %v2674 = vsel %vm331, %v2620, 0.0
        %v2675 = vadd.f32 %v2673, %v2674
        %v2676 = vsel %vm331, %v2621, 0.0
        %v2677 = vadd.f32 %v2675, %v2676
        %v2678 = vsel %vm331, %v2622, 0.0
        %v2679 = vadd.f32 %v2677, %v2678
        %v2680 = vsel %vm331, %v2623, 0.0
        %v2681 = vadd.f32 %v2679, %v2680
        %v2682 = vsel %vm331, %v2624, 0.0
        %v2683 = vadd.f32 %v2681, %v2682
        %v2684 = vsel %vm331, %v2625, 0.0
        %v2685 = vadd.f32 %v2683, %v2684
        %v2686 = vsel %vm331, %v2626, 0.0
        %v2687 = vadd.f32 %v2685, %v2686
        %v2688 = vsel %vm331, %v2627, 0.0
        %v2689 = vadd.f32 %v2687, %v2688
        %v2690 = vsel %vm331, %v2628, 0.0
        %v2691 = vadd.f32 %v2689, %v2690
        %v2692 = vrot.slane %v2691, 4
        %v2693 = vadd.f32 %v2691, %v2692
        %v2694 = vrot.slane %v2693, 2
        %v2695 = vadd.f32 %v2693, %v2694
        %v2696 = vrot.slane %v2695, 1
        %v2697 = vadd.f32 %v2695, %v2696
        %v2698 = vrcp.pop 256.0
        %v2699 = vmul.f32 %v2697, %v2698
        %v2700 = vld [vmem:[%s3] sm:$0xff]
        %v2701 = vld [vmem:[%s3 + $0x8] sm:$0xff]
        %v2702 = vld [vmem:[%s3 + $0x10] sm:$0xff]
        %v2703 = vld [vmem:[%s3 + $0x18] sm:$0xff]
        %v2705 = vsel %vm331, %v2699, 0
        %2707 = vmatprep.subr.mxu0 0.0
        %2708 = vmatpush1.msra.mxu0 %v2700
        %2709 = vmatprep.subr.mxu0 0.0
        %2710 = vmatpush1.msra.mxu0 %v2701
        %2711 = vmatprep.subr.mxu0 0.0
        %2712 = vmatpush1.msra.mxu0 %v2702
        %2713 = vmatprep.subr.mxu0 0.0
        %2714 = vmatpush1.msra.mxu0 %v2703
        %2715 = vmatprep.subr.mxu0 0.0
        %2716 = vmatpush1.msra.mxu0 0.0
        %2717 = vmatprep.subr.mxu0 0.0
        %2718 = vmatpush1.msra.mxu0 0.0
        %2719 = vmatprep.subr.mxu0 0.0
        %2720 = vmatpush1.msra.mxu0 0.0
        %2721 = vmatprep.subr.mxu0 0.0
        %2722 = vmatpush1.msra.mxu0 0.0
        %2723 = vmatprep.subr.mxu0 0.0
        %2724 = vmatpush1.msra.mxu0 0.0
        %2725 = vmatprep.subr.mxu0 0.0
        %2726 = vmatpush1.msra.mxu0 0.0
        %2727 = vmatprep.subr.mxu0 0.0
        %2728 = vmatpush1.msra.mxu0 0.0
        %2729 = vmatprep.subr.mxu0 0.0
        %2730 = vmatpush1.msra.mxu0 0.0
        %2731 = vmatprep.subr.mxu0 0.0
        %2732 = vmatpush1.msra.mxu0 0.0
        %2733 = vmatprep.subr.mxu0 0.0
        %2734 = vmatpush1.msra.mxu0 0.0
        %2735 = vmatprep.subr.mxu0 0.0
        %2736 = vmatpush1.msra.mxu0 0.0
        %2737 = vmatprep.subr.mxu0 0.0
        %2738 = vmatpush1.msra.mxu0 0.0
        %2739 = vmatprep.subr.mxu0 0.0
        %2740 = vmatpush1.msra.mxu0 0.0
        %2741 = vmatprep.subr.mxu0 0.0
        %2742 = vmatpush1.msra.mxu0 0.0
        %2743 = vmatprep.subr.mxu0 0.0
        %2744 = vmatpush1.msra.mxu0 0.0
        %2745 = vmatprep.subr.mxu0 0.0
        %2746 = vmatpush1.msra.mxu0 0.0
        %2747 = vmatprep.subr.mxu0 0.0
        %2748 = vmatpush1.msra.mxu0 0.0
        %2749 = vmatprep.subr.mxu0 0.0
        %2750 = vmatpush1.msra.mxu0 0.0
        %2751 = vmatprep.subr.mxu0 0.0
        %2752 = vmatpush1.msra.mxu0 0.0
        %2753 = vmatprep.subr.mxu0 0.0
        %2754 = vmatpush1.msra.mxu0 0.0
        %2755 = vmatprep.subr.mxu0 0.0
        %2756 = vmatpush1.msra.mxu0 0.0
        %2757 = vmatprep.subr.mxu0 0.0
        %2758 = vmatpush1.msra.mxu0 0.0
        %2759 = vmatprep.subr.mxu0 0.0
        %2760 = vmatpush1.msra.mxu0 0.0
        %2761 = vmatprep.subr.mxu0 0.0
        %2762 = vmatpush1.msra.mxu0 0.0
        %2763 = vmatprep.subr.mxu0 0.0
        %2764 = vmatpush1.msra.mxu0 0.0
        %2765 = vmatprep.subr.mxu0 0.0
        %2766 = vmatpush1.msra.mxu0 0.0
        %2767 = vmatprep.subr.mxu0 0.0
        %2768 = vmatpush1.msra.mxu0 0.0
        %2769 = vmatprep.subr.mxu0 0.0
        %2770 = vmatpush1.msra.mxu0 0.0
        %2771 = vmatprep.mubr.f32.mxu0 0.0
        %2772 = vmatmul.mubr.f32.gmra.mrb[0].mxu0 %v2705
        %v2773 = vpop.f32.mrb[0].mxu0
        %v2774 = vadd.f32 0.0, %v2773
        %v2775 = vpop.f32.mrb[0].mxu0
        %2776 = vdwg.mxu0
        %v2777 = vmax.f32 %v2774, 0.0
        %v2778 = vld [vmem:[%s4] sm:$0xff]
        %vm2779 = vcmask 64512
        %v2781 = vsel %vm2779, %v2777, 0
        %2783 = vmatprep.subr.mxu0 0.0
        %2784 = vmatpush1.msra.mxu0 %v2778
        %2785 = vmatprep.subr.mxu0 0.0
        %2786 = vmatpush1.msra.mxu0 0.0
        %2787 = vmatprep.subr.mxu0 0.0
        %2788 = vmatpush1.msra.mxu0 0.0
        %2789 = vmatprep.subr.mxu0 0.0
        %2790 = vmatpush1.msra.mxu0 0.0
        %2791 = vmatprep.subr.mxu0 0.0
        %2792 = vmatpush1.msra.mxu0 0.0
        %2793 = vmatprep.subr.mxu0 0.0
        %2794 = vmatpush1.msra.mxu0 0.0
        %2795 = vmatprep.subr.mxu0 0.0
        %2796 = vmatpush1.msra.mxu0 0.0
        %2797 = vmatprep.subr.mxu0 0.0
        %2798 = vmatpush1.msra.mxu0 0.0
        %2799 = vmatprep.subr.mxu0 0.0
        %2800 = vmatpush1.msra.mxu0 0.0
        %2801 = vmatprep.subr.mxu0 0.0
        %2802 = vmatpush1.msra.mxu0 0.0
        %2803 = vmatprep.subr.mxu0 0.0
        %2804 = vmatpush1.msra.mxu0 0.0
        %2805 = vmatprep.subr.mxu0 0.0
        %2806 = vmatpush1.msra.mxu0 0.0
        %2807 = vmatprep.subr.mxu0 0.0
        %2808 = vmatpush1.msra.mxu0 0.0
        %2809 = vmatprep.subr.mxu0 0.0
        %2810 = vmatpush1.msra.mxu0 0.0
        %2811 = vmatprep.subr.mxu0 0.0
        %2812 = vmatpush1.msra.mxu0 0.0
        %2813 = vmatprep.subr.mxu0 0.0
        %2814 = vmatpush1.msra.mxu0 0.0
        %2815 = vmatprep.subr.mxu0 0.0
        %2816 = vmatpush1.msra.mxu0 0.0
        %2817 = vmatprep.subr.mxu0 0.0
        %2818 = vmatpush1.msra.mxu0 0.0
        %2819 = vmatprep.subr.mxu0 0.0
        %2820 = vmatpush1.msra.mxu0 0.0
        %2821 = vmatprep.subr.mxu0 0.0
        %2822 = vmatpush1.msra.mxu0 0.0
        %2823 = vmatprep.subr.mxu0 0.0
        %2824 = vmatpush1.msra.mxu0 0.0
        %2825 = vmatprep.subr.mxu0 0.0
        %2826 = vmatpush1.msra.mxu0 0.0
        %2827 = vmatprep.subr.mxu0 0.0
        %2828 = vmatpush1.msra.mxu0 0.0
        %2829 = vmatprep.subr.mxu0 0.0
        %2830 = vmatpush1.msra.mxu0 0.0
        %2831 = vmatprep.subr.mxu0 0.0
        %2832 = vmatpush1.msra.mxu0 0.0
        %2833 = vmatprep.subr.mxu0 0.0
        %2834 = vmatpush1.msra.mxu0 0.0
        %2835 = vmatprep.subr.mxu0 0.0
        %2836 = vmatpush1.msra.mxu0 0.0
        %2837 = vmatprep.subr.mxu0 0.0
        %2838 = vmatpush1.msra.mxu0 0.0
        %2839 = vmatprep.subr.mxu0 0.0
        %2840 = vmatpush1.msra.mxu0 0.0
        %2841 = vmatprep.subr.mxu0 0.0
        %2842 = vmatpush1.msra.mxu0 0.0
        %2843 = vmatprep.subr.mxu0 0.0
        %2844 = vmatpush1.msra.mxu0 0.0
        %2845 = vmatprep.subr.mxu0 0.0
        %2846 = vmatpush1.msra.mxu0 0.0
        %2847 = vmatprep.mubr.f32.mxu0 0.0
        %2848 = vmatmul.mubr.f32.gmra.mrb[0].mxu0 %v2781
        %v2849 = vpop.f32.mrb[0].mxu0
        %v2850 = vadd.f32 0.0, %v2849
        %v2851 = vpop.f32.mrb[0].mxu0
        %2852 = vdwg.mxu0
        %v2853 = vsub.f32 0.0, %v2850
        %v2854 = vmul.f32 %v2853, 1.442695
        %v2855 = vpow.pop %v2854
        %v2856 = vadd.f32 %v2855, 1.0
        %v2857 = vrcp.pop %v2856
        %vm2858 = vcmp.gt.f32.partialorder %v2597, 0.0
        %vm2859 = vcmp.gt.f32.partialorder %v2598, 0.0
        %vm2860 = vcmp.gt.f32.partialorder %v2599, 0.0
        %vm2861 = vcmp.gt.f32.partialorder %v2600, 0.0
        %vm2862 = vcmp.gt.f32.partialorder %v2601, 0.0
        %vm2863 = vcmp.gt.f32.partialorder %v2602, 0.0
        %vm2864 = vcmp.gt.f32.partialorder %v2603, 0.0
        %vm2865 = vcmp.gt.f32.partialorder %v2604, 0.0
        %vm2866 = vcmp.gt.f32.partialorder %v2605, 0.0
        %vm2867 = vcmp.gt.f32.partialorder %v2606, 0.0
        %vm2868 = vcmp.gt.f32.partialorder %v2607, 0.0
        %vm2869 = vcmp.gt.f32.partialorder %v2608, 0.0
        %vm2870 = vcmp.gt.f32.partialorder %v2609, 0.0
        %vm2871 = vcmp.gt.f32.partialorder %v2610, 0.0
        %vm2872 = vcmp.gt.f32.partialorder %v2611, 0.0
        %vm2873 = vcmp.gt.f32.partialorder %v2612, 0.0
        %vm2874 = vcmp.gt.f32.partialorder %v2613, 0.0
        %vm2875 = vcmp.gt.f32.partialorder %v2614, 0.0
        %vm2876 = vcmp.gt.f32.partialorder %v2615, 0.0
        %vm2877 = vcmp.gt.f32.partialorder %v2616, 0.0
        %vm2878 = vcmp.gt.f32.partialorder %v2617, 0.0
        %vm2879 = vcmp.gt.f32.partialorder %v2618, 0.0
        %vm2880 = vcmp.gt.f32.partialorder %v2619, 0.0
        %vm2881 = vcmp.gt.f32.partialorder %v2620, 0.0
        %vm2882 = vcmp.gt.f32.partialorder %v2621, 0.0
        %vm2883 = vcmp.gt.f32.partialorder %v2622, 0.0
        %vm2884 = vcmp.gt.f32.partialorder %v2623, 0.0
        %vm2885 = vcmp.gt.f32.partialorder %v2624, 0.0
        %vm2886 = vcmp.gt.f32.partialorder %v2625, 0.0
        %vm2887 = vcmp.gt.f32.partialorder %v2626, 0.0
        %vm2888 = vcmp.gt.f32.partialorder %v2627, 0.0
        %vm2889 = vcmp.gt.f32.partialorder %v2628, 0.0
        %v2890 = vsel %vm2858, 1, 0
        %v2891 = vsel %vm2859, 1, 0
        %v2892 = vsel %vm2860, 1, 0
        %v2893 = vsel %vm2861, 1, 0
        %v2894 = vsel %vm2862, 1, 0
        %v2895 = vsel %vm2863, 1, 0
        %v2896 = vsel %vm2864, 1, 0
        %v2897 = vsel %vm2865, 1, 0
        %v2898 = vsel %vm2866, 1, 0
        %v2899 = vsel %vm2867, 1, 0
        %v2900 = vsel %vm2868, 1, 0
        %v2901 = vsel %vm2869, 1, 0
        %v2902 = vsel %vm2870, 1, 0
        %v2903 = vsel %vm2871, 1, 0
        %v2904 = vsel %vm2872, 1, 0
        %v2905 = vsel %vm2873, 1, 0
        %v2906 = vsel %vm2874, 1, 0
        %v2907 = vsel %vm2875, 1, 0
        %v2908 = vsel %vm2876, 1, 0
        %v2909 = vsel %vm2877, 1, 0
        %v2910 = vsel %vm2878, 1, 0
        %v2911 = vsel %vm2879, 1, 0
        %v2912 = vsel %vm2880, 1, 0
        %v2913 = vsel %vm2881, 1, 0
        %v2914 = vsel %vm2882, 1, 0
        %v2915 = vsel %vm2883, 1, 0
        %v2916 = vsel %vm2884, 1, 0
        %v2917 = vsel %vm2885, 1, 0
        %v2918 = vsel %vm2886, 1, 0
        %v2919 = vsel %vm2887, 1, 0
        %v2920 = vsel %vm2888, 1, 0
        %v2921 = vsel %vm2889, 1, 0
        %v2922 = vcvt.s32.f32 %v2890
        %v2923 = vcvt.s32.f32 %v2891
        %v2924 = vcvt.s32.f32 %v2892
        %v2925 = vcvt.s32.f32 %v2893
        %v2926 = vcvt.s32.f32 %v2894
        %v2927 = vcvt.s32.f32 %v2895
        %v2928 = vcvt.s32.f32 %v2896
        %v2929 = vcvt.s32.f32 %v2897
        %v2930 = vcvt.s32.f32 %v2898
        %v2931 = vcvt.s32.f32 %v2899
        %v2932 = vcvt.s32.f32 %v2900
        %v2933 = vcvt.s32.f32 %v2901
        %v2934 = vcvt.s32.f32 %v2902
        %v2935 = vcvt.s32.f32 %v2903
        %v2936 = vcvt.s32.f32 %v2904
        %v2937 = vcvt.s32.f32 %v2905
        %v2938 = vcvt.s32.f32 %v2906
        %v2939 = vcvt.s32.f32 %v2907
        %v2940 = vcvt.s32.f32 %v2908
        %v2941 = vcvt.s32.f32 %v2909
        %v2942 = vcvt.s32.f32 %v2910
        %v2943 = vcvt.s32.f32 %v2911
        %v2944 = vcvt.s32.f32 %v2912
        %v2945 = vcvt.s32.f32 %v2913
        %v2946 = vcvt.s32.f32 %v2914
        %v2947 = vcvt.s32.f32 %v2915
        %v2948 = vcvt.s32.f32 %v2916
        %v2949 = vcvt.s32.f32 %v2917
        %v2950 = vcvt.s32.f32 %v2918
        %v2951 = vcvt.s32.f32 %v2919
        %v2952 = vcvt.s32.f32 %v2920
        %v2953 = vcvt.s32.f32 %v2921
        %v2954 = vsel %vm331, %v2922, 0.0
        %v2955 = vsel %vm331, %v2923, 0.0
        %v2956 = vadd.f32 %v2954, %v2955
        %v2957 = vsel %vm331, %v2924, 0.0
        %v2958 = vadd.f32 %v2956, %v2957
        %v2959 = vsel %vm331, %v2925, 0.0
        %v2960 = vadd.f32 %v2958, %v2959
        %v2961 = vsel %vm331, %v2926, 0.0
        %v2962 = vadd.f32 %v2960, %v2961
        %v2963 = vsel %vm331, %v2927, 0.0
        %v2964 = vadd.f32 %v2962, %v2963
        %v2965 = vsel %vm331, %v2928, 0.0
        %v2966 = vadd.f32 %v2964, %v2965
        %v2967 = vsel %vm331, %v2929, 0.0
        %v2968 = vadd.f32 %v2966, %v2967
        %v2969 = vsel %vm331, %v2930, 0.0
        %v2970 = vadd.f32 %v2968, %v2969
        %v2971 = vsel %vm331, %v2931, 0.0
        %v2972 = vadd.f32 %v2970, %v2971
        %v2973 = vsel %vm331, %v2932, 0.0
        %v2974 = vadd.f32 %v2972, %v2973
        %v2975 = vsel %vm331, %v2933, 0.0
        %v2976 = vadd.f32 %v2974, %v2975
        %v2977 = vsel %vm331, %v2934, 0.0
        %v2978 = vadd.f32 %v2976, %v2977
        %v2979 = vsel %vm331, %v2935, 0.0
        %v2980 = vadd.f32 %v2978, %v2979
        %v2981 = vsel %vm331, %v2936, 0.0
        %v2982 = vadd.f32 %v2980, %v2981
        %v2983 = vsel %vm331, %v2937, 0.0
        %v2984 = vadd.f32 %v2982, %v2983
        %v2985 = vsel %vm331, %v2938, 0.0
        %v2986 = vadd.f32 %v2984, %v2985
        %v2987 = vsel %vm331, %v2939, 0.0
        %v2988 = vadd.f32 %v2986, %v2987
        %v2989 = vsel %vm331, %v2940, 0.0
        %v2990 = vadd.f32 %v2988, %v2989
        %v2991 = vsel %vm331, %v2941, 0.0
        %v2992 = vadd.f32 %v2990, %v2991
        %v2993 = vsel %vm331, %v2942, 0.0
        %v2994 = vadd.f32 %v2992, %v2993
        %v2995 = vsel %vm331, %v2943, 0.0
        %v2996 = vadd.f32 %v2994, %v2995
        %v2997 = vsel %vm331, %v2944, 0.0
        %v2998 = vadd.f32 %v2996, %v2997
        %v2999 = vsel %vm331, %v2945, 0.0
        %v3000 = vadd.f32 %v2998, %v2999
        %v3001 = vsel %vm331, %v2946, 0.0
        %v3002 = vadd.f32 %v3000, %v3001
        %v3003 = vsel %vm331, %v2947, 0.0
        %v3004 = vadd.f32 %v3002, %v3003
        %v3005 = vsel %vm331, %v2948, 0.0
        %v3006 = vadd.f32 %v3004, %v3005
        %v3007 = vsel %vm331, %v2949, 0.0
        %v3008 = vadd.f32 %v3006, %v3007
        %v3009 = vsel %vm331, %v2950, 0.0
        %v3010 = vadd.f32 %v3008, %v3009
        %v3011 = vsel %vm331, %v2951, 0.0
        %v3012 = vadd.f32 %v3010, %v3011
        %v3013 = vsel %vm331, %v2952, 0.0
        %v3014 = vadd.f32 %v3012, %v3013
        %v3015 = vsel %vm331, %v2953, 0.0
        %v3016 = vadd.f32 %v3014, %v3015
        %v3017 = vrot.slane %v3016, 4
        %v3018 = vadd.f32 %v3016, %v3017
        %v3019 = vrot.slane %v3018, 2
        %v3020 = vadd.f32 %v3018, %v3019
        %v3021 = vrot.slane %v3020, 1
        %v3022 = vadd.f32 %v3020, %v3021
        %v3023 = vmul.f32 %v3022, 0.00390625
        %v3024 = vsel %vm331, %v3023, 0.0
        %3025 = vadd.xlane.f32.xlu0 %v3024
        %v3026 = vpop.xlane.xlu0 %3025
        %v3027 = vadd.f32 %v3026, 0.0032
        %v3028 = vadd.f32 %v3023, 0.0001
        %v3029 = vrcp.pop %v3028
        %v3030 = vmul.f32 %v3027, %v3029
        %v3031 = vlog2.pop %v3030
        %v3032 = vmul.f32 %v3031, 0.6931472
        %v3033 = vld [vmem:[%s5] sm:$0xff]
        %v3034 = vld [vmem:[%s5 + $0x8] sm:$0xff]
        %v3035 = vld [vmem:[%s5 + $0x10] sm:$0xff]
        %v3036 = vld [vmem:[%s5 + $0x18] sm:$0xff]
        %v3038 = vsel %vm331, %v3032, 0
        %3040 = vmatprep.subr.mxu0 0.0
        %3041 = vmatpush1.msra.mxu0 %v3033
        %3042 = vmatprep.subr.mxu0 0.0
        %3043 = vmatpush1.msra.mxu0 %v3034
        %3044 = vmatprep.subr.mxu0 0.0
        %3045 = vmatpush1.msra.mxu0 %v3035
        %3046 = vmatprep.subr.mxu0 0.0
        %3047 = vmatpush1.msra.mxu0 %v3036
        %3048 = vmatprep.subr.mxu0 0.0
        %3049 = vmatpush1.msra.mxu0 0.0
        %3050 = vmatprep.subr.mxu0 0.0
        %3051 = vmatpush1.msra.mxu0 0.0
        %3052 = vmatprep.subr.mxu0 0.0
        %3053 = vmatpush1.msra.mxu0 0.0
        %3054 = vmatprep.subr.mxu0 0.0
        %3055 = vmatpush1.msra.mxu0 0.0
        %3056 = vmatprep.subr.mxu0 0.0
        %3057 = vmatpush1.msra.mxu0 0.0
        %3058 = vmatprep.subr.mxu0 0.0
        %3059 = vmatpush1.msra.mxu0 0.0
        %3060 = vmatprep.subr.mxu0 0.0
        %3061 = vmatpush1.msra.mxu0 0.0
        %3062 = vmatprep.subr.mxu0 0.0
        %3063 = vmatpush1.msra.mxu0 0.0
        %3064 = vmatprep.subr.mxu0 0.0
        %3065 = vmatpush1.msra.mxu0 0.0
        %3066 = vmatprep.subr.mxu0 0.0
        %3067 = vmatpush1.msra.mxu0 0.0
        %3068 = vmatprep.subr.mxu0 0.0
        %3069 = vmatpush1.msra.mxu0 0.0
        %3070 = vmatprep.subr.mxu0 0.0
        %3071 = vmatpush1.msra.mxu0 0.0
        %3072 = vmatprep.subr.mxu0 0.0
        %3073 = vmatpush1.msra.mxu0 0.0
        %3074 = vmatprep.subr.mxu0 0.0
        %3075 = vmatpush1.msra.mxu0 0.0
        %3076 = vmatprep.subr.mxu0 0.0
        %3077 = vmatpush1.msra.mxu0 0.0
        %3078 = vmatprep.subr.mxu0 0.0
        %3079 = vmatpush1.msra.mxu0 0.0
        %3080 = vmatprep.subr.mxu0 0.0
        %3081 = vmatpush1.msra.mxu0 0.0
        %3082 = vmatprep.subr.mxu0 0.0
        %3083 = vmatpush1.msra.mxu0 0.0
        %3084 = vmatprep.subr.mxu0 0.0
        %3085 = vmatpush1.msra.mxu0 0.0
        %3086 = vmatprep.subr.mxu0 0.0
        %3087 = vmatpush1.msra.mxu0 0.0
        %3088 = vmatprep.subr.mxu0 0.0
        %3089 = vmatpush1.msra.mxu0 0.0
        %3090 = vmatprep.subr.mxu0 0.0
        %3091 = vmatpush1.msra.mxu0 0.0
        %3092 = vmatprep.subr.mxu0 0.0
        %3093 = vmatpush1.msra.mxu0 0.0
        %3094 = vmatprep.subr.mxu0 0.0
        %3095 = vmatpush1.msra.mxu0 0.0
        %3096 = vmatprep.subr.mxu0 0.0
        %3097 = vmatpush1.msra.mxu0 0.0
        %3098 = vmatprep.subr.mxu0 0.0
        %3099 = vmatpush1.msra.mxu0 0.0
        %3100 = vmatprep.subr.mxu0 0.0
        %3101 = vmatpush1.msra.mxu0 0.0
        %3102 = vmatprep.subr.mxu0 0.0
        %3103 = vmatpush1.msra.mxu0 0.0
        %3104 = vmatprep.mubr.f32.mxu0 0.0
        %3105 = vmatmul.mubr.f32.gmra.mrb[0].mxu0 %v3038
        %v3106 = vpop.f32.mrb[0].mxu0
        %v3107 = vadd.f32 0.0, %v3106
        %v3108 = vpop.f32.mrb[0].mxu0
        %3109 = vdwg.mxu0
        %v3110 = vmax.f32 %v3107, 0.0
        %v3111 = vld [vmem:[%s6] sm:$0xff]
        %v3113 = vsel %vm2779, %v3110, 0
        %3115 = vmatprep.subr.mxu0 0.0
        %3116 = vmatpush1.msra.mxu0 %v3111
        %3117 = vmatprep.subr.mxu0 0.0
        %3118 = vmatpush1.msra.mxu0 0.0
        %3119 = vmatprep.subr.mxu0 0.0
        %3120 = vmatpush1.msra.mxu0 0.0
        %3121 = vmatprep.subr.mxu0 0.0
        %3122 = vmatpush1.msra.mxu0 0.0
        %3123 = vmatprep.subr.mxu0 0.0
        %3124 = vmatpush1.msra.mxu0 0.0
        %3125 = vmatprep.subr.mxu0 0.0
        %3126 = vmatpush1.msra.mxu0 0.0
        %3127 = vmatprep.subr.mxu0 0.0
        %3128 = vmatpush1.msra.mxu0 0.0
        %3129 = vmatprep.subr.mxu0 0.0
        %3130 = vmatpush1.msra.mxu0 0.0
        %3131 = vmatprep.subr.mxu0 0.0
        %3132 = vmatpush1.msra.mxu0 0.0
        %3133 = vmatprep.subr.mxu0 0.0
        %3134 = vmatpush1.msra.mxu0 0.0
        %3135 = vmatprep.subr.mxu0 0.0
        %3136 = vmatpush1.msra.mxu0 0.0
        %3137 = vmatprep.subr.mxu0 0.0
        %3138 = vmatpush1.msra.mxu0 0.0
        %3139 = vmatprep.subr.mxu0 0.0
        %3140 = vmatpush1.msra.mxu0 0.0
        %3141 = vmatprep.subr.mxu0 0.0
        %3142 = vmatpush1.msra.mxu0 0.0
        %3143 = vmatprep.subr.mxu0 0.0
        %3144 = vmatpush1.msra.mxu0 0.0
        %3145 = vmatprep.subr.mxu0 0.0
        %3146 = vmatpush1.msra.mxu0 0.0
        %3147 = vmatprep.subr.mxu0 0.0
        %3148 = vmatpush1.msra.mxu0 0.0
        %3149 = vmatprep.subr.mxu0 0.0
        %3150 = vmatpush1.msra.mxu0 0.0
        %3151 = vmatprep.subr.mxu0 0.0
        %3152 = vmatpush1.msra.mxu0 0.0
        %3153 = vmatprep.subr.mxu0 0.0
        %3154 = vmatpush1.msra.mxu0 0.0
        %3155 = vmatprep.subr.mxu0 0.0
        %3156 = vmatpush1.msra.mxu0 0.0
        %3157 = vmatprep.subr.mxu0 0.0
        %3158 = vmatpush1.msra.mxu0 0.0
        %3159 = vmatprep.subr.mxu0 0.0
        %3160 = vmatpush1.msra.mxu0 0.0
        %3161 = vmatprep.subr.mxu0 0.0
        %3162 = vmatpush1.msra.mxu0 0.0
        %3163 = vmatprep.subr.mxu0 0.0
        %3164 = vmatpush1.msra.mxu0 0.0
        %3165 = vmatprep.subr.mxu0 0.0
        %3166 = vmatpush1.msra.mxu0 0.0
        %3167 = vmatprep.subr.mxu0 0.0
        %3168 = vmatpush1.msra.mxu0 0.0
        %3169 = vmatprep.subr.mxu0 0.0
        %3170 = vmatpush1.msra.mxu0 0.0
        %3171 = vmatprep.subr.mxu0 0.0
        %3172 = vmatpush1.msra.mxu0 0.0
        %3173 = vmatprep.subr.mxu0 0.0
        %3174 = vmatpush1.msra.mxu0 0.0
        %3175 = vmatprep.subr.mxu0 0.0
        %3176 = vmatpush1.msra.mxu0 0.0
        %3177 = vmatprep.subr.mxu0 0.0
        %3178 = vmatpush1.msra.mxu0 0.0
        %3179 = vmatprep.mubr.f32.mxu0 0.0
        %3180 = vmatmul.mubr.f32.gmra.mrb[0].mxu0 %v3113
        %v3181 = vpop.f32.mrb[0].mxu0
        %v3182 = vadd.f32 0.0, %v3181
        %v3183 = vpop.f32.mrb[0].mxu0
        %3184 = vdwg.mxu0
        %v3185 = vsub.f32 0.0, %v3182
        %v3186 = vmul.f32 %v3185, 1.442695
        %v3187 = vpow.pop %v3186
        %v3188 = vadd.f32 %v3187, 1.0
        %v3189 = vrcp.pop %v3188
        %v3190 = vadd.f32 %v2857, %v3189
        %v3191 = vlaneseq
        %v3192 = vshrl.u32 %v3191, 7
        %v3193 = vsub.s32 0, %v3192
        %v3194 = vrot.slane %v3190, %v3193
        %v3195 = vmul.f32 %v2597, %v3194
        %v3196 = vmul.f32 %v2598, %v3194
        %v3197 = vmul.f32 %v2599, %v3194
        %v3198 = vmul.f32 %v2600, %v3194
        %v3199 = vmul.f32 %v2601, %v3194
        %v3200 = vmul.f32 %v2602, %v3194
        %v3201 = vmul.f32 %v2603, %v3194
        %v3202 = vmul.f32 %v2604, %v3194
        %v3203 = vmul.f32 %v2605, %v3194
        %v3204 = vmul.f32 %v2606, %v3194
        %v3205 = vmul.f32 %v2607, %v3194
        %v3206 = vmul.f32 %v2608, %v3194
        %v3207 = vmul.f32 %v2609, %v3194
        %v3208 = vmul.f32 %v2610, %v3194
        %v3209 = vmul.f32 %v2611, %v3194
        %v3210 = vmul.f32 %v2612, %v3194
        %v3211 = vmul.f32 %v2613, %v3194
        %v3212 = vmul.f32 %v2614, %v3194
        %v3213 = vmul.f32 %v2615, %v3194
        %v3214 = vmul.f32 %v2616, %v3194
        %v3215 = vmul.f32 %v2617, %v3194
        %v3216 = vmul.f32 %v2618, %v3194
        %v3217 = vmul.f32 %v2619, %v3194
        %v3218 = vmul.f32 %v2620, %v3194
        %v3219 = vmul.f32 %v2621, %v3194
        %v3220 = vmul.f32 %v2622, %v3194
        %v3221 = vmul.f32 %v2623, %v3194
        %v3222 = vmul.f32 %v2624, %v3194
        %v3223 = vmul.f32 %v2625, %v3194
        %v3224 = vmul.f32 %v2626, %v3194
        %v3225 = vmul.f32 %v2627, %v3194
        %v3226 = vmul.f32 %v2628, %v3194
        %3227 = vst.msk [vmem:[%s436 + $0x8] sm:$0xff] %vm331, %v3195
        %3228 = vst.msk [vmem:[%s436 + $0x10] sm:$0xff] %vm331, %v3196
        %3229 = vst.msk [vmem:[%s436 + $0x28] sm:$0xff] %vm331, %v3197
        %3230 = vst.msk [vmem:[%s436 + $0x30] sm:$0xff] %vm331, %v3198
        %3231 = vst.msk [vmem:[%s436 + $0x48] sm:$0xff] %vm331, %v3199
        %3232 = vst.msk [vmem:[%s436 + $0x50] sm:$0xff] %vm331, %v3200
        %3233 = vst.msk [vmem:[%s436 + $0x68] sm:$0xff] %vm331, %v3201
        %3234 = vst.msk [vmem:[%s436 + $0x70] sm:$0xff] %vm331, %v3202
        %3235 = vst.msk [vmem:[%s436 + $0x88] sm:$0xff] %vm331, %v3203
        %3236 = vst.msk [vmem:[%s436 + $0x90] sm:$0xff] %vm331, %v3204
        %3237 = vst.msk [vmem:[%s436 + $0xa8] sm:$0xff] %vm331, %v3205
        %3238 = vst.msk [vmem:[%s436 + $0xb0] sm:$0xff] %vm331, %v3206
        %3239 = vst.msk [vmem:[%s436 + $0xc8] sm:$0xff] %vm331, %v3207
        %3240 = vst.msk [vmem:[%s436 + $0xd0] sm:$0xff] %vm331, %v3208
        %3241 = vst.msk [vmem:[%s436 + $0xe8] sm:$0xff] %vm331, %v3209
        %3242 = vst.msk [vmem:[%s436 + $0xf0] sm:$0xff] %vm331, %v3210
        %3243 = vst.msk [vmem:[%s436 + $0x108] sm:$0xff] %vm331, %v3211
        %3244 = vst.msk [vmem:[%s436 + $0x110] sm:$0xff] %vm331, %v3212
        %3245 = vst.msk [vmem:[%s436 + $0x128] sm:$0xff] %vm331, %v3213
        %3246 = vst.msk [vmem:[%s436 + $0x130] sm:$0xff] %vm331, %v3214
        %3247 = vst.msk [vmem:[%s436 + $0x148] sm:$0xff] %vm331, %v3215
        %3248 = vst.msk [vmem:[%s436 + $0x150] sm:$0xff] %vm331, %v3216
        %3249 = vst.msk [vmem:[%s436 + $0x168] sm:$0xff] %vm331, %v3217
        %3250 = vst.msk [vmem:[%s436 + $0x170] sm:$0xff] %vm331, %v3218
        %3251 = vst.msk [vmem:[%s436 + $0x188] sm:$0xff] %vm331, %v3219
        %3252 = vst.msk [vmem:[%s436 + $0x190] sm:$0xff] %vm331, %v3220
        %3253 = vst.msk [vmem:[%s436 + $0x1a8] sm:$0xff] %vm331, %v3221
        %3254 = vst.msk [vmem:[%s436 + $0x1b0] sm:$0xff] %vm331, %v3222
        %3255 = vst.msk [vmem:[%s436 + $0x1c8] sm:$0xff] %vm331, %v3223
        %3256 = vst.msk [vmem:[%s436 + $0x1d0] sm:$0xff] %vm331, %v3224
        %3257 = vst.msk [vmem:[%s436 + $0x1e8] sm:$0xff] %vm331, %v3225
        %3258 = vst.msk [vmem:[%s436 + $0x1f0] sm:$0xff] %vm331, %v3226
        %v3259 = vld [vmem:[#allocation2 + $0x7] sm:$0xff]
        %v3260 = vld [vmem:[#allocation2 + $0xf] sm:$0xff]
        %v3261 = vld [vmem:[#allocation2 + $0x27] sm:$0xff]
        %v3262 = vld [vmem:[#allocation2 + $0x2f] sm:$0xff]
        %v3263 = vld [vmem:[#allocation2 + $0x47] sm:$0xff]
        %v3264 = vld [vmem:[#allocation2 + $0x4f] sm:$0xff]
        %v3265 = vld [vmem:[#allocation2 + $0x67] sm:$0xff]
        %v3266 = vld [vmem:[#allocation2 + $0x6f] sm:$0xff]
        %v3267 = vld [vmem:[#allocation2 + $0x87] sm:$0xff]
        %v3268 = vld [vmem:[#allocation2 + $0x8f] sm:$0xff]
        %v3269 = vld [vmem:[#allocation2 + $0xa7] sm:$0xff]
        %v3270 = vld [vmem:[#allocation2 + $0xaf] sm:$0xff]
        %v3271 = vld [vmem:[#allocation2 + $0xc7] sm:$0xff]
        %v3272 = vld [vmem:[#allocation2 + $0xcf] sm:$0xff]
        %v3273 = vld [vmem:[#allocation2 + $0xe7] sm:$0xff]
        %v3274 = vld [vmem:[#allocation2 + $0xef] sm:$0xff]
        %v3275 = vld [vmem:[#allocation2 + $0x107] sm:$0xff]
        %v3276 = vld [vmem:[#allocation2 + $0x10f] sm:$0xff]
        %v3277 = vld [vmem:[#allocation2 + $0x127] sm:$0xff]
        %v3278 = vld [vmem:[#allocation2 + $0x12f] sm:$0xff]
        %v3279 = vld [vmem:[#allocation2 + $0x147] sm:$0xff]
        %v3280 = vld [vmem:[#allocation2 + $0x14f] sm:$0xff]
        %v3281 = vld [vmem:[#allocation2 + $0x167] sm:$0xff]
        %v3282 = vld [vmem:[#allocation2 + $0x16f] sm:$0xff]
        %v3283 = vld [vmem:[#allocation2 + $0x187] sm:$0xff]
        %v3284 = vld [vmem:[#allocation2 + $0x18f] sm:$0xff]
        %v3285 = vld [vmem:[#allocation2 + $0x1a7] sm:$0xff]
        %v3286 = vld [vmem:[#allocation2 + $0x1af] sm:$0xff]
        %v3287 = vld [vmem:[#allocation2 + $0x1c7] sm:$0xff]
        %v3288 = vld [vmem:[#allocation2 + $0x1cf] sm:$0xff]
        %v3289 = vld [vmem:[#allocation2 + $0x1e7] sm:$0xff]
        %v3290 = vld [vmem:[#allocation2 + $0x1ef] sm:$0xff]
        %v3291 = vld [vmem:[#allocation2 + $0x8] sm:$0xff]
        %v3292 = vld [vmem:[#allocation2 + $0x10] sm:$0xff]
        %v3293 = vld [vmem:[#allocation2 + $0x28] sm:$0xff]
        %v3294 = vld [vmem:[#allocation2 + $0x30] sm:$0xff]
        %v3295 = vld [vmem:[#allocation2 + $0x48] sm:$0xff]
        %v3296 = vld [vmem:[#allocation2 + $0x50] sm:$0xff]
        %v3297 = vld [vmem:[#allocation2 + $0x68] sm:$0xff]
        %v3298 = vld [vmem:[#allocation2 + $0x70] sm:$0xff]
        %v3299 = vld [vmem:[#allocation2 + $0x88] sm:$0xff]
        %v3300 = vld [vmem:[#allocation2 + $0x90] sm:$0xff]
        %v3301 = vld [vmem:[#allocation2 + $0xa8] sm:$0xff]
        %v3302 = vld [vmem:[#allocation2 + $0xb0] sm:$0xff]
        %v3303 = vld [vmem:[#allocation2 + $0xc8] sm:$0xff]
        %v3304 = vld [vmem:[#allocation2 + $0xd0] sm:$0xff]
        %v3305 = vld [vmem:[#allocation2 + $0xe8] sm:$0xff]
        %v3306 = vld [vmem:[#allocation2 + $0xf0] sm:$0xff]
        %v3307 = vld [vmem:[#allocation2 + $0x108] sm:$0xff]
        %v3308 = vld [vmem:[#allocation2 + $0x110] sm:$0xff]
        %v3309 = vld [vmem:[#allocation2 + $0x128] sm:$0xff]
        %v3310 = vld [vmem:[#allocation2 + $0x130] sm:$0xff]
        %v3311 = vld [vmem:[#allocation2 + $0x148] sm:$0xff]
        %v3312 = vld [vmem:[#allocation2 + $0x150] sm:$0xff]
        %v3313 = vld [vmem:[#allocation2 + $0x168] sm:$0xff]
        %v3314 = vld [vmem:[#allocation2 + $0x170] sm:$0xff]
        %v3315 = vld [vmem:[#allocation2 + $0x188] sm:$0xff]
        %v3316 = vld [vmem:[#allocation2 + $0x190] sm:$0xff]
        %v3317 = vld [vmem:[#allocation2 + $0x1a8] sm:$0xff]
        %v3318 = vld [vmem:[#allocation2 + $0x1b0] sm:$0xff]
        %v3319 = vld [vmem:[#allocation2 + $0x1c8] sm:$0xff]
        %v3320 = vld [vmem:[#allocation2 + $0x1d0] sm:$0xff]
        %v3321 = vld [vmem:[#allocation2 + $0x1e8] sm:$0xff]
        %v3322 = vld [vmem:[#allocation2 + $0x1f0] sm:$0xff]
        %v3323 = vld [vmem:[#allocation2 + $0x9] sm:$0xff]
        %v3324 = vld [vmem:[#allocation2 + $0x11] sm:$0xff]
        %v3325 = vld [vmem:[#allocation2 + $0x29] sm:$0xff]
        %v3326 = vld [vmem:[#allocation2 + $0x31] sm:$0xff]
        %v3327 = vld [vmem:[#allocation2 + $0x49] sm:$0xff]
        %v3328 = vld [vmem:[#allocation2 + $0x51] sm:$0xff]
        %v3329 = vld [vmem:[#allocation2 + $0x69] sm:$0xff]
        %v3330 = vld [vmem:[#allocation2 + $0x71] sm:$0xff]
        %v3331 = vld [vmem:[#allocation2 + $0x89] sm:$0xff]
        %v3332 = vld [vmem:[#allocation2 + $0x91] sm:$0xff]
        %v3333 = vld [vmem:[#allocation2 + $0xa9] sm:$0xff]
        %v3334 = vld [vmem:[#allocation2 + $0xb1] sm:$0xff]
        %v3335 = vld [vmem:[#allocation2 + $0xc9] sm:$0xff]
        %v3336 = vld [vmem:[#allocation2 + $0xd1] sm:$0xff]
        %v3337 = vld [vmem:[#allocation2 + $0xe9] sm:$0xff]
        %v3338 = vld [vmem:[#allocation2 + $0xf1] sm:$0xff]
        %v3339 = vld [vmem:[#allocation2 + $0x109] sm:$0xff]
        %v3340 = vld [vmem:[#allocation2 + $0x111] sm:$0xff]
        %v3341 = vld [vmem:[#allocation2 + $0x129] sm:$0xff]
        %v3342 = vld [vmem:[#allocation2 + $0x131] sm:$0xff]
        %v3343 = vld [vmem:[#allocation2 + $0x149] sm:$0xff]
        %v3344 = vld [vmem:[#allocation2 + $0x151] sm:$0xff]
        %v3345 = vld [vmem:[#allocation2 + $0x169] sm:$0xff]
        %v3346 = vld [vmem:[#allocation2 + $0x171] sm:$0xff]
        %v3347 = vld [vmem:[#allocation2 + $0x189] sm:$0xff]
        %v3348 = vld [vmem:[#allocation2 + $0x191] sm:$0xff]
        %v3349 = vld [vmem:[#allocation2 + $0x1a9] sm:$0xff]
        %v3350 = vld [vmem:[#allocation2 + $0x1b1] sm:$0xff]
        %v3351 = vld [vmem:[#allocation2 + $0x1c9] sm:$0xff]
        %v3352 = vld [vmem:[#allocation2 + $0x1d1] sm:$0xff]
        %v3353 = vld [vmem:[#allocation2 + $0x1e9] sm:$0xff]
        %v3354 = vld [vmem:[#allocation2 + $0x1f1] sm:$0xff]
        %3387 = vrot.lane.b32.xlu0 %v3291, 32
        %v3388 = vpop.permute.xlu0 %3387
        %3389 = vrot.lane.b32.xlu0 %v3292, 32
        %v3390 = vpop.permute.xlu0 %3389
        %3391 = vrot.lane.b32.xlu0 %v3293, 32
        %v3392 = vpop.permute.xlu0 %3391
        %3393 = vrot.lane.b32.xlu0 %v3294, 32
        %v3394 = vpop.permute.xlu0 %3393
        %3395 = vrot.lane.b32.xlu0 %v3295, 32
        %v3396 = vpop.permute.xlu0 %3395
        %3397 = vrot.lane.b32.xlu0 %v3296, 32
        %v3398 = vpop.permute.xlu0 %3397
        %3399 = vrot.lane.b32.xlu0 %v3297, 32
        %v3400 = vpop.permute.xlu0 %3399
        %3401 = vrot.lane.b32.xlu0 %v3298, 32
        %v3402 = vpop.permute.xlu0 %3401
        %3403 = vrot.lane.b32.xlu0 %v3299, 32
        %v3404 = vpop.permute.xlu0 %3403
        %3405 = vrot.lane.b32.xlu0 %v3300, 32
        %v3406 = vpop.permute.xlu0 %3405
        %3407 = vrot.lane.b32.xlu0 %v3301, 32
        %v3408 = vpop.permute.xlu0 %3407
        %3409 = vrot.lane.b32.xlu0 %v3302, 32
        %v3410 = vpop.permute.xlu0 %3409
        %3411 = vrot.lane.b32.xlu0 %v3303, 32
        %v3412 = vpop.permute.xlu0 %3411
        %3413 = vrot.lane.b32.xlu0 %v3304, 32
        %v3414 = vpop.permute.xlu0 %3413
        %3415 = vrot.lane.b32.xlu0 %v3305, 32
        %v3416 = vpop.permute.xlu0 %3415
        %3417 = vrot.lane.b32.xlu0 %v3306, 32
        %v3418 = vpop.permute.xlu0 %3417
        %3419 = vrot.lane.b32.xlu0 %v3307, 32
        %v3420 = vpop.permute.xlu0 %3419
        %3421 = vrot.lane.b32.xlu0 %v3308, 32
        %v3422 = vpop.permute.xlu0 %3421
        %3423 = vrot.lane.b32.xlu0 %v3309, 32
        %v3424 = vpop.permute.xlu0 %3423
        %3425 = vrot.lane.b32.xlu0 %v3310, 32
        %v3426 = vpop.permute.xlu0 %3425
        %3427 = vrot.lane.b32.xlu0 %v3311, 32
        %v3428 = vpop.permute.xlu0 %3427
        %3429 = vrot.lane.b32.xlu0 %v3312, 32
        %v3430 = vpop.permute.xlu0 %3429
        %3431 = vrot.lane.b32.xlu0 %v3313, 32
        %v3432 = vpop.permute.xlu0 %3431
        %3433 = vrot.lane.b32.xlu0 %v3314, 32
        %v3434 = vpop.permute.xlu0 %3433
        %3435 = vrot.lane.b32.xlu0 %v3315, 32
        %v3436 = vpop.permute.xlu0 %3435
        %3437 = vrot.lane.b32.xlu0 %v3316, 32
        %v3438 = vpop.permute.xlu0 %3437
        %3439 = vrot.lane.b32.xlu0 %v3317, 32
        %v3440 = vpop.permute.xlu0 %3439
        %3441 = vrot.lane.b32.xlu0 %v3318, 32
        %v3442 = vpop.permute.xlu0 %3441
        %3443 = vrot.lane.b32.xlu0 %v3319, 32
        %v3444 = vpop.permute.xlu0 %3443
        %3445 = vrot.lane.b32.xlu0 %v3320, 32
        %v3446 = vpop.permute.xlu0 %3445
        %3447 = vrot.lane.b32.xlu0 %v3321, 32
        %v3448 = vpop.permute.xlu0 %3447
        %3449 = vrot.lane.b32.xlu0 %v3322, 32
        %v3450 = vpop.permute.xlu0 %3449
        %3515 = vrot.lane.b32.xlu0 %v3323, 64
        %v3516 = vpop.permute.xlu0 %3515
        %3517 = vrot.lane.b32.xlu0 %v3324, 64
        %v3518 = vpop.permute.xlu0 %3517
        %3519 = vrot.lane.b32.xlu0 %v3325, 64
        %v3520 = vpop.permute.xlu0 %3519
        %3521 = vrot.lane.b32.xlu0 %v3326, 64
        %v3522 = vpop.permute.xlu0 %3521
        %3523 = vrot.lane.b32.xlu0 %v3327, 64
        %v3524 = vpop.permute.xlu0 %3523
        %3525 = vrot.lane.b32.xlu0 %v3328, 64
        %v3526 = vpop.permute.xlu0 %3525
        %3527 = vrot.lane.b32.xlu0 %v3329, 64
        %v3528 = vpop.permute.xlu0 %3527
        %3529 = vrot.lane.b32.xlu0 %v3330, 64
        %v3530 = vpop.permute.xlu0 %3529
        %3531 = vrot.lane.b32.xlu0 %v3331, 64
        %v3532 = vpop.permute.xlu0 %3531
        %3533 = vrot.lane.b32.xlu0 %v3332, 64
        %v3534 = vpop.permute.xlu0 %3533
        %3535 = vrot.lane.b32.xlu0 %v3333, 64
        %v3536 = vpop.permute.xlu0 %3535
        %3537 = vrot.lane.b32.xlu0 %v3334, 64
        %v3538 = vpop.permute.xlu0 %3537
        %3539 = vrot.lane.b32.xlu0 %v3335, 64
        %v3540 = vpop.permute.xlu0 %3539
        %3541 = vrot.lane.b32.xlu0 %v3336, 64
        %v3542 = vpop.permute.xlu0 %3541
        %3543 = vrot.lane.b32.xlu0 %v3337, 64
        %v3544 = vpop.permute.xlu0 %3543
        %3545 = vrot.lane.b32.xlu0 %v3338, 64
        %v3546 = vpop.permute.xlu0 %3545
        %3547 = vrot.lane.b32.xlu0 %v3339, 64
        %v3548 = vpop.permute.xlu0 %3547
        %3549 = vrot.lane.b32.xlu0 %v3340, 64
        %v3550 = vpop.permute.xlu0 %3549
        %3551 = vrot.lane.b32.xlu0 %v3341, 64
        %v3552 = vpop.permute.xlu0 %3551
        %3553 = vrot.lane.b32.xlu0 %v3342, 64
        %v3554 = vpop.permute.xlu0 %3553
        %3555 = vrot.lane.b32.xlu0 %v3343, 64
        %v3556 = vpop.permute.xlu0 %3555
        %3557 = vrot.lane.b32.xlu0 %v3344, 64
        %v3558 = vpop.permute.xlu0 %3557
        %3559 = vrot.lane.b32.xlu0 %v3345, 64
        %v3560 = vpop.permute.xlu0 %3559
        %3561 = vrot.lane.b32.xlu0 %v3346, 64
        %v3562 = vpop.permute.xlu0 %3561
        %3563 = vrot.lane.b32.xlu0 %v3347, 64
        %v3564 = vpop.permute.xlu0 %3563
        %3565 = vrot.lane.b32.xlu0 %v3348, 64
        %v3566 = vpop.permute.xlu0 %3565
        %3567 = vrot.lane.b32.xlu0 %v3349, 64
        %v3568 = vpop.permute.xlu0 %3567
        %3569 = vrot.lane.b32.xlu0 %v3350, 64
        %v3570 = vpop.permute.xlu0 %3569
        %3571 = vrot.lane.b32.xlu0 %v3351, 64
        %v3572 = vpop.permute.xlu0 %3571
        %3573 = vrot.lane.b32.xlu0 %v3352, 64
        %v3574 = vpop.permute.xlu0 %3573
        %3575 = vrot.lane.b32.xlu0 %v3353, 64
        %v3576 = vpop.permute.xlu0 %3575
        %3577 = vrot.lane.b32.xlu0 %v3354, 64
        %v3578 = vpop.permute.xlu0 %3577
        %v3611 = vsel %vm331, %v3259, %v3388
        %v3612 = vsel %vm331, %v3260, %v3390
        %v3613 = vsel %vm331, %v3261, %v3392
        %v3614 = vsel %vm331, %v3262, %v3394
        %v3615 = vsel %vm331, %v3263, %v3396
        %v3616 = vsel %vm331, %v3264, %v3398
        %v3617 = vsel %vm331, %v3265, %v3400
        %v3618 = vsel %vm331, %v3266, %v3402
        %v3619 = vsel %vm331, %v3267, %v3404
        %v3620 = vsel %vm331, %v3268, %v3406
        %v3621 = vsel %vm331, %v3269, %v3408
        %v3622 = vsel %vm331, %v3270, %v3410
        %v3623 = vsel %vm331, %v3271, %v3412
        %v3624 = vsel %vm331, %v3272, %v3414
        %v3625 = vsel %vm331, %v3273, %v3416
        %v3626 = vsel %vm331, %v3274, %v3418
        %v3627 = vsel %vm331, %v3275, %v3420
        %v3628 = vsel %vm331, %v3276, %v3422
        %v3629 = vsel %vm331, %v3277, %v3424
        %v3630 = vsel %vm331, %v3278, %v3426
        %v3631 = vsel %vm331, %v3279, %v3428
        %v3632 = vsel %vm331, %v3280, %v3430
        %v3633 = vsel %vm331, %v3281, %v3432
        %v3634 = vsel %vm331, %v3282, %v3434
        %v3635 = vsel %vm331, %v3283, %v3436
        %v3636 = vsel %vm331, %v3284, %v3438
        %v3637 = vsel %vm331, %v3285, %v3440
        %v3638 = vsel %vm331, %v3286, %v3442
        %v3639 = vsel %vm331, %v3287, %v3444
        %v3640 = vsel %vm331, %v3288, %v3446
        %v3641 = vsel %vm331, %v3289, %v3448
        %v3642 = vsel %vm331, %v3290, %v3450
        %v3643 = vsel %vm853, %v3611, %v3516
        %v3644 = vsel %vm853, %v3612, %v3518
        %v3645 = vsel %vm853, %v3613, %v3520
        %v3646 = vsel %vm853, %v3614, %v3522
        %v3647 = vsel %vm853, %v3615, %v3524
        %v3648 = vsel %vm853, %v3616, %v3526
        %v3649 = vsel %vm853, %v3617, %v3528
        %v3650 = vsel %vm853, %v3618, %v3530
        %v3651 = vsel %vm853, %v3619, %v3532
        %v3652 = vsel %vm853, %v3620, %v3534
        %v3653 = vsel %vm853, %v3621, %v3536
        %v3654 = vsel %vm853, %v3622, %v3538
        %v3655 = vsel %vm853, %v3623, %v3540
        %v3656 = vsel %vm853, %v3624, %v3542
        %v3657 = vsel %vm853, %v3625, %v3544
        %v3658 = vsel %vm853, %v3626, %v3546
        %v3659 = vsel %vm853, %v3627, %v3548
        %v3660 = vsel %vm853, %v3628, %v3550
        %v3661 = vsel %vm853, %v3629, %v3552
        %v3662 = vsel %vm853, %v3630, %v3554
        %v3663 = vsel %vm853, %v3631, %v3556
        %v3664 = vsel %vm853, %v3632, %v3558
        %v3665 = vsel %vm853, %v3633, %v3560
        %v3666 = vsel %vm853, %v3634, %v3562
        %v3667 = vsel %vm853, %v3635, %v3564
        %v3668 = vsel %vm853, %v3636, %v3566
        %v3669 = vsel %vm853, %v3637, %v3568
        %v3670 = vsel %vm853, %v3638, %v3570
        %v3671 = vsel %vm853, %v3639, %v3572
        %v3672 = vsel %vm853, %v3640, %v3574
        %v3673 = vsel %vm853, %v3641, %v3576
        %v3674 = vsel %vm853, %v3642, %v3578
        %v3675 = vld [vmem:[%s436 + $0x7] sm:$0xff]
        %v3676 = vld [vmem:[%s436 + $0xf] sm:$0xff]
        %v3677 = vld [vmem:[%s436 + $0x27] sm:$0xff]
        %v3678 = vld [vmem:[%s436 + $0x2f] sm:$0xff]
        %v3679 = vld [vmem:[%s436 + $0x47] sm:$0xff]
        %v3680 = vld [vmem:[%s436 + $0x4f] sm:$0xff]
        %v3681 = vld [vmem:[%s436 + $0x67] sm:$0xff]
        %v3682 = vld [vmem:[%s436 + $0x6f] sm:$0xff]
        %v3683 = vld [vmem:[%s436 + $0x87] sm:$0xff]
        %v3684 = vld [vmem:[%s436 + $0x8f] sm:$0xff]
        %v3685 = vld [vmem:[%s436 + $0xa7] sm:$0xff]
        %v3686 = vld [vmem:[%s436 + $0xaf] sm:$0xff]
        %v3687 = vld [vmem:[%s436 + $0xc7] sm:$0xff]
        %v3688 = vld [vmem:[%s436 + $0xcf] sm:$0xff]
        %v3689 = vld [vmem:[%s436 + $0xe7] sm:$0xff]
        %v3690 = vld [vmem:[%s436 + $0xef] sm:$0xff]
        %v3691 = vld [vmem:[%s436 + $0x107] sm:$0xff]
        %v3692 = vld [vmem:[%s436 + $0x10f] sm:$0xff]
        %v3693 = vld [vmem:[%s436 + $0x127] sm:$0xff]
        %v3694 = vld [vmem:[%s436 + $0x12f] sm:$0xff]
        %v3695 = vld [vmem:[%s436 + $0x147] sm:$0xff]
        %v3696 = vld [vmem:[%s436 + $0x14f] sm:$0xff]
        %v3697 = vld [vmem:[%s436 + $0x167] sm:$0xff]
        %v3698 = vld [vmem:[%s436 + $0x16f] sm:$0xff]
        %v3699 = vld [vmem:[%s436 + $0x187] sm:$0xff]
        %v3700 = vld [vmem:[%s436 + $0x18f] sm:$0xff]
        %v3701 = vld [vmem:[%s436 + $0x1a7] sm:$0xff]
        %v3702 = vld [vmem:[%s436 + $0x1af] sm:$0xff]
        %v3703 = vld [vmem:[%s436 + $0x1c7] sm:$0xff]
        %v3704 = vld [vmem:[%s436 + $0x1cf] sm:$0xff]
        %v3705 = vld [vmem:[%s436 + $0x1e7] sm:$0xff]
        %v3706 = vld [vmem:[%s436 + $0x1ef] sm:$0xff]
        %v3707 = vld [vmem:[%s436 + $0x8] sm:$0xff]
        %v3708 = vld [vmem:[%s436 + $0x10] sm:$0xff]
        %v3709 = vld [vmem:[%s436 + $0x28] sm:$0xff]
        %v3710 = vld [vmem:[%s436 + $0x30] sm:$0xff]
        %v3711 = vld [vmem:[%s436 + $0x48] sm:$0xff]
        %v3712 = vld [vmem:[%s436 + $0x50] sm:$0xff]
        %v3713 = vld [vmem:[%s436 + $0x68] sm:$0xff]
        %v3714 = vld [vmem:[%s436 + $0x70] sm:$0xff]
        %v3715 = vld [vmem:[%s436 + $0x88] sm:$0xff]
        %v3716 = vld [vmem:[%s436 + $0x90] sm:$0xff]
        %v3717 = vld [vmem:[%s436 + $0xa8] sm:$0xff]
        %v3718 = vld [vmem:[%s436 + $0xb0] sm:$0xff]
        %v3719 = vld [vmem:[%s436 + $0xc8] sm:$0xff]
        %v3720 = vld [vmem:[%s436 + $0xd0] sm:$0xff]
        %v3721 = vld [vmem:[%s436 + $0xe8] sm:$0xff]
        %v3722 = vld [vmem:[%s436 + $0xf0] sm:$0xff]
        %v3723 = vld [vmem:[%s436 + $0x108] sm:$0xff]
        %v3724 = vld [vmem:[%s436 + $0x110] sm:$0xff]
        %v3725 = vld [vmem:[%s436 + $0x128] sm:$0xff]
        %v3726 = vld [vmem:[%s436 + $0x130] sm:$0xff]
        %v3727 = vld [vmem:[%s436 + $0x148] sm:$0xff]
        %v3728 = vld [vmem:[%s436 + $0x150] sm:$0xff]
        %v3729 = vld [vmem:[%s436 + $0x168] sm:$0xff]
        %v3730 = vld [vmem:[%s436 + $0x170] sm:$0xff]
        %v3731 = vld [vmem:[%s436 + $0x188] sm:$0xff]
        %v3732 = vld [vmem:[%s436 + $0x190] sm:$0xff]
        %v3733 = vld [vmem:[%s436 + $0x1a8] sm:$0xff]
        %v3734 = vld [vmem:[%s436 + $0x1b0] sm:$0xff]
        %v3735 = vld [vmem:[%s436 + $0x1c8] sm:$0xff]
        %v3736 = vld [vmem:[%s436 + $0x1d0] sm:$0xff]
        %v3737 = vld [vmem:[%s436 + $0x1e8] sm:$0xff]
        %v3738 = vld [vmem:[%s436 + $0x1f0] sm:$0xff]
        %v3739 = vld [vmem:[%s436 + $0x9] sm:$0xff]
        %v3740 = vld [vmem:[%s436 + $0x11] sm:$0xff]
        %v3741 = vld [vmem:[%s436 + $0x29] sm:$0xff]
        %v3742 = vld [vmem:[%s436 + $0x31] sm:$0xff]
        %v3743 = vld [vmem:[%s436 + $0x49] sm:$0xff]
        %v3744 = vld [vmem:[%s436 + $0x51] sm:$0xff]
        %v3745 = vld [vmem:[%s436 + $0x69] sm:$0xff]
        %v3746 = vld [vmem:[%s436 + $0x71] sm:$0xff]
        %v3747 = vld [vmem:[%s436 + $0x89] sm:$0xff]
        %v3748 = vld [vmem:[%s436 + $0x91] sm:$0xff]
        %v3749 = vld [vmem:[%s436 + $0xa9] sm:$0xff]
        %v3750 = vld [vmem:[%s436 + $0xb1] sm:$0xff]
        %v3751 = vld [vmem:[%s436 + $0xc9] sm:$0xff]
        %v3752 = vld [vmem:[%s436 + $0xd1] sm:$0xff]
        %v3753 = vld [vmem:[%s436 + $0xe9] sm:$0xff]
        %v3754 = vld [vmem:[%s436 + $0xf1] sm:$0xff]
        %v3755 = vld [vmem:[%s436 + $0x109] sm:$0xff]
        %v3756 = vld [vmem:[%s436 + $0x111] sm:$0xff]
        %v3757 = vld [vmem:[%s436 + $0x129] sm:$0xff]
        %v3758 = vld [vmem:[%s436 + $0x131] sm:$0xff]
        %v3759 = vld [vmem:[%s436 + $0x149] sm:$0xff]
        %v3760 = vld [vmem:[%s436 + $0x151] sm:$0xff]
        %v3761 = vld [vmem:[%s436 + $0x169] sm:$0xff]
        %v3762 = vld [vmem:[%s436 + $0x171] sm:$0xff]
        %v3763 = vld [vmem:[%s436 + $0x189] sm:$0xff]
        %v3764 = vld [vmem:[%s436 + $0x191] sm:$0xff]
        %v3765 = vld [vmem:[%s436 + $0x1a9] sm:$0xff]
        %v3766 = vld [vmem:[%s436 + $0x1b1] sm:$0xff]
        %v3767 = vld [vmem:[%s436 + $0x1c9] sm:$0xff]
        %v3768 = vld [vmem:[%s436 + $0x1d1] sm:$0xff]
        %v3769 = vld [vmem:[%s436 + $0x1e9] sm:$0xff]
        %v3770 = vld [vmem:[%s436 + $0x1f1] sm:$0xff]
        %3803 = vrot.lane.b32.xlu0 %v3707, 32
        %v3804 = vpop.permute.xlu0 %3803
        %3805 = vrot.lane.b32.xlu0 %v3708, 32
        %v3806 = vpop.permute.xlu0 %3805
        %3807 = vrot.lane.b32.xlu0 %v3709, 32
        %v3808 = vpop.permute.xlu0 %3807
        %3809 = vrot.lane.b32.xlu0 %v3710, 32
        %v3810 = vpop.permute.xlu0 %3809
        %3811 = vrot.lane.b32.xlu0 %v3711, 32
        %v3812 = vpop.permute.xlu0 %3811
        %3813 = vrot.lane.b32.xlu0 %v3712, 32
        %v3814 = vpop.permute.xlu0 %3813
        %3815 = vrot.lane.b32.xlu0 %v3713, 32
        %v3816 = vpop.permute.xlu0 %3815
        %3817 = vrot.lane.b32.xlu0 %v3714, 32
        %v3818 = vpop.permute.xlu0 %3817
        %3819 = vrot.lane.b32.xlu0 %v3715, 32
        %v3820 = vpop.permute.xlu0 %3819
        %3821 = vrot.lane.b32.xlu0 %v3716, 32
        %v3822 = vpop.permute.xlu0 %3821
        %3823 = vrot.lane.b32.xlu0 %v3717, 32
        %v3824 = vpop.permute.xlu0 %3823
        %3825 = vrot.lane.b32.xlu0 %v3718, 32
        %v3826 = vpop.permute.xlu0 %3825
        %3827 = vrot.lane.b32.xlu0 %v3719, 32
        %v3828 = vpop.permute.xlu0 %3827
        %3829 = vrot.lane.b32.xlu0 %v3720, 32
        %v3830 = vpop.permute.xlu0 %3829
        %3831 = vrot.lane.b32.xlu0 %v3721, 32
        %v3832 = vpop.permute.xlu0 %3831
        %3833 = vrot.lane.b32.xlu0 %v3722, 32
        %v3834 = vpop.permute.xlu0 %3833
        %3835 = vrot.lane.b32.xlu0 %v3723, 32
        %v3836 = vpop.permute.xlu0 %3835
        %3837 = vrot.lane.b32.xlu0 %v3724, 32
        %v3838 = vpop.permute.xlu0 %3837
        %3839 = vrot.lane.b32.xlu0 %v3725, 32
        %v3840 = vpop.permute.xlu0 %3839
        %3841 = vrot.lane.b32.xlu0 %v3726, 32
        %v3842 = vpop.permute.xlu0 %3841
        %3843 = vrot.lane.b32.xlu0 %v3727, 32
        %v3844 = vpop.permute.xlu0 %3843
        %3845 = vrot.lane.b32.xlu0 %v3728, 32
        %v3846 = vpop.permute.xlu0 %3845
        %3847 = vrot.lane.b32.xlu0 %v3729, 32
        %v3848 = vpop.permute.xlu0 %3847
        %3849 = vrot.lane.b32.xlu0 %v3730, 32
        %v3850 = vpop.permute.xlu0 %3849
        %3851 = vrot.lane.b32.xlu0 %v3731, 32
        %v3852 = vpop.permute.xlu0 %3851
        %3853 = vrot.lane.b32.xlu0 %v3732, 32
        %v3854 = vpop.permute.xlu0 %3853
        %3855 = vrot.lane.b32.xlu0 %v3733, 32
        %v3856 = vpop.permute.xlu0 %3855
        %3857 = vrot.lane.b32.xlu0 %v3734, 32
        %v3858 = vpop.permute.xlu0 %3857
        %3859 = vrot.lane.b32.xlu0 %v3735, 32
        %v3860 = vpop.permute.xlu0 %3859
        %3861 = vrot.lane.b32.xlu0 %v3736, 32
        %v3862 = vpop.permute.xlu0 %3861
        %3863 = vrot.lane.b32.xlu0 %v3737, 32
        %v3864 = vpop.permute.xlu0 %3863
        %3865 = vrot.lane.b32.xlu0 %v3738, 32
        %v3866 = vpop.permute.xlu0 %3865
        %3931 = vrot.lane.b32.xlu0 %v3739, 64
        %v3932 = vpop.permute.xlu0 %3931
        %3933 = vrot.lane.b32.xlu0 %v3740, 64
        %v3934 = vpop.permute.xlu0 %3933
        %3935 = vrot.lane.b32.xlu0 %v3741, 64
        %v3936 = vpop.permute.xlu0 %3935
        %3937 = vrot.lane.b32.xlu0 %v3742, 64
        %v3938 = vpop.permute.xlu0 %3937
        %3939 = vrot.lane.b32.xlu0 %v3743, 64
        %v3940 = vpop.permute.xlu0 %3939
        %3941 = vrot.lane.b32.xlu0 %v3744, 64
        %v3942 = vpop.permute.xlu0 %3941
        %3943 = vrot.lane.b32.xlu0 %v3745, 64
        %v3944 = vpop.permute.xlu0 %3943
        %3945 = vrot.lane.b32.xlu0 %v3746, 64
        %v3946 = vpop.permute.xlu0 %3945
        %3947 = vrot.lane.b32.xlu0 %v3747, 64
        %v3948 = vpop.permute.xlu0 %3947
        %3949 = vrot.lane.b32.xlu0 %v3748, 64
        %v3950 = vpop.permute.xlu0 %3949
        %3951 = vrot.lane.b32.xlu0 %v3749, 64
        %v3952 = vpop.permute.xlu0 %3951
        %3953 = vrot.lane.b32.xlu0 %v3750, 64
        %v3954 = vpop.permute.xlu0 %3953
        %3955 = vrot.lane.b32.xlu0 %v3751, 64
        %v3956 = vpop.permute.xlu0 %3955
        %3957 = vrot.lane.b32.xlu0 %v3752, 64
        %v3958 = vpop.permute.xlu0 %3957
        %3959 = vrot.lane.b32.xlu0 %v3753, 64
        %v3960 = vpop.permute.xlu0 %3959
        %3961 = vrot.lane.b32.xlu0 %v3754, 64
        %v3962 = vpop.permute.xlu0 %3961
        %3963 = vrot.lane.b32.xlu0 %v3755, 64
        %v3964 = vpop.permute.xlu0 %3963
        %3965 = vrot.lane.b32.xlu0 %v3756, 64
        %v3966 = vpop.permute.xlu0 %3965
        %3967 = vrot.lane.b32.xlu0 %v3757, 64
        %v3968 = vpop.permute.xlu0 %3967
        %3969 = vrot.lane.b32.xlu0 %v3758, 64
        %v3970 = vpop.permute.xlu0 %3969
        %3971 = vrot.lane.b32.xlu0 %v3759, 64
        %v3972 = vpop.permute.xlu0 %3971
        %3973 = vrot.lane.b32.xlu0 %v3760, 64
        %v3974 = vpop.permute.xlu0 %3973
        %3975 = vrot.lane.b32.xlu0 %v3761, 64
        %v3976 = vpop.permute.xlu0 %3975
        %3977 = vrot.lane.b32.xlu0 %v3762, 64
        %v3978 = vpop.permute.xlu0 %3977
        %3979 = vrot.lane.b32.xlu0 %v3763, 64
        %v3980 = vpop.permute.xlu0 %3979
        %3981 = vrot.lane.b32.xlu0 %v3764, 64
        %v3982 = vpop.permute.xlu0 %3981
        %3983 = vrot.lane.b32.xlu0 %v3765, 64
        %v3984 = vpop.permute.xlu0 %3983
        %3985 = vrot.lane.b32.xlu0 %v3766, 64
        %v3986 = vpop.permute.xlu0 %3985
        %3987 = vrot.lane.b32.xlu0 %v3767, 64
        %v3988 = vpop.permute.xlu0 %3987
        %3989 = vrot.lane.b32.xlu0 %v3768, 64
        %v3990 = vpop.permute.xlu0 %3989
        %3991 = vrot.lane.b32.xlu0 %v3769, 64
        %v3992 = vpop.permute.xlu0 %3991
        %3993 = vrot.lane.b32.xlu0 %v3770, 64
        %v3994 = vpop.permute.xlu0 %3993
        %v4027 = vsel %vm331, %v3675, %v3804
        %v4028 = vsel %vm331, %v3676, %v3806
        %v4029 = vsel %vm331, %v3677, %v3808
        %v4030 = vsel %vm331, %v3678, %v3810
        %v4031 = vsel %vm331, %v3679, %v3812
        %v4032 = vsel %vm331, %v3680, %v3814
        %v4033 = vsel %vm331, %v3681, %v3816
        %v4034 = vsel %vm331, %v3682, %v3818
        %v4035 = vsel %vm331, %v3683, %v3820
        %v4036 = vsel %vm331, %v3684, %v3822
        %v4037 = vsel %vm331, %v3685, %v3824
        %v4038 = vsel %vm331, %v3686, %v3826
        %v4039 = vsel %vm331, %v3687, %v3828
        %v4040 = vsel %vm331, %v3688, %v3830
        %v4041 = vsel %vm331, %v3689, %v3832
        %v4042 = vsel %vm331, %v3690, %v3834
        %v4043 = vsel %vm331, %v3691, %v3836
        %v4044 = vsel %vm331, %v3692, %v3838
        %v4045 = vsel %vm331, %v3693, %v3840
        %v4046 = vsel %vm331, %v3694, %v3842
        %v4047 = vsel %vm331, %v3695, %v3844
        %v4048 = vsel %vm331, %v3696, %v3846
        %v4049 = vsel %vm331, %v3697, %v3848
        %v4050 = vsel %vm331, %v3698, %v3850
        %v4051 = vsel %vm331, %v3699, %v3852
        %v4052 = vsel %vm331, %v3700, %v3854
        %v4053 = vsel %vm331, %v3701, %v3856
        %v4054 = vsel %vm331, %v3702, %v3858
        %v4055 = vsel %vm331, %v3703, %v3860
        %v4056 = vsel %vm331, %v3704, %v3862
        %v4057 = vsel %vm331, %v3705, %v3864
        %v4058 = vsel %vm331, %v3706, %v3866
        %v4059 = vsel %vm853, %v4027, %v3932
        %v4060 = vsel %vm853, %v4028, %v3934
        %v4061 = vsel %vm853, %v4029, %v3936
        %v4062 = vsel %vm853, %v4030, %v3938
        %v4063 = vsel %vm853, %v4031, %v3940
        %v4064 = vsel %vm853, %v4032, %v3942
        %v4065 = vsel %vm853, %v4033, %v3944
        %v4066 = vsel %vm853, %v4034, %v3946
        %v4067 = vsel %vm853, %v4035, %v3948
        %v4068 = vsel %vm853, %v4036, %v3950
        %v4069 = vsel %vm853, %v4037, %v3952
        %v4070 = vsel %vm853, %v4038, %v3954
        %v4071 = vsel %vm853, %v4039, %v3956
        %v4072 = vsel %vm853, %v4040, %v3958
        %v4073 = vsel %vm853, %v4041, %v3960
        %v4074 = vsel %vm853, %v4042, %v3962
        %v4075 = vsel %vm853, %v4043, %v3964
        %v4076 = vsel %vm853, %v4044, %v3966
        %v4077 = vsel %vm853, %v4045, %v3968
        %v4078 = vsel %vm853, %v4046, %v3970
        %v4079 = vsel %vm853, %v4047, %v3972
        %v4080 = vsel %vm853, %v4048, %v3974
        %v4081 = vsel %vm853, %v4049, %v3976
        %v4082 = vsel %vm853, %v4050, %v3978
        %v4083 = vsel %vm853, %v4051, %v3980
        %v4084 = vsel %vm853, %v4052, %v3982
        %v4085 = vsel %vm853, %v4053, %v3984
        %v4086 = vsel %vm853, %v4054, %v3986
        %v4087 = vsel %vm853, %v4055, %v3988
        %v4088 = vsel %vm853, %v4056, %v3990
        %v4089 = vsel %vm853, %v4057, %v3992
        %v4090 = vsel %vm853, %v4058, %v3994
        %v4091 = vld [vmem:[%s1302 + $0x7] sm:$0xff]
        %v4092 = vld [vmem:[%s1302 + $0xf] sm:$0xff]
        %v4093 = vld [vmem:[%s1302 + $0x27] sm:$0xff]
        %v4094 = vld [vmem:[%s1302 + $0x2f] sm:$0xff]
        %v4095 = vld [vmem:[%s1302 + $0x47] sm:$0xff]
        %v4096 = vld [vmem:[%s1302 + $0x4f] sm:$0xff]
        %v4097 = vld [vmem:[%s1302 + $0x67] sm:$0xff]
        %v4098 = vld [vmem:[%s1302 + $0x6f] sm:$0xff]
        %v4099 = vld [vmem:[%s1302 + $0x87] sm:$0xff]
        %v4100 = vld [vmem:[%s1302 + $0x8f] sm:$0xff]
        %v4101 = vld [vmem:[%s1302 + $0xa7] sm:$0xff]
        %v4102 = vld [vmem:[%s1302 + $0xaf] sm:$0xff]
        %v4103 = vld [vmem:[%s1302 + $0xc7] sm:$0xff]
        %v4104 = vld [vmem:[%s1302 + $0xcf] sm:$0xff]
        %v4105 = vld [vmem:[%s1302 + $0xe7] sm:$0xff]
        %v4106 = vld [vmem:[%s1302 + $0xef] sm:$0xff]
        %v4107 = vld [vmem:[%s1302 + $0x107] sm:$0xff]
        %v4108 = vld [vmem:[%s1302 + $0x10f] sm:$0xff]
        %v4109 = vld [vmem:[%s1302 + $0x127] sm:$0xff]
        %v4110 = vld [vmem:[%s1302 + $0x12f] sm:$0xff]
        %v4111 = vld [vmem:[%s1302 + $0x147] sm:$0xff]
        %v4112 = vld [vmem:[%s1302 + $0x14f] sm:$0xff]
        %v4113 = vld [vmem:[%s1302 + $0x167] sm:$0xff]
        %v4114 = vld [vmem:[%s1302 + $0x16f] sm:$0xff]
        %v4115 = vld [vmem:[%s1302 + $0x187] sm:$0xff]
        %v4116 = vld [vmem:[%s1302 + $0x18f] sm:$0xff]
        %v4117 = vld [vmem:[%s1302 + $0x1a7] sm:$0xff]
        %v4118 = vld [vmem:[%s1302 + $0x1af] sm:$0xff]
        %v4119 = vld [vmem:[%s1302 + $0x1c7] sm:$0xff]
        %v4120 = vld [vmem:[%s1302 + $0x1cf] sm:$0xff]
        %v4121 = vld [vmem:[%s1302 + $0x1e7] sm:$0xff]
        %v4122 = vld [vmem:[%s1302 + $0x1ef] sm:$0xff]
        %v4123 = vld [vmem:[%s1302 + $0x8] sm:$0xff]
        %v4124 = vld [vmem:[%s1302 + $0x10] sm:$0xff]
        %v4125 = vld [vmem:[%s1302 + $0x28] sm:$0xff]
        %v4126 = vld [vmem:[%s1302 + $0x30] sm:$0xff]
        %v4127 = vld [vmem:[%s1302 + $0x48] sm:$0xff]
        %v4128 = vld [vmem:[%s1302 + $0x50] sm:$0xff]
        %v4129 = vld [vmem:[%s1302 + $0x68] sm:$0xff]
        %v4130 = vld [vmem:[%s1302 + $0x70] sm:$0xff]
        %v4131 = vld [vmem:[%s1302 + $0x88] sm:$0xff]
        %v4132 = vld [vmem:[%s1302 + $0x90] sm:$0xff]
        %v4133 = vld [vmem:[%s1302 + $0xa8] sm:$0xff]
        %v4134 = vld [vmem:[%s1302 + $0xb0] sm:$0xff]
        %v4135 = vld [vmem:[%s1302 + $0xc8] sm:$0xff]
        %v4136 = vld [vmem:[%s1302 + $0xd0] sm:$0xff]
        %v4137 = vld [vmem:[%s1302 + $0xe8] sm:$0xff]
        %v4138 = vld [vmem:[%s1302 + $0xf0] sm:$0xff]
        %v4139 = vld [vmem:[%s1302 + $0x108] sm:$0xff]
        %v4140 = vld [vmem:[%s1302 + $0x110] sm:$0xff]
        %v4141 = vld [vmem:[%s1302 + $0x128] sm:$0xff]
        %v4142 = vld [vmem:[%s1302 + $0x130] sm:$0xff]
        %v4143 = vld [vmem:[%s1302 + $0x148] sm:$0xff]
        %v4144 = vld [vmem:[%s1302 + $0x150] sm:$0xff]
        %v4145 = vld [vmem:[%s1302 + $0x168] sm:$0xff]
        %v4146 = vld [vmem:[%s1302 + $0x170] sm:$0xff]
        %v4147 = vld [vmem:[%s1302 + $0x188] sm:$0xff]
        %v4148 = vld [vmem:[%s1302 + $0x190] sm:$0xff]
        %v4149 = vld [vmem:[%s1302 + $0x1a8] sm:$0xff]
        %v4150 = vld [vmem:[%s1302 + $0x1b0] sm:$0xff]
        %v4151 = vld [vmem:[%s1302 + $0x1c8] sm:$0xff]
        %v4152 = vld [vmem:[%s1302 + $0x1d0] sm:$0xff]
        %v4153 = vld [vmem:[%s1302 + $0x1e8] sm:$0xff]
        %v4154 = vld [vmem:[%s1302 + $0x1f0] sm:$0xff]
        %v4155 = vld [vmem:[%s1302 + $0x9] sm:$0xff]
        %v4156 = vld [vmem:[%s1302 + $0x11] sm:$0xff]
        %v4157 = vld [vmem:[%s1302 + $0x29] sm:$0xff]
        %v4158 = vld [vmem:[%s1302 + $0x31] sm:$0xff]
        %v4159 = vld [vmem:[%s1302 + $0x49] sm:$0xff]
        %v4160 = vld [vmem:[%s1302 + $0x51] sm:$0xff]
        %v4161 = vld [vmem:[%s1302 + $0x69] sm:$0xff]
        %v4162 = vld [vmem:[%s1302 + $0x71] sm:$0xff]
        %v4163 = vld [vmem:[%s1302 + $0x89] sm:$0xff]
        %v4164 = vld [vmem:[%s1302 + $0x91] sm:$0xff]
        %v4165 = vld [vmem:[%s1302 + $0xa9] sm:$0xff]
        %v4166 = vld [vmem:[%s1302 + $0xb1] sm:$0xff]
        %v4167 = vld [vmem:[%s1302 + $0xc9] sm:$0xff]
        %v4168 = vld [vmem:[%s1302 + $0xd1] sm:$0xff]
        %v4169 = vld [vmem:[%s1302 + $0xe9] sm:$0xff]
        %v4170 = vld [vmem:[%s1302 + $0xf1] sm:$0xff]
        %v4171 = vld [vmem:[%s1302 + $0x109] sm:$0xff]
        %v4172 = vld [vmem:[%s1302 + $0x111] sm:$0xff]
        %v4173 = vld [vmem:[%s1302 + $0x129] sm:$0xff]
        %v4174 = vld [vmem:[%s1302 + $0x131] sm:$0xff]
        %v4175 = vld [vmem:[%s1302 + $0x149] sm:$0xff]
        %v4176 = vld [vmem:[%s1302 + $0x151] sm:$0xff]
        %v4177 = vld [vmem:[%s1302 + $0x169] sm:$0xff]
        %v4178 = vld [vmem:[%s1302 + $0x171] sm:$0xff]
        %v4179 = vld [vmem:[%s1302 + $0x189] sm:$0xff]
        %v4180 = vld [vmem:[%s1302 + $0x191] sm:$0xff]
        %v4181 = vld [vmem:[%s1302 + $0x1a9] sm:$0xff]
        %v4182 = vld [vmem:[%s1302 + $0x1b1] sm:$0xff]
        %v4183 = vld [vmem:[%s1302 + $0x1c9] sm:$0xff]
        %v4184 = vld [vmem:[%s1302 + $0x1d1] sm:$0xff]
        %v4185 = vld [vmem:[%s1302 + $0x1e9] sm:$0xff]
        %v4186 = vld [vmem:[%s1302 + $0x1f1] sm:$0xff]
        %4219 = vrot.lane.b32.xlu0 %v4123, 32
        %v4220 = vpop.permute.xlu0 %4219
        %4221 = vrot.lane.b32.xlu0 %v4124, 32
        %v4222 = vpop.permute.xlu0 %4221
        %4223 = vrot.lane.b32.xlu0 %v4125, 32
        %v4224 = vpop.permute.xlu0 %4223
        %4225 = vrot.lane.b32.xlu0 %v4126, 32
        %v4226 = vpop.permute.xlu0 %4225
        %4227 = vrot.lane.b32.xlu0 %v4127, 32
        %v4228 = vpop.permute.xlu0 %4227
        %4229 = vrot.lane.b32.xlu0 %v4128, 32
        %v4230 = vpop.permute.xlu0 %4229
        %4231 = vrot.lane.b32.xlu0 %v4129, 32
        %v4232 = vpop.permute.xlu0 %4231
        %4233 = vrot.lane.b32.xlu0 %v4130, 32
        %v4234 = vpop.permute.xlu0 %4233
        %4235 = vrot.lane.b32.xlu0 %v4131, 32
        %v4236 = vpop.permute.xlu0 %4235
        %4237 = vrot.lane.b32.xlu0 %v4132, 32
        %v4238 = vpop.permute.xlu0 %4237
        %4239 = vrot.lane.b32.xlu0 %v4133, 32
        %v4240 = vpop.permute.xlu0 %4239
        %4241 = vrot.lane.b32.xlu0 %v4134, 32
        %v4242 = vpop.permute.xlu0 %4241
        %4243 = vrot.lane.b32.xlu0 %v4135, 32
        %v4244 = vpop.permute.xlu0 %4243
        %4245 = vrot.lane.b32.xlu0 %v4136, 32
        %v4246 = vpop.permute.xlu0 %4245
        %4247 = vrot.lane.b32.xlu0 %v4137, 32
        %v4248 = vpop.permute.xlu0 %4247
        %4249 = vrot.lane.b32.xlu0 %v4138, 32
        %v4250 = vpop.permute.xlu0 %4249
        %4251 = vrot.lane.b32.xlu0 %v4139, 32
        %v4252 = vpop.permute.xlu0 %4251
        %4253 = vrot.lane.b32.xlu0 %v4140, 32
        %v4254 = vpop.permute.xlu0 %4253
        %4255 = vrot.lane.b32.xlu0 %v4141, 32
        %v4256 = vpop.permute.xlu0 %4255
        %4257 = vrot.lane.b32.xlu0 %v4142, 32
        %v4258 = vpop.permute.xlu0 %4257
        %4259 = vrot.lane.b32.xlu0 %v4143, 32
        %v4260 = vpop.permute.xlu0 %4259
        %4261 = vrot.lane.b32.xlu0 %v4144, 32
        %v4262 = vpop.permute.xlu0 %4261
        %4263 = vrot.lane.b32.xlu0 %v4145, 32
        %v4264 = vpop.permute.xlu0 %4263
        %4265 = vrot.lane.b32.xlu0 %v4146, 32
        %v4266 = vpop.permute.xlu0 %4265
        %4267 = vrot.lane.b32.xlu0 %v4147, 32
        %v4268 = vpop.permute.xlu0 %4267
        %4269 = vrot.lane.b32.xlu0 %v4148, 32
        %v4270 = vpop.permute.xlu0 %4269
        %4271 = vrot.lane.b32.xlu0 %v4149, 32
        %v4272 = vpop.permute.xlu0 %4271
        %4273 = vrot.lane.b32.xlu0 %v4150, 32
        %v4274 = vpop.permute.xlu0 %4273
        %4275 = vrot.lane.b32.xlu0 %v4151, 32
        %v4276 = vpop.permute.xlu0 %4275
        %4277 = vrot.lane.b32.xlu0 %v4152, 32
        %v4278 = vpop.permute.xlu0 %4277
        %4279 = vrot.lane.b32.xlu0 %v4153, 32
        %v4280 = vpop.permute.xlu0 %4279
        %4281 = vrot.lane.b32.xlu0 %v4154, 32
        %v4282 = vpop.permute.xlu0 %4281
        %4347 = vrot.lane.b32.xlu0 %v4155, 64
        %v4348 = vpop.permute.xlu0 %4347
        %4349 = vrot.lane.b32.xlu0 %v4156, 64
        %v4350 = vpop.permute.xlu0 %4349
        %4351 = vrot.lane.b32.xlu0 %v4157, 64
        %v4352 = vpop.permute.xlu0 %4351
        %4353 = vrot.lane.b32.xlu0 %v4158, 64
        %v4354 = vpop.permute.xlu0 %4353
        %4355 = vrot.lane.b32.xlu0 %v4159, 64
        %v4356 = vpop.permute.xlu0 %4355
        %4357 = vrot.lane.b32.xlu0 %v4160, 64
        %v4358 = vpop.permute.xlu0 %4357
        %4359 = vrot.lane.b32.xlu0 %v4161, 64
        %v4360 = vpop.permute.xlu0 %4359
        %4361 = vrot.lane.b32.xlu0 %v4162, 64
        %v4362 = vpop.permute.xlu0 %4361
        %4363 = vrot.lane.b32.xlu0 %v4163, 64
        %v4364 = vpop.permute.xlu0 %4363
        %4365 = vrot.lane.b32.xlu0 %v4164, 64
        %v4366 = vpop.permute.xlu0 %4365
        %4367 = vrot.lane.b32.xlu0 %v4165, 64
        %v4368 = vpop.permute.xlu0 %4367
        %4369 = vrot.lane.b32.xlu0 %v4166, 64
        %v4370 = vpop.permute.xlu0 %4369
        %4371 = vrot.lane.b32.xlu0 %v4167, 64
        %v4372 = vpop.permute.xlu0 %4371
        %4373 = vrot.lane.b32.xlu0 %v4168, 64
        %v4374 = vpop.permute.xlu0 %4373
        %4375 = vrot.lane.b32.xlu0 %v4169, 64
        %v4376 = vpop.permute.xlu0 %4375
        %4377 = vrot.lane.b32.xlu0 %v4170, 64
        %v4378 = vpop.permute.xlu0 %4377
        %4379 = vrot.lane.b32.xlu0 %v4171, 64
        %v4380 = vpop.permute.xlu0 %4379
        %4381 = vrot.lane.b32.xlu0 %v4172, 64
        %v4382 = vpop.permute.xlu0 %4381
        %4383 = vrot.lane.b32.xlu0 %v4173, 64
        %v4384 = vpop.permute.xlu0 %4383
        %4385 = vrot.lane.b32.xlu0 %v4174, 64
        %v4386 = vpop.permute.xlu0 %4385
        %4387 = vrot.lane.b32.xlu0 %v4175, 64
        %v4388 = vpop.permute.xlu0 %4387
        %4389 = vrot.lane.b32.xlu0 %v4176, 64
        %v4390 = vpop.permute.xlu0 %4389
        %4391 = vrot.lane.b32.xlu0 %v4177, 64
        %v4392 = vpop.permute.xlu0 %4391
        %4393 = vrot.lane.b32.xlu0 %v4178, 64
        %v4394 = vpop.permute.xlu0 %4393
        %4395 = vrot.lane.b32.xlu0 %v4179, 64
        %v4396 = vpop.permute.xlu0 %4395
        %4397 = vrot.lane.b32.xlu0 %v4180, 64
        %v4398 = vpop.permute.xlu0 %4397
        %4399 = vrot.lane.b32.xlu0 %v4181, 64
        %v4400 = vpop.permute.xlu0 %4399
        %4401 = vrot.lane.b32.xlu0 %v4182, 64
        %v4402 = vpop.permute.xlu0 %4401
        %4403 = vrot.lane.b32.xlu0 %v4183, 64
        %v4404 = vpop.permute.xlu0 %4403
        %4405 = vrot.lane.b32.xlu0 %v4184, 64
        %v4406 = vpop.permute.xlu0 %4405
        %4407 = vrot.lane.b32.xlu0 %v4185, 64
        %v4408 = vpop.permute.xlu0 %4407
        %4409 = vrot.lane.b32.xlu0 %v4186, 64
        %v4410 = vpop.permute.xlu0 %4409
        %v4443 = vsel %vm331, %v4091, %v4220
        %v4444 = vsel %vm331, %v4092, %v4222
        %v4445 = vsel %vm331, %v4093, %v4224
        %v4446 = vsel %vm331, %v4094, %v4226
        %v4447 = vsel %vm331, %v4095, %v4228
        %v4448 = vsel %vm331, %v4096, %v4230
        %v4449 = vsel %vm331, %v4097, %v4232
        %v4450 = vsel %vm331, %v4098, %v4234
        %v4451 = vsel %vm331, %v4099, %v4236
        %v4452 = vsel %vm331, %v4100, %v4238
        %v4453 = vsel %vm331, %v4101, %v4240
        %v4454 = vsel %vm331, %v4102, %v4242
        %v4455 = vsel %vm331, %v4103, %v4244
        %v4456 = vsel %vm331, %v4104, %v4246
        %v4457 = vsel %vm331, %v4105, %v4248
        %v4458 = vsel %vm331, %v4106, %v4250
        %v4459 = vsel %vm331, %v4107, %v4252
        %v4460 = vsel %vm331, %v4108, %v4254
        %v4461 = vsel %vm331, %v4109, %v4256
        %v4462 = vsel %vm331, %v4110, %v4258
        %v4463 = vsel %vm331, %v4111, %v4260
        %v4464 = vsel %vm331, %v4112, %v4262
        %v4465 = vsel %vm331, %v4113, %v4264
        %v4466 = vsel %vm331, %v4114, %v4266
        %v4467 = vsel %vm331, %v4115, %v4268
        %v4468 = vsel %vm331, %v4116, %v4270
        %v4469 = vsel %vm331, %v4117, %v4272
        %v4470 = vsel %vm331, %v4118, %v4274
        %v4471 = vsel %vm331, %v4119, %v4276
        %v4472 = vsel %vm331, %v4120, %v4278
        %v4473 = vsel %vm331, %v4121, %v4280
        %v4474 = vsel %vm331, %v4122, %v4282
        %v4475 = vsel %vm853, %v4443, %v4348
        %v4476 = vsel %vm853, %v4444, %v4350
        %v4477 = vsel %vm853, %v4445, %v4352
        %v4478 = vsel %vm853, %v4446, %v4354
        %v4479 = vsel %vm853, %v4447, %v4356
        %v4480 = vsel %vm853, %v4448, %v4358
        %v4481 = vsel %vm853, %v4449, %v4360
        %v4482 = vsel %vm853, %v4450, %v4362
        %v4483 = vsel %vm853, %v4451, %v4364
        %v4484 = vsel %vm853, %v4452, %v4366
        %v4485 = vsel %vm853, %v4453, %v4368
        %v4486 = vsel %vm853, %v4454, %v4370
        %v4487 = vsel %vm853, %v4455, %v4372
        %v4488 = vsel %vm853, %v4456, %v4374
        %v4489 = vsel %vm853, %v4457, %v4376
        %v4490 = vsel %vm853, %v4458, %v4378
        %v4491 = vsel %vm853, %v4459, %v4380
        %v4492 = vsel %vm853, %v4460, %v4382
        %v4493 = vsel %vm853, %v4461, %v4384
        %v4494 = vsel %vm853, %v4462, %v4386
        %v4495 = vsel %vm853, %v4463, %v4388
        %v4496 = vsel %vm853, %v4464, %v4390
        %v4497 = vsel %vm853, %v4465, %v4392
        %v4498 = vsel %vm853, %v4466, %v4394
        %v4499 = vsel %vm853, %v4467, %v4396
        %v4500 = vsel %vm853, %v4468, %v4398
        %v4501 = vsel %vm853, %v4469, %v4400
        %v4502 = vsel %vm853, %v4470, %v4402
        %v4503 = vsel %vm853, %v4471, %v4404
        %v4504 = vsel %vm853, %v4472, %v4406
        %v4505 = vsel %vm853, %v4473, %v4408
        %v4506 = vsel %vm853, %v4474, %v4410
        %4539 = vrot.lane.b32.xlu0 %v4059, 96
        %v4540 = vpop.permute.xlu0 %4539
        %4541 = vrot.lane.b32.xlu0 %v4060, 96
        %v4542 = vpop.permute.xlu0 %4541
        %4543 = vrot.lane.b32.xlu0 %v4061, 96
        %v4544 = vpop.permute.xlu0 %4543
        %4545 = vrot.lane.b32.xlu0 %v4062, 96
        %v4546 = vpop.permute.xlu0 %4545
        %4547 = vrot.lane.b32.xlu0 %v4063, 96
        %v4548 = vpop.permute.xlu0 %4547
        %4549 = vrot.lane.b32.xlu0 %v4064, 96
        %v4550 = vpop.permute.xlu0 %4549
        %4551 = vrot.lane.b32.xlu0 %v4065, 96
        %v4552 = vpop.permute.xlu0 %4551
        %4553 = vrot.lane.b32.xlu0 %v4066, 96
        %v4554 = vpop.permute.xlu0 %4553
        %4555 = vrot.lane.b32.xlu0 %v4067, 96
        %v4556 = vpop.permute.xlu0 %4555
        %4557 = vrot.lane.b32.xlu0 %v4068, 96
        %v4558 = vpop.permute.xlu0 %4557
        %4559 = vrot.lane.b32.xlu0 %v4069, 96
        %v4560 = vpop.permute.xlu0 %4559
        %4561 = vrot.lane.b32.xlu0 %v4070, 96
        %v4562 = vpop.permute.xlu0 %4561
        %4563 = vrot.lane.b32.xlu0 %v4071, 96
        %v4564 = vpop.permute.xlu0 %4563
        %4565 = vrot.lane.b32.xlu0 %v4072, 96
        %v4566 = vpop.permute.xlu0 %4565
        %4567 = vrot.lane.b32.xlu0 %v4073, 96
        %v4568 = vpop.permute.xlu0 %4567
        %4569 = vrot.lane.b32.xlu0 %v4074, 96
        %v4570 = vpop.permute.xlu0 %4569
        %4571 = vrot.lane.b32.xlu0 %v4075, 96
        %v4572 = vpop.permute.xlu0 %4571
        %4573 = vrot.lane.b32.xlu0 %v4076, 96
        %v4574 = vpop.permute.xlu0 %4573
        %4575 = vrot.lane.b32.xlu0 %v4077, 96
        %v4576 = vpop.permute.xlu0 %4575
        %4577 = vrot.lane.b32.xlu0 %v4078, 96
        %v4578 = vpop.permute.xlu0 %4577
        %4579 = vrot.lane.b32.xlu0 %v4079, 96
        %v4580 = vpop.permute.xlu0 %4579
        %4581 = vrot.lane.b32.xlu0 %v4080, 96
        %v4582 = vpop.permute.xlu0 %4581
        %4583 = vrot.lane.b32.xlu0 %v4081, 96
        %v4584 = vpop.permute.xlu0 %4583
        %4585 = vrot.lane.b32.xlu0 %v4082, 96
        %v4586 = vpop.permute.xlu0 %4585
        %4587 = vrot.lane.b32.xlu0 %v4083, 96
        %v4588 = vpop.permute.xlu0 %4587
        %4589 = vrot.lane.b32.xlu0 %v4084, 96
        %v4590 = vpop.permute.xlu0 %4589
        %4591 = vrot.lane.b32.xlu0 %v4085, 96
        %v4592 = vpop.permute.xlu0 %4591
        %4593 = vrot.lane.b32.xlu0 %v4086, 96
        %v4594 = vpop.permute.xlu0 %4593
        %4595 = vrot.lane.b32.xlu0 %v4087, 96
        %v4596 = vpop.permute.xlu0 %4595
        %4597 = vrot.lane.b32.xlu0 %v4088, 96
        %v4598 = vpop.permute.xlu0 %4597
        %4599 = vrot.lane.b32.xlu0 %v4089, 96
        %v4600 = vpop.permute.xlu0 %4599
        %4601 = vrot.lane.b32.xlu0 %v4090, 96
        %v4602 = vpop.permute.xlu0 %4601
        %4667 = vrot.lane.b32.xlu0 %v4475, 64
        %v4668 = vpop.permute.xlu0 %4667
        %4669 = vrot.lane.b32.xlu0 %v4476, 64
        %v4670 = vpop.permute.xlu0 %4669
        %4671 = vrot.lane.b32.xlu0 %v4477, 64
        %v4672 = vpop.permute.xlu0 %4671
        %4673 = vrot.lane.b32.xlu0 %v4478, 64
        %v4674 = vpop.permute.xlu0 %4673
        %4675 = vrot.lane.b32.xlu0 %v4479, 64
        %v4676 = vpop.permute.xlu0 %4675
        %4677 = vrot.lane.b32.xlu0 %v4480, 64
        %v4678 = vpop.permute.xlu0 %4677
        %4679 = vrot.lane.b32.xlu0 %v4481, 64
        %v4680 = vpop.permute.xlu0 %4679
        %4681 = vrot.lane.b32.xlu0 %v4482, 64
        %v4682 = vpop.permute.xlu0 %4681
        %4683 = vrot.lane.b32.xlu0 %v4483, 64
        %v4684 = vpop.permute.xlu0 %4683
        %4685 = vrot.lane.b32.xlu0 %v4484, 64
        %v4686 = vpop.permute.xlu0 %4685
        %4687 = vrot.lane.b32.xlu0 %v4485, 64
        %v4688 = vpop.permute.xlu0 %4687
        %4689 = vrot.lane.b32.xlu0 %v4486, 64
        %v4690 = vpop.permute.xlu0 %4689
        %4691 = vrot.lane.b32.xlu0 %v4487, 64
        %v4692 = vpop.permute.xlu0 %4691
        %4693 = vrot.lane.b32.xlu0 %v4488, 64
        %v4694 = vpop.permute.xlu0 %4693
        %4695 = vrot.lane.b32.xlu0 %v4489, 64
        %v4696 = vpop.permute.xlu0 %4695
        %4697 = vrot.lane.b32.xlu0 %v4490, 64
        %v4698 = vpop.permute.xlu0 %4697
        %4699 = vrot.lane.b32.xlu0 %v4491, 64
        %v4700 = vpop.permute.xlu0 %4699
        %4701 = vrot.lane.b32.xlu0 %v4492, 64
        %v4702 = vpop.permute.xlu0 %4701
        %4703 = vrot.lane.b32.xlu0 %v4493, 64
        %v4704 = vpop.permute.xlu0 %4703
        %4705 = vrot.lane.b32.xlu0 %v4494, 64
        %v4706 = vpop.permute.xlu0 %4705
        %4707 = vrot.lane.b32.xlu0 %v4495, 64
        %v4708 = vpop.permute.xlu0 %4707
        %4709 = vrot.lane.b32.xlu0 %v4496, 64
        %v4710 = vpop.permute.xlu0 %4709
        %4711 = vrot.lane.b32.xlu0 %v4497, 64
        %v4712 = vpop.permute.xlu0 %4711
        %4713 = vrot.lane.b32.xlu0 %v4498, 64
        %v4714 = vpop.permute.xlu0 %4713
        %4715 = vrot.lane.b32.xlu0 %v4499, 64
        %v4716 = vpop.permute.xlu0 %4715
        %4717 = vrot.lane.b32.xlu0 %v4500, 64
        %v4718 = vpop.permute.xlu0 %4717
        %4719 = vrot.lane.b32.xlu0 %v4501, 64
        %v4720 = vpop.permute.xlu0 %4719
        %4721 = vrot.lane.b32.xlu0 %v4502, 64
        %v4722 = vpop.permute.xlu0 %4721
        %4723 = vrot.lane.b32.xlu0 %v4503, 64
        %v4724 = vpop.permute.xlu0 %4723
        %4725 = vrot.lane.b32.xlu0 %v4504, 64
        %v4726 = vpop.permute.xlu0 %4725
        %4727 = vrot.lane.b32.xlu0 %v4505, 64
        %v4728 = vpop.permute.xlu0 %4727
        %4729 = vrot.lane.b32.xlu0 %v4506, 64
        %v4730 = vpop.permute.xlu0 %4729
        %v4763 = vsel %vm1975, %v3643, %v4540
        %v4764 = vsel %vm1975, %v3644, %v4542
        %v4765 = vsel %vm1975, %v3645, %v4544
        %v4766 = vsel %vm1975, %v3646, %v4546
        %v4767 = vsel %vm1975, %v3647, %v4548
        %v4768 = vsel %vm1975, %v3648, %v4550
        %v4769 = vsel %vm1975, %v3649, %v4552
        %v4770 = vsel %vm1975, %v3650, %v4554
        %v4771 = vsel %vm1975, %v3651, %v4556
        %v4772 = vsel %vm1975, %v3652, %v4558
        %v4773 = vsel %vm1975, %v3653, %v4560
        %v4774 = vsel %vm1975, %v3654, %v4562
        %v4775 = vsel %vm1975, %v3655, %v4564
        %v4776 = vsel %vm1975, %v3656, %v4566
        %v4777 = vsel %vm1975, %v3657, %v4568
        %v4778 = vsel %vm1975, %v3658, %v4570
        %v4779 = vsel %vm1975, %v3659, %v4572
        %v4780 = vsel %vm1975, %v3660, %v4574
        %v4781 = vsel %vm1975, %v3661, %v4576
        %v4782 = vsel %vm1975, %v3662, %v4578
        %v4783 = vsel %vm1975, %v3663, %v4580
        %v4784 = vsel %vm1975, %v3664, %v4582
        %v4785 = vsel %vm1975, %v3665, %v4584
        %v4786 = vsel %vm1975, %v3666, %v4586
        %v4787 = vsel %vm1975, %v3667, %v4588
        %v4788 = vsel %vm1975, %v3668, %v4590
        %v4789 = vsel %vm1975, %v3669, %v4592
        %v4790 = vsel %vm1975, %v3670, %v4594
        %v4791 = vsel %vm1975, %v3671, %v4596
        %v4792 = vsel %vm1975, %v3672, %v4598
        %v4793 = vsel %vm1975, %v3673, %v4600
        %v4794 = vsel %vm1975, %v3674, %v4602
        %v4795 = vsel %vm853, %v4540, %v4668
        %v4796 = vsel %vm853, %v4542, %v4670
        %v4797 = vsel %vm853, %v4544, %v4672
        %v4798 = vsel %vm853, %v4546, %v4674
        %v4799 = vsel %vm853, %v4548, %v4676
        %v4800 = vsel %vm853, %v4550, %v4678
        %v4801 = vsel %vm853, %v4552, %v4680
        %v4802 = vsel %vm853, %v4554, %v4682
        %v4803 = vsel %vm853, %v4556, %v4684
        %v4804 = vsel %vm853, %v4558, %v4686
        %v4805 = vsel %vm853, %v4560, %v4688
        %v4806 = vsel %vm853, %v4562, %v4690
        %v4807 = vsel %vm853, %v4564, %v4692
        %v4808 = vsel %vm853, %v4566, %v4694
        %v4809 = vsel %vm853, %v4568, %v4696
        %v4810 = vsel %vm853, %v4570, %v4698
        %v4811 = vsel %vm853, %v4572, %v4700
        %v4812 = vsel %vm853, %v4574, %v4702
        %v4813 = vsel %vm853, %v4576, %v4704
        %v4814 = vsel %vm853, %v4578, %v4706
        %v4815 = vsel %vm853, %v4580, %v4708
        %v4816 = vsel %vm853, %v4582, %v4710
        %v4817 = vsel %vm853, %v4584, %v4712
        %v4818 = vsel %vm853, %v4586, %v4714
        %v4819 = vsel %vm853, %v4588, %v4716
        %v4820 = vsel %vm853, %v4590, %v4718
        %v4821 = vsel %vm853, %v4592, %v4720
        %v4822 = vsel %vm853, %v4594, %v4722
        %v4823 = vsel %vm853, %v4596, %v4724
        %v4824 = vsel %vm853, %v4598, %v4726
        %v4825 = vsel %vm853, %v4600, %v4728
        %v4826 = vsel %vm853, %v4602, %v4730
        %v4827 = vld [vmem:[%s7] sm:$0xff]
        %v4828 = vld [vmem:[%s7 + $0x8] sm:$0xff]
        %v4829 = vld [vmem:[%s7 + $0x10] sm:$0xff]
        %v4830 = vld [vmem:[%s7 + $0x18] sm:$0xff]
        %v4831 = vld [vmem:[%s7 + $0x20] sm:$0xff]
        %v4832 = vld [vmem:[%s7 + $0x28] sm:$0xff]
        %v4833 = vld [vmem:[%s7 + $0x30] sm:$0xff]
        %v4834 = vld [vmem:[%s7 + $0x38] sm:$0xff]
        %v4835 = vld [vmem:[%s7 + $0x40] sm:$0xff]
        %v4836 = vld [vmem:[%s7 + $0x48] sm:$0xff]
        %v4837 = vld [vmem:[%s7 + $0x50] sm:$0xff]
        %v4838 = vld [vmem:[%s7 + $0x58] sm:$0xff]
        %v4839 = vld [vmem:[%s7 + $0x60] sm:$0xff]
        %v4840 = vld [vmem:[%s7 + $0x68] sm:$0xff]
        %v4841 = vld [vmem:[%s7 + $0x70] sm:$0xff]
        %v4842 = vld [vmem:[%s7 + $0x78] sm:$0xff]
        %v4843 = vld [vmem:[%s7 + $0x80] sm:$0xff]
        %v4844 = vld [vmem:[%s7 + $0x88] sm:$0xff]
        %v4845 = vld [vmem:[%s7 + $0x90] sm:$0xff]
        %v4846 = vld [vmem:[%s7 + $0x98] sm:$0xff]
        %v4847 = vld [vmem:[%s7 + $0xa0] sm:$0xff]
        %v4848 = vld [vmem:[%s7 + $0xa8] sm:$0xff]
        %v4849 = vld [vmem:[%s7 + $0xb0] sm:$0xff]
        %v4850 = vld [vmem:[%s7 + $0xb8] sm:$0xff]
        %v4851 = vld [vmem:[%s7 + $0xc0] sm:$0xff]
        %v4852 = vld [vmem:[%s7 + $0xc8] sm:$0xff]
        %v4853 = vld [vmem:[%s7 + $0xd0] sm:$0xff]
        %v4854 = vld [vmem:[%s7 + $0xd8] sm:$0xff]
        %v4855 = vld [vmem:[%s7 + $0xe0] sm:$0xff]
        %v4856 = vld [vmem:[%s7 + $0xe8] sm:$0xff]
        %v4857 = vld [vmem:[%s7 + $0xf0] sm:$0xff]
        %v4858 = vld [vmem:[%s7 + $0xf8] sm:$0xff]
        %v4859 = vld [vmem:[%s7 + $0x100] sm:$0xff]
        %v4860 = vld [vmem:[%s7 + $0x108] sm:$0xff]
        %v4861 = vld [vmem:[%s7 + $0x110] sm:$0xff]
        %v4862 = vld [vmem:[%s7 + $0x118] sm:$0xff]
        %v4863 = vld [vmem:[%s8] sm:$0x1]
        %v4865 = vlaneseq
        %v4866 = vshrl.u32 %v4865, 7
        %v4867 = vsub.s32 0, %v4866
        %v4868 = vrot.slane %v4863, %v4867
        %v4870 = vsel %vm331, %v4668, 0
        %v4872 = vsel %vm331, %v4670, 0
        %v4874 = vsel %vm331, %v4672, 0
        %v4876 = vsel %vm331, %v4674, 0
        %v4878 = vsel %vm331, %v4676, 0
        %v4880 = vsel %vm331, %v4678, 0
        %v4882 = vsel %vm331, %v4680, 0
        %v4884 = vsel %vm331, %v4682, 0
        %v4886 = vsel %vm331, %v4684, 0
        %v4888 = vsel %vm331, %v4686, 0
        %v4890 = vsel %vm331, %v4688, 0
        %v4892 = vsel %vm331, %v4690, 0
        %v4894 = vsel %vm331, %v4692, 0
        %v4896 = vsel %vm331, %v4694, 0
        %v4898 = vsel %vm331, %v4696, 0
        %v4900 = vsel %vm331, %v4698, 0
        %v4902 = vsel %vm331, %v4700, 0
        %v4904 = vsel %vm331, %v4702, 0
        %v4906 = vsel %vm331, %v4704, 0
        %v4908 = vsel %vm331, %v4706, 0
        %v4910 = vsel %vm331, %v4708, 0
        %v4912 = vsel %vm331, %v4710, 0
        %v4914 = vsel %vm331, %v4712, 0
        %v4916 = vsel %vm331, %v4714, 0
        %v4918 = vsel %vm331, %v4716, 0
        %v4920 = vsel %vm331, %v4718, 0
        %v4922 = vsel %vm331, %v4720, 0
        %v4924 = vsel %vm331, %v4722, 0
        %v4926 = vsel %vm331, %v4724, 0
        %v4928 = vsel %vm331, %v4726, 0
        %v4930 = vsel %vm331, %v4728, 0
        %v4932 = vsel %vm331, %v4730, 0
        %4934 = vmatprep.subr.mxu0 0.0
        %4935 = vmatpush1.msra.mxu0 %v4827
        %4936 = vmatprep.subr.mxu0 0.0
        %4937 = vmatpush1.msra.mxu0 %v4828
        %4938 = vmatprep.subr.mxu0 0.0
        %4939 = vmatpush1.msra.mxu0 %v4829
        %4940 = vmatprep.subr.mxu0 0.0
        %4941 = vmatpush1.msra.mxu0 %v4830
        %4942 = vmatprep.subr.mxu0 0.0
        %4943 = vmatpush1.msra.mxu0 %v4831
        %4944 = vmatprep.subr.mxu0 0.0
        %4945 = vmatpush1.msra.mxu0 %v4832
        %4946 = vmatprep.subr.mxu0 0.0
        %4947 = vmatpush1.msra.mxu0 %v4833
        %4948 = vmatprep.subr.mxu0 0.0
        %4949 = vmatpush1.msra.mxu0 %v4834
        %4950 = vmatprep.subr.mxu0 0.0
        %4951 = vmatpush1.msra.mxu0 %v4835
        %4952 = vmatprep.subr.mxu0 0.0
        %4953 = vmatpush1.msra.mxu0 %v4836
        %4954 = vmatprep.subr.mxu0 0.0
        %4955 = vmatpush1.msra.mxu0 %v4837
        %4956 = vmatprep.subr.mxu0 0.0
        %4957 = vmatpush1.msra.mxu0 %v4838
        %4958 = vmatprep.subr.mxu0 0.0
        %4959 = vmatpush1.msra.mxu0 %v4839
        %4960 = vmatprep.subr.mxu0 0.0
        %4961 = vmatpush1.msra.mxu0 %v4840
        %4962 = vmatprep.subr.mxu0 0.0
        %4963 = vmatpush1.msra.mxu0 %v4841
        %4964 = vmatprep.subr.mxu0 0.0
        %4965 = vmatpush1.msra.mxu0 %v4842
        %4966 = vmatprep.subr.mxu0 0.0
        %4967 = vmatpush1.msra.mxu0 %v4843
        %4968 = vmatprep.subr.mxu0 0.0
        %4969 = vmatpush1.msra.mxu0 %v4844
        %4970 = vmatprep.subr.mxu0 0.0
        %4971 = vmatpush1.msra.mxu0 %v4845
        %4972 = vmatprep.subr.mxu0 0.0
        %4973 = vmatpush1.msra.mxu0 %v4846
        %4974 = vmatprep.subr.mxu0 0.0
        %4975 = vmatpush1.msra.mxu0 %v4847
        %4976 = vmatprep.subr.mxu0 0.0
        %4977 = vmatpush1.msra.mxu0 %v4848
        %4978 = vmatprep.subr.mxu0 0.0
        %4979 = vmatpush1.msra.mxu0 %v4849
        %4980 = vmatprep.subr.mxu0 0.0
        %4981 = vmatpush1.msra.mxu0 %v4850
        %4982 = vmatprep.subr.mxu0 0.0
        %4983 = vmatpush1.msra.mxu0 %v4851
        %4984 = vmatprep.subr.mxu0 0.0
        %4985 = vmatpush1.msra.mxu0 %v4852
        %4986 = vmatprep.subr.mxu0 0.0
        %4987 = vmatpush1.msra.mxu0 %v4853
        %4988 = vmatprep.subr.mxu0 0.0
        %4989 = vmatpush1.msra.mxu0 %v4854
        %4990 = vmatprep.subr.mxu0 0.0
        %4991 = vmatpush1.msra.mxu0 %v4855
        %4992 = vmatprep.subr.mxu0 0.0
        %4993 = vmatpush1.msra.mxu0 %v4856
        %4994 = vmatprep.subr.mxu0 0.0
        %4995 = vmatpush1.msra.mxu0 %v4857
        %4996 = vmatprep.subr.mxu0 0.0
        %4997 = vmatpush1.msra.mxu0 %v4858
        %4998 = vmatprep.mubr.f32.mxu0 %v4795
        %4999 = vmatmul.mubr.f32.gmra.mrb[0].mxu0 %v4763
        %v5000 = vpop.f32.mrb[0].mxu0
        %v5001 = vadd.f32 %v4868, %v5000
        %v5002 = vpop.f32.mrb[0].mxu0
        %5003 = vmatprep.mubr.f32.mxu0 %v4796
        %5004 = vmatmul.mubr.f32.gmra.mrb[0].mxu0 %v4764
        %v5005 = vpop.f32.mrb[0].mxu0
        %v5006 = vadd.f32 %v4868, %v5005
        %v5007 = vpop.f32.mrb[0].mxu0
        %5008 = vmatprep.mubr.f32.mxu0 %v4797
        %5009 = vmatmul.mubr.f32.gmra.mrb[0].mxu0 %v4765
        %v5010 = vpop.f32.mrb[0].mxu0
        %v5011 = vadd.f32 %v4868, %v5010
        %v5012 = vpop.f32.mrb[0].mxu0
        %5013 = vmatprep.mubr.f32.mxu0 %v4798
        %5014 = vmatmul.mubr.f32.gmra.mrb[0].mxu0 %v4766
        %v5015 = vpop.f32.mrb[0].mxu0
        %v5016 = vadd.f32 %v4868, %v5015
        %v5017 = vpop.f32.mrb[0].mxu0
        %5018 = vmatprep.mubr.f32.mxu0 %v4799
        %5019 = vmatmul.mubr.f32.gmra.mrb[0].mxu0 %v4767
        %v5020 = vpop.f32.mrb[0].mxu0
        %v5021 = vadd.f32 %v4868, %v5020
        %v5022 = vpop.f32.mrb[0].mxu0
        %5023 = vmatprep.mubr.f32.mxu0 %v4800
        %5024 = vmatmul.mubr.f32.gmra.mrb[0].mxu0 %v4768
        %v5025 = vpop.f32.mrb[0].mxu0
        %v5026 = vadd.f32 %v4868, %v5025
        %v5027 = vpop.f32.mrb[0].mxu0
        %5028 = vmatprep.mubr.f32.mxu0 %v4801
        %5029 = vmatmul.mubr.f32.gmra.mrb[0].mxu0 %v4769
        %v5030 = vpop.f32.mrb[0].mxu0
        %v5031 = vadd.f32 %v4868, %v5030
        %v5032 = vpop.f32.mrb[0].mxu0
        %5033 = vmatprep.mubr.f32.mxu0 %v4802
        %5034 = vmatmul.mubr.f32.gmra.mrb[0].mxu0 %v4770
        %v5035 = vpop.f32.mrb[0].mxu0
        %v5036 = vadd.f32 %v4868, %v5035
        %v5037 = vpop.f32.mrb[0].mxu0
        %5038 = vmatprep.mubr.f32.mxu0 %v4803
        %5039 = vmatmul.mubr.f32.gmra.mrb[0].mxu0 %v4771
        %v5040 = vpop.f32.mrb[0].mxu0
        %v5041 = vadd.f32 %v4868, %v5040
        %v5042 = vpop.f32.mrb[0].mxu0
        %5043 = vmatprep.mubr.f32.mxu0 %v4804
        %5044 = vmatmul.mubr.f32.gmra.mrb[0].mxu0 %v4772
        %v5045 = vpop.f32.mrb[0].mxu0
        %v5046 = vadd.f32 %v4868, %v5045
        %v5047 = vpop.f32.mrb[0].mxu0
        %5048 = vmatprep.mubr.f32.mxu0 %v4805
        %5049 = vmatmul.mubr.f32.gmra.mrb[0].mxu0 %v4773
        %v5050 = vpop.f32.mrb[0].mxu0
        %v5051 = vadd.f32 %v4868, %v5050
        %v5052 = vpop.f32.mrb[0].mxu0
        %5053 = vmatprep.mubr.f32.mxu0 %v4806
        %5054 = vmatmul.mubr.f32.gmra.mrb[0].mxu0 %v4774
        %v5055 = vpop.f32.mrb[0].mxu0
        %v5056 = vadd.f32 %v4868, %v5055
        %v5057 = vpop.f32.mrb[0].mxu0
        %5058 = vmatprep.mubr.f32.mxu0 %v4807
        %5059 = vmatmul.mubr.f32.gmra.mrb[0].mxu0 %v4775
        %v5060 = vpop.f32.mrb[0].mxu0
        %v5061 = vadd.f32 %v4868, %v5060
        %v5062 = vpop.f32.mrb[0].mxu0
        %5063 = vmatprep.mubr.f32.mxu0 %v4808
        %5064 = vmatmul.mubr.f32.gmra.mrb[0].mxu0 %v4776
        %v5065 = vpop.f32.mrb[0].mxu0
        %v5066 = vadd.f32 %v4868, %v5065
        %v5067 = vpop.f32.mrb[0].mxu0
        %5068 = vmatprep.mubr.f32.mxu0 %v4809
        %5069 = vmatmul.mubr.f32.gmra.mrb[0].mxu0 %v4777
        %v5070 = vpop.f32.mrb[0].mxu0
        %v5071 = vadd.f32 %v4868, %v5070
        %v5072 = vpop.f32.mrb[0].mxu0
        %5073 = vmatprep.mubr.f32.mxu0 %v4810
        %5074 = vmatmul.mubr.f32.gmra.mrb[0].mxu0 %v4778
        %v5075 = vpop.f32.mrb[0].mxu0
        %v5076 = vadd.f32 %v4868, %v5075
        %v5077 = vpop.f32.mrb[0].mxu0
        %5078 = vmatprep.mubr.f32.mxu0 %v4811
        %5079 = vmatmul.mubr.f32.gmra.mrb[0].mxu0 %v4779
        %v5080 = vpop.f32.mrb[0].mxu0
        %v5081 = vadd.f32 %v4868, %v5080
        %v5082 = vpop.f32.mrb[0].mxu0
        %5083 = vmatprep.mubr.f32.mxu0 %v4812
        %5084 = vmatmul.mubr.f32.gmra.mrb[0].mxu0 %v4780
        %v5085 = vpop.f32.mrb[0].mxu0
        %v5086 = vadd.f32 %v4868, %v5085
        %v5087 = vpop.f32.mrb[0].mxu0
        %5088 = vmatprep.mubr.f32.mxu0 %v4813
        %5089 = vmatmul.mubr.f32.gmra.mrb[0].mxu0 %v4781
        %v5090 = vpop.f32.mrb[0].mxu0
        %v5091 = vadd.f32 %v4868, %v5090
        %v5092 = vpop.f32.mrb[0].mxu0
        %5093 = vmatprep.mubr.f32.mxu0 %v4814
        %5094 = vmatmul.mubr.f32.gmra.mrb[0].mxu0 %v4782
        %v5095 = vpop.f32.mrb[0].mxu0
        %v5096 = vadd.f32 %v4868, %v5095
        %v5097 = vpop.f32.mrb[0].mxu0
        %5098 = vmatprep.mubr.f32.mxu0 %v4815
        %5099 = vmatmul.mubr.f32.gmra.mrb[0].mxu0 %v4783
        %v5100 = vpop.f32.mrb[0].mxu0
        %v5101 = vadd.f32 %v4868, %v5100
        %v5102 = vpop.f32.mrb[0].mxu0
        %5103 = vmatprep.mubr.f32.mxu0 %v4816
        %5104 = vmatmul.mubr.f32.gmra.mrb[0].mxu0 %v4784
        %v5105 = vpop.f32.mrb[0].mxu0
        %v5106 = vadd.f32 %v4868, %v5105
        %v5107 = vpop.f32.mrb[0].mxu0
        %5108 = vmatprep.mubr.f32.mxu0 %v4817
        %5109 = vmatmul.mubr.f32.gmra.mrb[0].mxu0 %v4785
        %v5110 = vpop.f32.mrb[0].mxu0
        %v5111 = vadd.f32 %v4868, %v5110
        %v5112 = vpop.f32.mrb[0].mxu0
        %5113 = vmatprep.mubr.f32.mxu0 %v4818
        %5114 = vmatmul.mubr.f32.gmra.mrb[0].mxu0 %v4786
        %v5115 = vpop.f32.mrb[0].mxu0
        %v5116 = vadd.f32 %v4868, %v5115
        %v5117 = vpop.f32.mrb[0].mxu0
        %5118 = vmatprep.mubr.f32.mxu0 %v4819
        %5119 = vmatmul.mubr.f32.gmra.mrb[0].mxu0 %v4787
        %v5120 = vpop.f32.mrb[0].mxu0
        %v5121 = vadd.f32 %v4868, %v5120
        %v5122 = vpop.f32.mrb[0].mxu0
        %5123 = vmatprep.mubr.f32.mxu0 %v4820
        %5124 = vmatmul.mubr.f32.gmra.mrb[0].mxu0 %v4788
        %v5125 = vpop.f32.mrb[0].mxu0
        %v5126 = vadd.f32 %v4868, %v5125
        %v5127 = vpop.f32.mrb[0].mxu0
        %5128 = vmatprep.mubr.f32.mxu0 %v4821
        %5129 = vmatmul.mubr.f32.gmra.mrb[0].mxu0 %v4789
        %v5130 = vpop.f32.mrb[0].mxu0
        %v5131 = vadd.f32 %v4868, %v5130
        %v5132 = vpop.f32.mrb[0].mxu0
        %5133 = vmatprep.mubr.f32.mxu0 %v4822
        %5134 = vmatmul.mubr.f32.gmra.mrb[0].mxu0 %v4790
        %v5135 = vpop.f32.mrb[0].mxu0
        %v5136 = vadd.f32 %v4868, %v5135
        %v5137 = vpop.f32.mrb[0].mxu0
        %5138 = vmatprep.mubr.f32.mxu0 %v4823
        %5139 = vmatmul.mubr.f32.gmra.mrb[0].mxu0 %v4791
        %v5140 = vpop.f32.mrb[0].mxu0
        %v5141 = vadd.f32 %v4868, %v5140
        %v5142 = vpop.f32.mrb[0].mxu0
        %5143 = vmatprep.mubr.f32.mxu0 %v4824
        %5144 = vmatmul.mubr.f32.gmra.mrb[0].mxu0 %v4792
        %v5145 = vpop.f32.mrb[0].mxu0
        %v5146 = vadd.f32 %v4868, %v5145
        %v5147 = vpop.f32.mrb[0].mxu0
        %5148 = vmatprep.mubr.f32.mxu0 %v4825
        %5149 = vmatmul.mubr.f32.gmra.mrb[0].mxu0 %v4793
        %v5150 = vpop.f32.mrb[0].mxu0
        %v5151 = vadd.f32 %v4868, %v5150
        %v5152 = vpop.f32.mrb[0].mxu0
        %5153 = vmatprep.mubr.f32.mxu0 %v4826
        %5154 = vmatmul.mubr.f32.gmra.mrb[0].mxu0 %v4794
        %v5155 = vpop.f32.mrb[0].mxu0
        %v5156 = vadd.f32 %v4868, %v5155
        %v5157 = vpop.f32.mrb[0].mxu0
        %5158 = vdwg.mxu0
        %5159 = vmatprep.subr.mxu0 0.0
        %5160 = vmatpush1.msra.mxu0 %v4859
        %5161 = vmatprep.subr.mxu0 0.0
        %5162 = vmatpush1.msra.mxu0 %v4860
        %5163 = vmatprep.subr.mxu0 0.0
        %5164 = vmatpush1.msra.mxu0 %v4861
        %5165 = vmatprep.subr.mxu0 0.0
        %5166 = vmatpush1.msra.mxu0 %v4862
        %5167 = vmatprep.subr.mxu0 0.0
        %5168 = vmatpush1.msra.mxu0 0.0
        %5169 = vmatprep.subr.mxu0 0.0
        %5170 = vmatpush1.msra.mxu0 0.0
        %5171 = vmatprep.subr.mxu0 0.0
        %5172 = vmatpush1.msra.mxu0 0.0
        %5173 = vmatprep.subr.mxu0 0.0
        %5174 = vmatpush1.msra.mxu0 0.0
        %5175 = vmatprep.subr.mxu0 0.0
        %5176 = vmatpush1.msra.mxu0 0.0
        %5177 = vmatprep.subr.mxu0 0.0
        %5178 = vmatpush1.msra.mxu0 0.0
        %5179 = vmatprep.subr.mxu0 0.0
        %5180 = vmatpush1.msra.mxu0 0.0
        %5181 = vmatprep.subr.mxu0 0.0
        %5182 = vmatpush1.msra.mxu0 0.0
        %5183 = vmatprep.subr.mxu0 0.0
        %5184 = vmatpush1.msra.mxu0 0.0
        %5185 = vmatprep.subr.mxu0 0.0
        %5186 = vmatpush1.msra.mxu0 0.0
        %5187 = vmatprep.subr.mxu0 0.0
        %5188 = vmatpush1.msra.mxu0 0.0
        %5189 = vmatprep.subr.mxu0 0.0
        %5190 = vmatpush1.msra.mxu0 0.0
        %5191 = vmatprep.subr.mxu0 0.0
        %5192 = vmatpush1.msra.mxu0 0.0
        %5193 = vmatprep.subr.mxu0 0.0
        %5194 = vmatpush1.msra.mxu0 0.0
        %5195 = vmatprep.subr.mxu0 0.0
        %5196 = vmatpush1.msra.mxu0 0.0
        %5197 = vmatprep.subr.mxu0 0.0
        %5198 = vmatpush1.msra.mxu0 0.0
        %5199 = vmatprep.subr.mxu0 0.0
        %5200 = vmatpush1.msra.mxu0 0.0
        %5201 = vmatprep.subr.mxu0 0.0
        %5202 = vmatpush1.msra.mxu0 0.0
        %5203 = vmatprep.subr.mxu0 0.0
        %5204 = vmatpush1.msra.mxu0 0.0
        %5205 = vmatprep.subr.mxu0 0.0
        %5206 = vmatpush1.msra.mxu0 0.0
        %5207 = vmatprep.subr.mxu0 0.0
        %5208 = vmatpush1.msra.mxu0 0.0
        %5209 = vmatprep.subr.mxu0 0.0
        %5210 = vmatpush1.msra.mxu0 0.0
        %5211 = vmatprep.subr.mxu0 0.0
        %5212 = vmatpush1.msra.mxu0 0.0
        %5213 = vmatprep.subr.mxu0 0.0
        %5214 = vmatpush1.msra.mxu0 0.0
        %5215 = vmatprep.subr.mxu0 0.0
        %5216 = vmatpush1.msra.mxu0 0.0
        %5217 = vmatprep.subr.mxu0 0.0
        %5218 = vmatpush1.msra.mxu0 0.0
        %5219 = vmatprep.subr.mxu0 0.0
        %5220 = vmatpush1.msra.mxu0 0.0
        %5221 = vmatprep.subr.mxu0 0.0
        %5222 = vmatpush1.msra.mxu0 0.0
        %5223 = vmatprep.mubr.f32.mxu0 0.0
        %5224 = vmatmul.mubr.f32.gmra.mrb[0].mxu0 %v4870
        %v5225 = vpop.f32.mrb[0].mxu0
        %v5226 = vadd.f32 %v5001, %v5225
        %v5227 = vpop.f32.mrb[0].mxu0
        %5228 = vmatprep.mubr.f32.mxu0 0.0
        %5229 = vmatmul.mubr.f32.gmra.mrb[0].mxu0 %v4872
        %v5230 = vpop.f32.mrb[0].mxu0
        %v5231 = vadd.f32 %v5006, %v5230
        %v5232 = vpop.f32.mrb[0].mxu0
        %5233 = vmatprep.mubr.f32.mxu0 0.0
        %5234 = vmatmul.mubr.f32.gmra.mrb[0].mxu0 %v4874
        %v5235 = vpop.f32.mrb[0].mxu0
        %v5236 = vadd.f32 %v5011, %v5235
        %v5237 = vpop.f32.mrb[0].mxu0
        %5238 = vmatprep.mubr.f32.mxu0 0.0
        %5239 = vmatmul.mubr.f32.gmra.mrb[0].mxu0 %v4876
        %v5240 = vpop.f32.mrb[0].mxu0
        %v5241 = vadd.f32 %v5016, %v5240
        %v5242 = vpop.f32.mrb[0].mxu0
        %5243 = vmatprep.mubr.f32.mxu0 0.0
        %5244 = vmatmul.mubr.f32.gmra.mrb[0].mxu0 %v4878
        %v5245 = vpop.f32.mrb[0].mxu0
        %v5246 = vadd.f32 %v5021, %v5245
        %v5247 = vpop.f32.mrb[0].mxu0
        %5248 = vmatprep.mubr.f32.mxu0 0.0
        %5249 = vmatmul.mubr.f32.gmra.mrb[0].mxu0 %v4880
        %v5250 = vpop.f32.mrb[0].mxu0
        %v5251 = vadd.f32 %v5026, %v5250
        %v5252 = vpop.f32.mrb[0].mxu0
        %5253 = vmatprep.mubr.f32.mxu0 0.0
        %5254 = vmatmul.mubr.f32.gmra.mrb[0].mxu0 %v4882
        %v5255 = vpop.f32.mrb[0].mxu0
        %v5256 = vadd.f32 %v5031, %v5255
        %v5257 = vpop.f32.mrb[0].mxu0
        %5258 = vmatprep.mubr.f32.mxu0 0.0
        %5259 = vmatmul.mubr.f32.gmra.mrb[0].mxu0 %v4884
        %v5260 = vpop.f32.mrb[0].mxu0
        %v5261 = vadd.f32 %v5036, %v5260
        %v5262 = vpop.f32.mrb[0].mxu0
        %5263 = vmatprep.mubr.f32.mxu0 0.0
        %5264 = vmatmul.mubr.f32.gmra.mrb[0].mxu0 %v4886
        %v5265 = vpop.f32.mrb[0].mxu0
        %v5266 = vadd.f32 %v5041, %v5265
        %v5267 = vpop.f32.mrb[0].mxu0
        %5268 = vmatprep.mubr.f32.mxu0 0.0
        %5269 = vmatmul.mubr.f32.gmra.mrb[0].mxu0 %v4888
        %v5270 = vpop.f32.mrb[0].mxu0
        %v5271 = vadd.f32 %v5046, %v5270
        %v5272 = vpop.f32.mrb[0].mxu0
        %5273 = vmatprep.mubr.f32.mxu0 0.0
        %5274 = vmatmul.mubr.f32.gmra.mrb[0].mxu0 %v4890
        %v5275 = vpop.f32.mrb[0].mxu0
        %v5276 = vadd.f32 %v5051, %v5275
        %v5277 = vpop.f32.mrb[0].mxu0
        %5278 = vmatprep.mubr.f32.mxu0 0.0
        %5279 = vmatmul.mubr.f32.gmra.mrb[0].mxu0 %v4892
        %v5280 = vpop.f32.mrb[0].mxu0
        %v5281 = vadd.f32 %v5056, %v5280
        %v5282 = vpop.f32.mrb[0].mxu0
        %5283 = vmatprep.mubr.f32.mxu0 0.0
        %5284 = vmatmul.mubr.f32.gmra.mrb[0].mxu0 %v4894
        %v5285 = vpop.f32.mrb[0].mxu0
        %v5286 = vadd.f32 %v5061, %v5285
        %v5287 = vpop.f32.mrb[0].mxu0
        %5288 = vmatprep.mubr.f32.mxu0 0.0
        %5289 = vmatmul.mubr.f32.gmra.mrb[0].mxu0 %v4896
        %v5290 = vpop.f32.mrb[0].mxu0
        %v5291 = vadd.f32 %v5066, %v5290
        %v5292 = vpop.f32.mrb[0].mxu0
        %5293 = vmatprep.mubr.f32.mxu0 0.0
        %5294 = vmatmul.mubr.f32.gmra.mrb[0].mxu0 %v4898
        %v5295 = vpop.f32.mrb[0].mxu0
        %v5296 = vadd.f32 %v5071, %v5295
        %v5297 = vpop.f32.mrb[0].mxu0
        %5298 = vmatprep.mubr.f32.mxu0 0.0
        %5299 = vmatmul.mubr.f32.gmra.mrb[0].mxu0 %v4900
        %v5300 = vpop.f32.mrb[0].mxu0
        %v5301 = vadd.f32 %v5076, %v5300
        %v5302 = vpop.f32.mrb[0].mxu0
        %5303 = vmatprep.mubr.f32.mxu0 0.0
        %5304 = vmatmul.mubr.f32.gmra.mrb[0].mxu0 %v4902
        %v5305 = vpop.f32.mrb[0].mxu0
        %v5306 = vadd.f32 %v5081, %v5305
        %v5307 = vpop.f32.mrb[0].mxu0
        %5308 = vmatprep.mubr.f32.mxu0 0.0
        %5309 = vmatmul.mubr.f32.gmra.mrb[0].mxu0 %v4904
        %v5310 = vpop.f32.mrb[0].mxu0
        %v5311 = vadd.f32 %v5086, %v5310
        %v5312 = vpop.f32.mrb[0].mxu0
        %5313 = vmatprep.mubr.f32.mxu0 0.0
        %5314 = vmatmul.mubr.f32.gmra.mrb[0].mxu0 %v4906
        %v5315 = vpop.f32.mrb[0].mxu0
        %v5316 = vadd.f32 %v5091, %v5315
        %v5317 = vpop.f32.mrb[0].mxu0
        %5318 = vmatprep.mubr.f32.mxu0 0.0
        %5319 = vmatmul.mubr.f32.gmra.mrb[0].mxu0 %v4908
        %v5320 = vpop.f32.mrb[0].mxu0
        %v5321 = vadd.f32 %v5096, %v5320
        %v5322 = vpop.f32.mrb[0].mxu0
        %5323 = vmatprep.mubr.f32.mxu0 0.0
        %5324 = vmatmul.mubr.f32.gmra.mrb[0].mxu0 %v4910
        %v5325 = vpop.f32.mrb[0].mxu0
        %v5326 = vadd.f32 %v5101, %v5325
        %v5327 = vpop.f32.mrb[0].mxu0
        %5328 = vmatprep.mubr.f32.mxu0 0.0
        %5329 = vmatmul.mubr.f32.gmra.mrb[0].mxu0 %v4912
        %v5330 = vpop.f32.mrb[0].mxu0
        %v5331 = vadd.f32 %v5106, %v5330
        %v5332 = vpop.f32.mrb[0].mxu0
        %5333 = vmatprep.mubr.f32.mxu0 0.0
        %5334 = vmatmul.mubr.f32.gmra.mrb[0].mxu0 %v4914
        %v5335 = vpop.f32.mrb[0].mxu0
        %v5336 = vadd.f32 %v5111, %v5335
        %v5337 = vpop.f32.mrb[0].mxu0
        %5338 = vmatprep.mubr.f32.mxu0 0.0
        %5339 = vmatmul.mubr.f32.gmra.mrb[0].mxu0 %v4916
        %v5340 = vpop.f32.mrb[0].mxu0
        %v5341 = vadd.f32 %v5116, %v5340
        %v5342 = vpop.f32.mrb[0].mxu0
        %5343 = vmatprep.mubr.f32.mxu0 0.0
        %5344 = vmatmul.mubr.f32.gmra.mrb[0].mxu0 %v4918
        %v5345 = vpop.f32.mrb[0].mxu0
        %v5346 = vadd.f32 %v5121, %v5345
        %v5347 = vpop.f32.mrb[0].mxu0
        %5348 = vmatprep.mubr.f32.mxu0 0.0
        %5349 = vmatmul.mubr.f32.gmra.mrb[0].mxu0 %v4920
        %v5350 = vpop.f32.mrb[0].mxu0
        %v5351 = vadd.f32 %v5126, %v5350
        %v5352 = vpop.f32.mrb[0].mxu0
        %5353 = vmatprep.mubr.f32.mxu0 0.0
        %5354 = vmatmul.mubr.f32.gmra.mrb[0].mxu0 %v4922
        %v5355 = vpop.f32.mrb[0].mxu0
        %v5356 = vadd.f32 %v5131, %v5355
        %v5357 = vpop.f32.mrb[0].mxu0
        %5358 = vmatprep.mubr.f32.mxu0 0.0
        %5359 = vmatmul.mubr.f32.gmra.mrb[0].mxu0 %v4924
        %v5360 = vpop.f32.mrb[0].mxu0
        %v5361 = vadd.f32 %v5136, %v5360
        %v5362 = vpop.f32.mrb[0].mxu0
        %5363 = vmatprep.mubr.f32.mxu0 0.0
        %5364 = vmatmul.mubr.f32.gmra.mrb[0].mxu0 %v4926
        %v5365 = vpop.f32.mrb[0].mxu0
        %v5366 = vadd.f32 %v5141, %v5365
        %v5367 = vpop.f32.mrb[0].mxu0
        %5368 = vmatprep.mubr.f32.mxu0 0.0
        %5369 = vmatmul.mubr.f32.gmra.mrb[0].mxu0 %v4928
        %v5370 = vpop.f32.mrb[0].mxu0
        %v5371 = vadd.f32 %v5146, %v5370
        %v5372 = vpop.f32.mrb[0].mxu0
        %5373 = vmatprep.mubr.f32.mxu0 0.0
        %5374 = vmatmul.mubr.f32.gmra.mrb[0].mxu0 %v4930
        %v5375 = vpop.f32.mrb[0].mxu0
        %v5376 = vadd.f32 %v5151, %v5375
        %v5377 = vpop.f32.mrb[0].mxu0
        %5378 = vmatprep.mubr.f32.mxu0 0.0
        %5379 = vmatmul.mubr.f32.gmra.mrb[0].mxu0 %v4932
        %v5380 = vpop.f32.mrb[0].mxu0
        %v5381 = vadd.f32 %v5156, %v5380
        %v5382 = vpop.f32.mrb[0].mxu0
        %5383 = vdwg.mxu0
        %v5384 = vmax.f32 %v5226, 0.0
        %v5385 = vmax.f32 %v5231, 0.0
        %v5386 = vmax.f32 %v5236, 0.0
        %v5387 = vmax.f32 %v5241, 0.0
        %v5388 = vmax.f32 %v5246, 0.0
        %v5389 = vmax.f32 %v5251, 0.0
        %v5390 = vmax.f32 %v5256, 0.0
        %v5391 = vmax.f32 %v5261, 0.0
        %v5392 = vmax.f32 %v5266, 0.0
        %v5393 = vmax.f32 %v5271, 0.0
        %v5394 = vmax.f32 %v5276, 0.0
        %v5395 = vmax.f32 %v5281, 0.0
        %v5396 = vmax.f32 %v5286, 0.0
        %v5397 = vmax.f32 %v5291, 0.0
        %v5398 = vmax.f32 %v5296, 0.0
        %v5399 = vmax.f32 %v5301, 0.0
        %v5400 = vmax.f32 %v5306, 0.0
        %v5401 = vmax.f32 %v5311, 0.0
        %v5402 = vmax.f32 %v5316, 0.0
        %v5403 = vmax.f32 %v5321, 0.0
        %v5404 = vmax.f32 %v5326, 0.0
        %v5405 = vmax.f32 %v5331, 0.0
        %v5406 = vmax.f32 %v5336, 0.0
        %v5407 = vmax.f32 %v5341, 0.0
        %v5408 = vmax.f32 %v5346, 0.0
        %v5409 = vmax.f32 %v5351, 0.0
        %v5410 = vmax.f32 %v5356, 0.0
        %v5411 = vmax.f32 %v5361, 0.0
        %v5412 = vmax.f32 %v5366, 0.0
        %v5413 = vmax.f32 %v5371, 0.0
        %v5414 = vmax.f32 %v5376, 0.0
        %v5415 = vmax.f32 %v5381, 0.0
        %5416 = vst.msk [vmem:[%s325] sm:$0xff] %vm331, %v5384
        %5417 = vst.msk [vmem:[%s325 + $0x8] sm:$0xff] %vm331, %v5385
        %5418 = vst.msk [vmem:[%s325 + $0x10] sm:$0xff] %vm331, %v5386
        %5419 = vst.msk [vmem:[%s325 + $0x18] sm:$0xff] %vm331, %v5387
        %5420 = vst.msk [vmem:[%s325 + $0x20] sm:$0xff] %vm331, %v5388
        %5421 = vst.msk [vmem:[%s325 + $0x28] sm:$0xff] %vm331, %v5389
        %5422 = vst.msk [vmem:[%s325 + $0x30] sm:$0xff] %vm331, %v5390
        %5423 = vst.msk [vmem:[%s325 + $0x38] sm:$0xff] %vm331, %v5391
        %5424 = vst.msk [vmem:[%s325 + $0x40] sm:$0xff] %vm331, %v5392
        %5425 = vst.msk [vmem:[%s325 + $0x48] sm:$0xff] %vm331, %v5393
        %5426 = vst.msk [vmem:[%s325 + $0x50] sm:$0xff] %vm331, %v5394
        %5427 = vst.msk [vmem:[%s325 + $0x58] sm:$0xff] %vm331, %v5395
        %5428 = vst.msk [vmem:[%s325 + $0x60] sm:$0xff] %vm331, %v5396
        %5429 = vst.msk [vmem:[%s325 + $0x68] sm:$0xff] %vm331, %v5397
        %5430 = vst.msk [vmem:[%s325 + $0x70] sm:$0xff] %vm331, %v5398
        %5431 = vst.msk [vmem:[%s325 + $0x78] sm:$0xff] %vm331, %v5399
        %5432 = vst.msk [vmem:[%s325 + $0x80] sm:$0xff] %vm331, %v5400
        %5433 = vst.msk [vmem:[%s325 + $0x88] sm:$0xff] %vm331, %v5401
        %5434 = vst.msk [vmem:[%s325 + $0x90] sm:$0xff] %vm331, %v5402
        %5435 = vst.msk [vmem:[%s325 + $0x98] sm:$0xff] %vm331, %v5403
        %5436 = vst.msk [vmem:[%s325 + $0xa0] sm:$0xff] %vm331, %v5404
        %5437 = vst.msk [vmem:[%s325 + $0xa8] sm:$0xff] %vm331, %v5405
        %5438 = vst.msk [vmem:[%s325 + $0xb0] sm:$0xff] %vm331, %v5406
        %5439 = vst.msk [vmem:[%s325 + $0xb8] sm:$0xff] %vm331, %v5407
        %5440 = vst.msk [vmem:[%s325 + $0xc0] sm:$0xff] %vm331, %v5408
        %5441 = vst.msk [vmem:[%s325 + $0xc8] sm:$0xff] %vm331, %v5409
        %5442 = vst.msk [vmem:[%s325 + $0xd0] sm:$0xff] %vm331, %v5410
        %5443 = vst.msk [vmem:[%s325 + $0xd8] sm:$0xff] %vm331, %v5411
        %5444 = vst.msk [vmem:[%s325 + $0xe0] sm:$0xff] %vm331, %v5412
        %5445 = vst.msk [vmem:[%s325 + $0xe8] sm:$0xff] %vm331, %v5413
        %5446 = vst.msk [vmem:[%s325 + $0xf0] sm:$0xff] %vm331, %v5414
        %5447 = vst.msk [vmem:[%s325 + $0xf8] sm:$0xff] %vm331, %v5415
        %s5448 = sand.u32 %s225, 1
        %s5449 = scalar_lea.sflag [#allocation4], %s5448
        %s5450 = sand.u32 %s225, 1
        %s5451 = smul.addr %s5450, 256
        %s5452 = scalar_lea.vmem [#allocation3], %s5451
        // Predicated region
        $region57: #{attention_forward.1} parent=55 // pred_check
          %p5453 = pneg %p235
        $region58: #{attention_forward.1} parent=55 // pred_check_branch
          %5455 = sbr.rel (%p5453) target = $region60
        $region59: #{attention_forward.1} parent=55 // pred_region
          %s5457 = ssub.s32 4096, 4096
          %5458 = vsyncadd %s5449, %s5457
          %s5459 = smul.addr %s23, 32
          %s5460 = smul.addr %s5459, 128
          %s5461 = scalar_lea.hbm %s9, %s5460
          %s5462 = sshll.u32 %s5452, 4
          %s5463 = int_to_ptr.vmem [resolvable:$true] %s5462
          %5468 = dma.vmem_to_hbm [thread:$0]  %s5463, 4096, %s5461, %s5449, 128, 128, 8
        $region60: #{attention_forward.1} parent=55 // pred_fallthru
          _
      $region56: #{attention_forward.1} parent=5 // pred_fallthru
        _
      %p5469 = scmp.le.s32.totalorder 2, %s18
      // Predicated region
      $region61: #{attention_forward.1} parent=5 // pred_check
        %p5470 = pneg %p5469
      $region62: #{attention_forward.1} parent=5 // pred_check_branch
        %5472 = sbr.rel (%p5470) target = $region64
      $region63: #{attention_forward.1} parent=5 // pred_region
        %s5473 = ssub.s32 %s18, 2
        // Predicated region
        $region65: #{attention_forward.1} parent=63 // pred_check
          %p5474 = pneg %p241
        $region66: #{attention_forward.1} parent=63 // pred_check_branch
          %5476 = sbr.rel (%p5474) target = $region68
        $region67: #{attention_forward.1} parent=63 // pred_region
          %s5477 = sand.u32 %s226, 1
          %s5478 = scalar_lea.sflag [#allocation4], %s5477
          %s5479 = sand.u32 %s226, 1
          %s5480 = smul.addr %s5479, 256
          %s5481 = scalar_lea.vmem [#allocation3], %s5480
          %5482 = dma.done %s5478, 4096
        $region68: #{attention_forward.1} parent=63 // pred_fallthru
          _
      $region64: #{attention_forward.1} parent=5 // pred_fallthru
        _
    $region6: #{attention_forward.1} parent=1 // loop_footer
      %s22 = sadd.s32 1, %s18
    $region7: #{attention_forward.1} parent=1 // loop_footer_branch
      %17 = sbr.rel target = $region3
    $region8: #{attention_forward.1} parent=1 // loop_exit
      _
    %5483 = vsyncpa [#allocation4], 1
    %s5484 = scalar_lea.sflag [#allocation4], 1
    %5485 = vsyncpa %s5484, 1

</llo_original>
